<compile_context>
chip_gen: v6e
topology: v6e:2x2x1
jax: 0.10.0
libtpu: 0.0.40
codegen_flags: <defaults>
</compile_context>

<pallas_src>
import functools

import jax
import jax.numpy as jnp
from jax.experimental import pallas as pl
from jax.experimental.pallas import tpu as pltpu

_COMPILER_PARAMS = pltpu.CompilerParams(
    dimension_semantics=("arbitrary",),
    vmem_limit_bytes=32 * 1024 * 1024,
)


# ----------------------------- Pallas kernels ------------------------------

def _gemm_nm_kernel(w_ref, xT_ref, b_ref, o_ref, *, relu):
    """o (N, M) = W (N, K) @ xT (K, M) + b (N, 1); optional ReLU.  Lane dim = M."""
    y = jnp.dot(w_ref[...], xT_ref[...], preferred_element_type=jnp.float32)
    y = y + b_ref[...]                      # (N, 1) broadcast over lanes
    if relu:
        y = jnp.maximum(y, 0.0)
    o_ref[...] = y.astype(o_ref.dtype)


def conv_gemm_pallas(w2d, xT, b, *, relu, out_dtype):
    """Lane-dense GEMM: (N,K) @ (K,M) + b.  Whole arrays in VMEM (tiny at VAE sizes).
    # TODO(synk): tile M with a "parallel" grid axis once B*Ho*Wo grows large
    # (v7x second TensorCore / smaller VMEM); at MNIST batch sizes grid=(1,) wins.
    """
    N, K = w2d.shape
    M = xT.shape[1]
    return pl.pallas_call(
        functools.partial(_gemm_nm_kernel, relu=relu),
        grid=(1,),
        in_specs=[pl.BlockSpec((N, K), lambda i: (0, 0)),
                  pl.BlockSpec((K, M), lambda i: (0, 0)),
                  pl.BlockSpec((N, 1), lambda i: (0, 0))],
        out_specs=pl.BlockSpec((N, M), lambda i: (0, 0)),
        out_shape=jax.ShapeDtypeStruct((N, M), out_dtype),
        compiler_params=_COMPILER_PARAMS,
    )(w2d, xT, b.reshape(N, 1).astype(jnp.float32))


def _mlp_reparam_kernel(enc_ref, eps_ref,
                        w1_ref, b1_ref, w2_ref, b2_ref,
                        w3_ref, b3_ref, w4_ref, b4_ref,
                        mu_ref, ls_ref, dec_ref, *, latent_dim):
    """Fused encoder FCs + reparameterization + decoder FCs, all VMEM-resident."""
    f32 = jnp.float32
    x = enc_ref[...]                                                   # (B, 1568) bf16
    h1 = jnp.dot(x, w1_ref[...], preferred_element_type=f32) + b1_ref[...]
    h1 = jnp.maximum(h1, 0.0)
    h2 = jnp.dot(h1.astype(jnp.bfloat16), w2_ref[...],
                 preferred_element_type=f32) + b2_ref[...]             # (B, 2L)
    mu = h2[:, :latent_dim]
    logsigma = h2[:, latent_dim:]
    mu_ref[...] = mu
    ls_ref[...] = logsigma
    z = mu + jnp.exp(logsigma) * eps_ref[...]                          # reparam (EUP)
    d1 = jnp.dot(z.astype(jnp.bfloat16), w3_ref[...],
                 preferred_element_type=f32) + b3_ref[...]
    d1 = jnp.maximum(d1, 0.0)
    d2 = jnp.dot(d1.astype(jnp.bfloat16), w4_ref[...],
                 preferred_element_type=f32) + b4_ref[...]
    d2 = jnp.maximum(d2, 0.0)
    dec_ref[...] = d2.astype(dec_ref.dtype)


def mlp_reparam_pallas(enc, eps, params, latent_dim):
    B = enc.shape[0]
    w1 = params["fc1_w"].astype(jnp.bfloat16);  b1 = params["fc1_b"].reshape(1, -1)
    w2 = params["fc2_w"].astype(jnp.bfloat16);  b2 = params["fc2_b"].reshape(1, -1)
    w3 = params["dfc1_w"].astype(jnp.bfloat16); b3 = params["dfc1_b"].reshape(1, -1)
    w4 = params["dfc2_w"].astype(jnp.bfloat16); b4 = params["dfc2_b"].reshape(1, -1)
    D_dec = w4.shape[1]

    inputs = (enc, eps, w1, b1, w2, b2, w3, b3, w4, b4)

    def full2d(a):
        return pl.BlockSpec(a.shape, lambda i: (0, 0))

    return pl.pallas_call(
        functools.partial(_mlp_reparam_kernel, latent_dim=latent_dim),
        grid=(1,),
        in_specs=[full2d(a) for a in inputs],
        out_specs=(pl.BlockSpec((B, latent_dim), lambda i: (0, 0)),
                   pl.BlockSpec((B, latent_dim), lambda i: (0, 0)),
                   pl.BlockSpec((B, D_dec), lambda i: (0, 0))),
        out_shape=(jax.ShapeDtypeStruct((B, latent_dim), jnp.float32),
                   jax.ShapeDtypeStruct((B, latent_dim), jnp.float32),
                   jax.ShapeDtypeStruct((B, D_dec), jnp.bfloat16)),
        compiler_params=_COMPILER_PARAMS,
    )(*inputs)


# ------------------ conv via im2col + lane-dense Pallas GEMM -----------------

def _im2col_T(x, k, stride, pad):
    """x (B,C,H,W) -> patches^T (C*k*k, B*Ho*Wo); row order (c, ky, kx) matches
    PyTorch weight.reshape(Cout, Cin*k*k)."""
    B, C, H, W = x.shape
    xp = jnp.pad(x, ((0, 0), (0, 0), (pad, pad), (pad, pad)))
    Ho = (H + 2 * pad - k) // stride + 1
    Wo = (W + 2 * pad - k) // stride + 1
    cols = []
    for i in range(k):
        for j in range(k):
            cols.append(xp[:, :, i:i + stride * Ho:stride, j:j + stride * Wo:stride])
    cols = jnp.stack(cols, axis=0).reshape(k, k, B, C, Ho, Wo)
    cols = cols.transpose(3, 0, 1, 2, 4, 5)          # (C, kH, kW, B, Ho, Wo)
    return cols.reshape(C * k * k, B * Ho * Wo), Ho, Wo


def conv2d_pallas(x, w, b, stride, pad, relu=False, out_dtype=jnp.float32):
    """x:(B,Cin,H,W), w:(Cout,Cin,k,k) PyTorch layout, b:(Cout,) -> (B,Cout,Ho,Wo)."""
    B = x.shape[0]
    Cout, Cin, k, _ = w.shape
    xT, Ho, Wo = _im2col_T(x.astype(jnp.bfloat16), k, stride, pad)      # (K, M) bf16
    w2d = w.reshape(Cout, Cin * k * k).astype(jnp.bfloat16)             # (N, K) bf16
    y = conv_gemm_pallas(w2d, xT, b, relu=relu, out_dtype=out_dtype)    # (Cout, B*Ho*Wo)
    return y.reshape(Cout, B, Ho, Wo).transpose(1, 0, 2, 3)


def conv_transpose2d_pallas(x, w, b, stride, pad, relu=False, out_dtype=jnp.float32):
    """PyTorch ConvTranspose2d.  x:(B,Cin,H,W), w:(Cin,Cout,k,k), b:(Cout,)."""
    # TODO(synk): replace the zero-dilated input with the 4-phase sub-pixel
    # decomposition to skip the ~75% all-zero MACs (matters at larger batch).
    B, Cin, H, W = x.shape
    _, Cout, k, _ = w.shape
    if stride > 1:
        xd = jnp.zeros((B, Cin, (H - 1) * stride + 1, (W - 1) * stride + 1), x.dtype)
        xd = xd.at[:, :, ::stride, ::stride].set(x)
    else:
        xd = x
    w_conv = jnp.flip(w, axis=(2, 3)).transpose(1, 0, 2, 3)  # (Cout, Cin, k, k)
    return conv2d_pallas(xd, w_conv, b, stride=1, pad=k - 1 - pad,
                         relu=relu, out_dtype=out_dtype)


# --------------------------------- VAE --------------------------------------

def init_params(latent_dim, key):
    keys = jax.random.split(key, 16)
    def w(k, shape, scale=0.05):
        return jax.random.normal(k, shape, jnp.float32) * scale
    return {
        # encoder
        "conv1_w": w(keys[0], (16, 1, 4, 4)),  "conv1_b": w(keys[1], (16,)),
        "conv2_w": w(keys[2], (32, 16, 4, 4)), "conv2_b": w(keys[3], (32,)),
        "fc1_w": w(keys[4], (7 * 7 * 32, 128)), "fc1_b": w(keys[5], (128,)),
        "fc2_w": w(keys[6], (128, latent_dim * 2)), "fc2_b": w(keys[7], (latent_dim * 2,)),
        # decoder
        "dfc1_w": w(keys[8], (latent_dim, 128)), "dfc1_b": w(keys[9], (128,)),
        "dfc2_w": w(keys[10], (128, 7 * 7 * 32)), "dfc2_b": w(keys[11], (7 * 7 * 32,)),
        "dconv1_w": w(keys[12], (32, 16, 4, 4)), "dconv1_b": w(keys[13], (16,)),
        "dconv2_w": w(keys[14], (16, 1, 4, 4)),  "dconv2_b": w(keys[15], (1,)),
    }


def vae_forward(params, x, noise_key, latent_dim):
    B = x.shape[0]
    # ----- encoder convs -----
    h = conv2d_pallas(x, params["conv1_w"], params["conv1_b"], stride=2, pad=1,
                      relu=True, out_dtype=jnp.bfloat16)                          # (B,16,14,14)
    h = conv2d_pallas(h, params["conv2_w"], params["conv2_b"], stride=2, pad=1,
                      relu=True, out_dtype=jnp.bfloat16)                          # (B,32,7,7)
    enc = h.reshape(B, 32 * 7 * 7)                       # nn.Flatten (C,H,W order)
    # ----- fused FCs + reparameterization (single Pallas call) -----
    eps = jax.random.normal(noise_key, (B, latent_dim), jnp.float32)
    mu, logsigma, dec = mlp_reparam_pallas(enc, eps, params, latent_dim)
    # ----- decoder convs -----
    d = dec.reshape(B, 32, 7, 7).transpose(0, 1, 3, 2)   # 'b (c h w) -> b c w h' (spec)
    d = conv_transpose2d_pallas(d, params["dconv1_w"], params["dconv1_b"], stride=2,
                                pad=1, relu=True, out_dtype=jnp.bfloat16)         # (B,16,14,14)
    x_rec = conv_transpose2d_pallas(d, params["dconv2_w"], params["dconv2_b"], stride=2,
                                    pad=1, relu=False, out_dtype=jnp.float32)     # (B,1,28,28)
    return x_rec, mu, logsigma


if __name__ == "__main__":
    latent_dim = 8
    batch = 2
    root = jax.random.PRNGKey(0)
    k_param, k_x, k_noise = jax.random.split(root, 3)

    params = init_params(latent_dim, k_param)
    # Architecture fixes spatial size to 28x28 (MNIST-like), 1 input channel.
    x = jax.random.normal(k_x, (batch, 1, 28, 28), jnp.float32)

    fwd = jax.jit(vae_forward, static_argnums=3)
    x_rec, mu, logsigma = fwd(params, x, k_noise, latent_dim)
    jax.block_until_ready((x_rec, mu, logsigma))

    assert x_rec.shape == (batch, 1, 28, 28)
    assert mu.shape == (batch, latent_dim)
    assert logsigma.shape == (batch, latent_dim)
    print("KERNEL_OK")
</pallas_src>

<mosaic_0001>
module attributes {stable_mosaic.version = 11 : i64} {
  func.func @_gemm_nm_kernel(%arg0: i32, %arg1: memref<16x16xbf16, #tpu.memory_space<vmem>>, %arg2: memref<16x392xbf16, #tpu.memory_space<vmem>>, %arg3: memref<16x1xf32, #tpu.memory_space<vmem>>, %arg4: memref<16x392xbf16, #tpu.memory_space<vmem>>) attributes {dimension_semantics = [#tpu.dimension_semantics<arbitrary>], iteration_bounds = array<i64: 1>, scalar_prefetch = 0 : i64, scratch_operands = 0 : i64, tpu.core_type = #tpu.core_type<tc>, window_params = [{pipeline_mode = #tpu.pipeline_mode<synchronous>, transform_indices = @transform_0, window_bounds = array<i64: 16, 16>}, {pipeline_mode = #tpu.pipeline_mode<synchronous>, transform_indices = @transform_1, window_bounds = array<i64: 16, 392>}, {pipeline_mode = #tpu.pipeline_mode<synchronous>, transform_indices = @transform_2, window_bounds = array<i64: 16, 1>}, {pipeline_mode = #tpu.pipeline_mode<synchronous>, transform_indices = @transform_3, window_bounds = array<i64: 16, 392>}]} {
    %c0 = arith.constant 0 : index
    %c0_0 = arith.constant 0 : index
    %0 = vector.load %arg1[%c0, %c0_0] : memref<16x16xbf16, #tpu.memory_space<vmem>>, vector<16x16xbf16>
    %c0_1 = arith.constant 0 : index
    %c0_2 = arith.constant 0 : index
    %1 = vector.load %arg2[%c0_1, %c0_2] : memref<16x392xbf16, #tpu.memory_space<vmem>>, vector<16x392xbf16>
    %cst = arith.constant dense<0.000000e+00> : vector<16x392xf32>
    %2 = tpu.matmul %0, %1, %cst {dimension_numbers = #tpu.dot_dimension_numbers<[1], [0], [0], [1], [0, 0, 1, 1], [], []>} : vector<16x16xbf16>, vector<16x392xbf16>, vector<16x392xf32> -> vector<16x392xf32>
    %c0_3 = arith.constant 0 : index
    %c0_4 = arith.constant 0 : index
    %3 = vector.load %arg3[%c0_3, %c0_4] : memref<16x1xf32, #tpu.memory_space<vmem>>, vector<16x1xf32>
    %4 = vector.broadcast %3 : vector<16x1xf32> to vector<16x392xf32>
    %5 = arith.addf %2, %4 : vector<16x392xf32>
    %cst_5 = arith.constant 0.000000e+00 : f32
    %6 = vector.broadcast %cst_5 : f32 to vector<16x392xf32>
    %7 = arith.maximumf %5, %6 : vector<16x392xf32>
    %8 = arith.truncf %7 : vector<16x392xf32> to vector<16x392xbf16>
    %c0_6 = arith.constant 0 : index
    %c0_7 = arith.constant 0 : index
    %9 = vector.load %arg4[%c0_6, %c0_7] : memref<16x392xbf16, #tpu.memory_space<vmem>>, vector<16x392xbf16>
    tpu.vector_store %arg4[%c0_6, %c0_7], %8 {strides = array<i32>} : memref<16x392xbf16, #tpu.memory_space<vmem>>, vector<16x392xbf16>,
    return
  }
  func.func @transform_0(%arg0: i32) -> (i32, i32) {
    %c0_i32 = arith.constant 0 : i32
    %c0_i32_0 = arith.constant 0 : i32
    %c0_i32_1 = arith.constant 0 : i32
    return %c0_i32, %c0_i32_0 : i32, i32
  }
  func.func @transform_1(%arg0: i32) -> (i32, i32) {
    %c0_i32 = arith.constant 0 : i32
    %c0_i32_0 = arith.constant 0 : i32
    %c0_i32_1 = arith.constant 0 : i32
    return %c0_i32, %c0_i32_0 : i32, i32
  }
  func.func @transform_2(%arg0: i32) -> (i32, i32) {
    %c0_i32 = arith.constant 0 : i32
    %c0_i32_0 = arith.constant 0 : i32
    %c0_i32_1 = arith.constant 0 : i32
    return %c0_i32, %c0_i32_0 : i32, i32
  }
  func.func @transform_3(%arg0: i32) -> (i32, i32) {
    %c0_i32 = arith.constant 0 : i32
    %c0_i32_0 = arith.constant 0 : i32
    %c0_i32_1 = arith.constant 0 : i32
    return %c0_i32, %c0_i32_0 : i32, i32
  }
}

module attributes {stable_mosaic.version = 11 : i64} {
  func.func @_gemm_nm_kernel(%arg0: i32, %arg1: memref<32x256xbf16, #tpu.memory_space<vmem>>, %arg2: memref<256x98xbf16, #tpu.memory_space<vmem>>, %arg3: memref<32x1xf32, #tpu.memory_space<vmem>>, %arg4: memref<32x98xbf16, #tpu.memory_space<vmem>>) attributes {dimension_semantics = [#tpu.dimension_semantics<arbitrary>], iteration_bounds = array<i64: 1>, scalar_prefetch = 0 : i64, scratch_operands = 0 : i64, tpu.core_type = #tpu.core_type<tc>, window_params = [{pipeline_mode = #tpu.pipeline_mode<synchronous>, transform_indices = @transform_0, window_bounds = array<i64: 32, 256>}, {pipeline_mode = #tpu.pipeline_mode<synchronous>, transform_indices = @transform_1, window_bounds = array<i64: 256, 98>}, {pipeline_mode = #tpu.pipeline_mode<synchronous>, transform_indices = @transform_2, window_bounds = array<i64: 32, 1>}, {pipeline_mode = #tpu.pipeline_mode<synchronous>, transform_indices = @transform_3, window_bounds = array<i64: 32, 98>}]} {
    %c0 = arith.constant 0 : index
    %c0_0 = arith.constant 0 : index
    %0 = vector.load %arg1[%c0, %c0_0] : memref<32x256xbf16, #tpu.memory_space<vmem>>, vector<32x256xbf16>
    %c0_1 = arith.constant 0 : index
    %c0_2 = arith.constant 0 : index
    %1 = vector.load %arg2[%c0_1, %c0_2] : memref<256x98xbf16, #tpu.memory_space<vmem>>, vector<256x98xbf16>
    %cst = arith.constant dense<0.000000e+00> : vector<32x98xf32>
    %2 = tpu.matmul %0, %1, %cst {dimension_numbers = #tpu.dot_dimension_numbers<[1], [0], [0], [1], [0, 0, 1, 1], [], []>} : vector<32x256xbf16>, vector<256x98xbf16>, vector<32x98xf32> -> vector<32x98xf32>
    %c0_3 = arith.constant 0 : index
    %c0_4 = arith.constant 0 : index
    %3 = vector.load %arg3[%c0_3, %c0_4] : memref<32x1xf32, #tpu.memory_space<vmem>>, vector<32x1xf32>
    %4 = vector.broadcast %3 : vector<32x1xf32> to vector<32x98xf32>
    %5 = arith.addf %2, %4 : vector<32x98xf32>
    %cst_5 = arith.constant 0.000000e+00 : f32
    %6 = vector.broadcast %cst_5 : f32 to vector<32x98xf32>
    %7 = arith.maximumf %5, %6 : vector<32x98xf32>
    %8 = arith.truncf %7 : vector<32x98xf32> to vector<32x98xbf16>
    %c0_6 = arith.constant 0 : index
    %c0_7 = arith.constant 0 : index
    %9 = vector.load %arg4[%c0_6, %c0_7] : memref<32x98xbf16, #tpu.memory_space<vmem>>, vector<32x98xbf16>
    tpu.vector_store %arg4[%c0_6, %c0_7], %8 {strides = array<i32>} : memref<32x98xbf16, #tpu.memory_space<vmem>>, vector<32x98xbf16>,
    return
  }
  func.func @transform_0(%arg0: i32) -> (i32, i32) {
    %c0_i32 = arith.constant 0 : i32
    %c0_i32_0 = arith.constant 0 : i32
    %c0_i32_1 = arith.constant 0 : i32
    return %c0_i32, %c0_i32_0 : i32, i32
  }
  func.func @transform_1(%arg0: i32) -> (i32, i32) {
    %c0_i32 = arith.constant 0 : i32
    %c0_i32_0 = arith.constant 0 : i32
    %c0_i32_1 = arith.constant 0 : i32
    return %c0_i32, %c0_i32_0 : i32, i32
  }
  func.func @transform_2(%arg0: i32) -> (i32, i32) {
    %c0_i32 = arith.constant 0 : i32
    %c0_i32_0 = arith.constant 0 : i32
    %c0_i32_1 = arith.constant 0 : i32
    return %c0_i32, %c0_i32_0 : i32, i32
  }
  func.func @transform_3(%arg0: i32) -> (i32, i32) {
    %c0_i32 = arith.constant 0 : i32
    %c0_i32_0 = arith.constant 0 : i32
    %c0_i32_1 = arith.constant 0 : i32
    return %c0_i32, %c0_i32_0 : i32, i32
  }
}

module attributes {stable_mosaic.version = 11 : i64} {
  func.func @_mlp_reparam_kernel(%arg0: i32, %arg1: memref<2x1568xbf16, #tpu.memory_space<vmem>>, %arg2: memref<2x8xf32, #tpu.memory_space<vmem>>, %arg3: memref<1568x128xbf16, #tpu.memory_space<vmem>>, %arg4: memref<1x128xf32, #tpu.memory_space<vmem>>, %arg5: memref<128x16xbf16, #tpu.memory_space<vmem>>, %arg6: memref<1x16xf32, #tpu.memory_space<vmem>>, %arg7: memref<8x128xbf16, #tpu.memory_space<vmem>>, %arg8: memref<1x128xf32, #tpu.memory_space<vmem>>, %arg9: memref<128x1568xbf16, #tpu.memory_space<vmem>>, %arg10: memref<1x1568xf32, #tpu.memory_space<vmem>>, %arg11: memref<2x8xf32, #tpu.memory_space<vmem>>, %arg12: memref<2x8xf32, #tpu.memory_space<vmem>>, %arg13: memref<2x1568xbf16, #tpu.memory_space<vmem>>) attributes {dimension_semantics = [#tpu.dimension_semantics<arbitrary>], iteration_bounds = array<i64: 1>, scalar_prefetch = 0 : i64, scratch_operands = 0 : i64, tpu.core_type = #tpu.core_type<tc>, window_params = [{pipeline_mode = #tpu.pipeline_mode<synchronous>, transform_indices = @transform_0, window_bounds = array<i64: 2, 1568>}, {pipeline_mode = #tpu.pipeline_mode<synchronous>, transform_indices = @transform_1, window_bounds = array<i64: 2, 8>}, {pipeline_mode = #tpu.pipeline_mode<synchronous>, transform_indices = @transform_2, window_bounds = array<i64: 1568, 128>}, {pipeline_mode = #tpu.pipeline_mode<synchronous>, transform_indices = @transform_3, window_bounds = array<i64: 1, 128>}, {pipeline_mode = #tpu.pipeline_mode<synchronous>, transform_indices = @transform_4, window_bounds = array<i64: 128, 16>}, {pipeline_mode = #tpu.pipeline_mode<synchronous>, transform_indices = @transform_5, window_bounds = array<i64: 1, 16>}, {pipeline_mode = #tpu.pipeline_mode<synchronous>, transform_indices = @transform_6, window_bounds = array<i64: 8, 128>}, {pipeline_mode = #tpu.pipeline_mode<synchronous>, transform_indices = @transform_7, window_bounds = array<i64: 1, 128>}, {pipeline_mode = #tpu.pipeline_mode<synchronous>, transform_indices = @transform_8, window_bounds = array<i64: 128, 1568>}, {pipeline_mode = #tpu.pipeline_mode<synchronous>, transform_indices = @transform_9, window_bounds = array<i64: 1, 1568>}, {pipeline_mode = #tpu.pipeline_mode<synchronous>, transform_indices = @transform_10, window_bounds = array<i64: 2, 8>}, {pipeline_mode = #tpu.pipeline_mode<synchronous>, transform_indices = @transform_11, window_bounds = array<i64: 2, 8>}, {pipeline_mode = #tpu.pipeline_mode<synchronous>, transform_indices = @transform_12, window_bounds = array<i64: 2, 1568>}]} {
    %c0 = arith.constant 0 : index
    %c0_0 = arith.constant 0 : index
    %0 = vector.load %arg1[%c0, %c0_0] : memref<2x1568xbf16, #tpu.memory_space<vmem>>, vector<2x1568xbf16>
    %c0_1 = arith.constant 0 : index
    %c0_2 = arith.constant 0 : index
    %1 = vector.load %arg3[%c0_1, %c0_2] : memref<1568x128xbf16, #tpu.memory_space<vmem>>, vector<1568x128xbf16>
    %cst = arith.constant dense<0.000000e+00> : vector<2x128xf32>
    %2 = tpu.matmul %0, %1, %cst {dimension_numbers = #tpu.dot_dimension_numbers<[1], [0], [0], [1], [0, 0, 1, 1], [], []>} : vector<2x1568xbf16>, vector<1568x128xbf16>, vector<2x128xf32> -> vector<2x128xf32>
    %c0_3 = arith.constant 0 : index
    %c0_4 = arith.constant 0 : index
    %3 = vector.load %arg4[%c0_3, %c0_4] : memref<1x128xf32, #tpu.memory_space<vmem>>, vector<1x128xf32>
    %4 = vector.broadcast %3 : vector<1x128xf32> to vector<2x128xf32>
    %5 = arith.addf %2, %4 : vector<2x128xf32>
    %cst_5 = arith.constant 0.000000e+00 : f32
    %6 = vector.broadcast %cst_5 : f32 to vector<2x128xf32>
    %7 = arith.maximumf %5, %6 : vector<2x128xf32>
    %8 = arith.truncf %7 : vector<2x128xf32> to vector<2x128xbf16>
    %c0_6 = arith.constant 0 : index
    %c0_7 = arith.constant 0 : index
    %9 = vector.load %arg5[%c0_6, %c0_7] : memref<128x16xbf16, #tpu.memory_space<vmem>>, vector<128x16xbf16>
    %cst_8 = arith.constant dense<0.000000e+00> : vector<2x16xf32>
    %10 = tpu.matmul %8, %9, %cst_8 {dimension_numbers = #tpu.dot_dimension_numbers<[1], [0], [0], [1], [0, 0, 1, 1], [], []>} : vector<2x128xbf16>, vector<128x16xbf16>, vector<2x16xf32> -> vector<2x16xf32>
    %c0_9 = arith.constant 0 : index
    %c0_10 = arith.constant 0 : index
    %11 = vector.load %arg6[%c0_9, %c0_10] : memref<1x16xf32, #tpu.memory_space<vmem>>, vector<1x16xf32>
    %12 = vector.broadcast %11 : vector<1x16xf32> to vector<2x16xf32>
    %13 = arith.addf %10, %12 : vector<2x16xf32>
    %14 = vector.extract_strided_slice %13 {offsets = [0, 0], sizes = [2, 8], strides = [1, 1]} : vector<2x16xf32> to vector<2x8xf32>
    %15 = vector.extract_strided_slice %13 {offsets = [0, 8], sizes = [2, 8], strides = [1, 1]} : vector<2x16xf32> to vector<2x8xf32>
    %c0_11 = arith.constant 0 : index
    %c0_12 = arith.constant 0 : index
    %16 = vector.load %arg11[%c0_11, %c0_12] : memref<2x8xf32, #tpu.memory_space<vmem>>, vector<2x8xf32>
    tpu.vector_store %arg11[%c0_11, %c0_12], %14 {strides = array<i32>} : memref<2x8xf32, #tpu.memory_space<vmem>>, vector<2x8xf32>,
    %c0_13 = arith.constant 0 : index
    %c0_14 = arith.constant 0 : index
    %17 = vector.load %arg12[%c0_13, %c0_14] : memref<2x8xf32, #tpu.memory_space<vmem>>, vector<2x8xf32>
    tpu.vector_store %arg12[%c0_13, %c0_14], %15 {strides = array<i32>} : memref<2x8xf32, #tpu.memory_space<vmem>>, vector<2x8xf32>,
    %18 = math.exp %15 : vector<2x8xf32>
    %c0_15 = arith.constant 0 : index
    %c0_16 = arith.constant 0 : index
    %19 = vector.load %arg2[%c0_15, %c0_16] : memref<2x8xf32, #tpu.memory_space<vmem>>, vector<2x8xf32>
    %20 = arith.mulf %18, %19 : vector<2x8xf32>
    %21 = arith.addf %14, %20 : vector<2x8xf32>
    %22 = arith.truncf %21 : vector<2x8xf32> to vector<2x8xbf16>
    %c0_17 = arith.constant 0 : index
    %c0_18 = arith.constant 0 : index
    %23 = vector.load %arg7[%c0_17, %c0_18] : memref<8x128xbf16, #tpu.memory_space<vmem>>, vector<8x128xbf16>
    %cst_19 = arith.constant dense<0.000000e+00> : vector<2x128xf32>
    %24 = tpu.matmul %22, %23, %cst_19 {dimension_numbers = #tpu.dot_dimension_numbers<[1], [0], [0], [1], [0, 0, 1, 1], [], []>} : vector<2x8xbf16>, vector<8x128xbf16>, vector<2x128xf32> -> vector<2x128xf32>
    %c0_20 = arith.constant 0 : index
    %c0_21 = arith.constant 0 : index
    %25 = vector.load %arg8[%c0_20, %c0_21] : memref<1x128xf32, #tpu.memory_space<vmem>>, vector<1x128xf32>
    %26 = vector.broadcast %25 : vector<1x128xf32> to vector<2x128xf32>
    %27 = arith.addf %24, %26 : vector<2x128xf32>
    %cst_22 = arith.constant 0.000000e+00 : f32
    %28 = vector.broadcast %cst_22 : f32 to vector<2x128xf32>
    %29 = arith.maximumf %27, %28 : vector<2x128xf32>
    %30 = arith.truncf %29 : vector<2x128xf32> to vector<2x128xbf16>
    %c0_23 = arith.constant 0 : index
    %c0_24 = arith.constant 0 : index
    %31 = vector.load %arg9[%c0_23, %c0_24] : memref<128x1568xbf16, #tpu.memory_space<vmem>>, vector<128x1568xbf16>
    %cst_25 = arith.constant dense<0.000000e+00> : vector<2x1568xf32>
    %32 = tpu.matmul %30, %31, %cst_25 {dimension_numbers = #tpu.dot_dimension_numbers<[1], [0], [0], [1], [0, 0, 1, 1], [], []>} : vector<2x128xbf16>, vector<128x1568xbf16>, vector<2x1568xf32> -> vector<2x1568xf32>
    %c0_26 = arith.constant 0 : index
    %c0_27 = arith.constant 0 : index
    %33 = vector.load %arg10[%c0_26, %c0_27] : memref<1x1568xf32, #tpu.memory_space<vmem>>, vector<1x1568xf32>
    %34 = vector.broadcast %33 : vector<1x1568xf32> to vector<2x1568xf32>
    %35 = arith.addf %32, %34 : vector<2x1568xf32>
    %cst_28 = arith.constant 0.000000e+00 : f32
    %36 = vector.broadcast %cst_28 : f32 to vector<2x1568xf32>
    %37 = arith.maximumf %35, %36 : vector<2x1568xf32>
    %38 = arith.truncf %37 : vector<2x1568xf32> to vector<2x1568xbf16>
    %c0_29 = arith.constant 0 : index
    %c0_30 = arith.constant 0 : index
    %39 = vector.load %arg13[%c0_29, %c0_30] : memref<2x1568xbf16, #tpu.memory_space<vmem>>, vector<2x1568xbf16>
    tpu.vector_store %arg13[%c0_29, %c0_30], %38 {strides = array<i32>} : memref<2x1568xbf16, #tpu.memory_space<vmem>>, vector<2x1568xbf16>,
    return
  }
  func.func @transform_0(%arg0: i32) -> (i32, i32) {
    %c0_i32 = arith.constant 0 : i32
    %c0_i32_0 = arith.constant 0 : i32
    %c0_i32_1 = arith.constant 0 : i32
    return %c0_i32, %c0_i32_0 : i32, i32
  }
  func.func @transform_1(%arg0: i32) -> (i32, i32) {
    %c0_i32 = arith.constant 0 : i32
    %c0_i32_0 = arith.constant 0 : i32
    %c0_i32_1 = arith.constant 0 : i32
    return %c0_i32, %c0_i32_0 : i32, i32
  }
  func.func @transform_2(%arg0: i32) -> (i32, i32) {
    %c0_i32 = arith.constant 0 : i32
    %c0_i32_0 = arith.constant 0 : i32
    %c0_i32_1 = arith.constant 0 : i32
    return %c0_i32, %c0_i32_0 : i32, i32
  }
  func.func @transform_3(%arg0: i32) -> (i32, i32) {
    %c0_i32 = arith.constant 0 : i32
    %c0_i32_0 = arith.constant 0 : i32
    %c0_i32_1 = arith.constant 0 : i32
    return %c0_i32, %c0_i32_0 : i32, i32
  }
  func.func @transform_4(%arg0: i32) -> (i32, i32) {
    %c0_i32 = arith.constant 0 : i32
    %c0_i32_0 = arith.constant 0 : i32
    %c0_i32_1 = arith.constant 0 : i32
    return %c0_i32, %c0_i32_0 : i32, i32
  }
  func.func @transform_5(%arg0: i32) -> (i32, i32) {
    %c0_i32 = arith.constant 0 : i32
    %c0_i32_0 = arith.constant 0 : i32
    %c0_i32_1 = arith.constant 0 : i32
    return %c0_i32, %c0_i32_0 : i32, i32
  }
  func.func @transform_6(%arg0: i32) -> (i32, i32) {
    %c0_i32 = arith.constant 0 : i32
    %c0_i32_0 = arith.constant 0 : i32
    %c0_i32_1 = arith.constant 0 : i32
    return %c0_i32, %c0_i32_0 : i32, i32
  }
  func.func @transform_7(%arg0: i32) -> (i32, i32) {
    %c0_i32 = arith.constant 0 : i32
    %c0_i32_0 = arith.constant 0 : i32
    %c0_i32_1 = arith.constant 0 : i32
    return %c0_i32, %c0_i32_0 : i32, i32
  }
  func.func @transform_8(%arg0: i32) -> (i32, i32) {
    %c0_i32 = arith.constant 0 : i32
    %c0_i32_0 = arith.constant 0 : i32
    %c0_i32_1 = arith.constant 0 : i32
    return %c0_i32, %c0_i32_0 : i32, i32
  }
  func.func @transform_9(%arg0: i32) -> (i32, i32) {
    %c0_i32 = arith.constant 0 : i32
    %c0_i32_0 = arith.constant 0 : i32
    %c0_i32_1 = arith.constant 0 : i32
    return %c0_i32, %c0_i32_0 : i32, i32
  }
  func.func @transform_10(%arg0: i32) -> (i32, i32) {
    %c0_i32 = arith.constant 0 : i32
    %c0_i32_0 = arith.constant 0 : i32
    %c0_i32_1 = arith.constant 0 : i32
    return %c0_i32, %c0_i32_0 : i32, i32
  }
  func.func @transform_11(%arg0: i32) -> (i32, i32) {
    %c0_i32 = arith.constant 0 : i32
    %c0_i32_0 = arith.constant 0 : i32
    %c0_i32_1 = arith.constant 0 : i32
    return %c0_i32, %c0_i32_0 : i32, i32
  }
  func.func @transform_12(%arg0: i32) -> (i32, i32) {
    %c0_i32 = arith.constant 0 : i32
    %c0_i32_0 = arith.constant 0 : i32
    %c0_i32_1 = arith.constant 0 : i32
    return %c0_i32, %c0_i32_0 : i32, i32
  }
}

module attributes {stable_mosaic.version = 11 : i64} {
  func.func @_gemm_nm_kernel(%arg0: i32, %arg1: memref<16x512xbf16, #tpu.memory_space<vmem>>, %arg2: memref<512x392xbf16, #tpu.memory_space<vmem>>, %arg3: memref<16x1xf32, #tpu.memory_space<vmem>>, %arg4: memref<16x392xbf16, #tpu.memory_space<vmem>>) attributes {dimension_semantics = [#tpu.dimension_semantics<arbitrary>], iteration_bounds = array<i64: 1>, scalar_prefetch = 0 : i64, scratch_operands = 0 : i64, tpu.core_type = #tpu.core_type<tc>, window_params = [{pipeline_mode = #tpu.pipeline_mode<synchronous>, transform_indices = @transform_0, window_bounds = array<i64: 16, 512>}, {pipeline_mode = #tpu.pipeline_mode<synchronous>, transform_indices = @transform_1, window_bounds = array<i64: 512, 392>}, {pipeline_mode = #tpu.pipeline_mode<synchronous>, transform_indices = @transform_2, window_bounds = array<i64: 16, 1>}, {pipeline_mode = #tpu.pipeline_mode<synchronous>, transform_indices = @transform_3, window_bounds = array<i64: 16, 392>}]} {
    %c0 = arith.constant 0 : index
    %c0_0 = arith.constant 0 : index
    %0 = vector.load %arg1[%c0, %c0_0] : memref<16x512xbf16, #tpu.memory_space<vmem>>, vector<16x512xbf16>
    %c0_1 = arith.constant 0 : index
    %c0_2 = arith.constant 0 : index
    %1 = vector.load %arg2[%c0_1, %c0_2] : memref<512x392xbf16, #tpu.memory_space<vmem>>, vector<512x392xbf16>
    %cst = arith.constant dense<0.000000e+00> : vector<16x392xf32>
    %2 = tpu.matmul %0, %1, %cst {dimension_numbers = #tpu.dot_dimension_numbers<[1], [0], [0], [1], [0, 0, 1, 1], [], []>} : vector<16x512xbf16>, vector<512x392xbf16>, vector<16x392xf32> -> vector<16x392xf32>
    %c0_3 = arith.constant 0 : index
    %c0_4 = arith.constant 0 : index
    %3 = vector.load %arg3[%c0_3, %c0_4] : memref<16x1xf32, #tpu.memory_space<vmem>>, vector<16x1xf32>
    %4 = vector.broadcast %3 : vector<16x1xf32> to vector<16x392xf32>
    %5 = arith.addf %2, %4 : vector<16x392xf32>
    %cst_5 = arith.constant 0.000000e+00 : f32
    %6 = vector.broadcast %cst_5 : f32 to vector<16x392xf32>
    %7 = arith.maximumf %5, %6 : vector<16x392xf32>
    %8 = arith.truncf %7 : vector<16x392xf32> to vector<16x392xbf16>
    %c0_6 = arith.constant 0 : index
    %c0_7 = arith.constant 0 : index
    %9 = vector.load %arg4[%c0_6, %c0_7] : memref<16x392xbf16, #tpu.memory_space<vmem>>, vector<16x392xbf16>
    tpu.vector_store %arg4[%c0_6, %c0_7], %8 {strides = array<i32>} : memref<16x392xbf16, #tpu.memory_space<vmem>>, vector<16x392xbf16>,
    return
  }
  func.func @transform_0(%arg0: i32) -> (i32, i32) {
    %c0_i32 = arith.constant 0 : i32
    %c0_i32_0 = arith.constant 0 : i32
    %c0_i32_1 = arith.constant 0 : i32
    return %c0_i32, %c0_i32_0 : i32, i32
  }
  func.func @transform_1(%arg0: i32) -> (i32, i32) {
    %c0_i32 = arith.constant 0 : i32
    %c0_i32_0 = arith.constant 0 : i32
    %c0_i32_1 = arith.constant 0 : i32
    return %c0_i32, %c0_i32_0 : i32, i32
  }
  func.func @transform_2(%arg0: i32) -> (i32, i32) {
    %c0_i32 = arith.constant 0 : i32
    %c0_i32_0 = arith.constant 0 : i32
    %c0_i32_1 = arith.constant 0 : i32
    return %c0_i32, %c0_i32_0 : i32, i32
  }
  func.func @transform_3(%arg0: i32) -> (i32, i32) {
    %c0_i32 = arith.constant 0 : i32
    %c0_i32_0 = arith.constant 0 : i32
    %c0_i32_1 = arith.constant 0 : i32
    return %c0_i32, %c0_i32_0 : i32, i32
  }
}

module attributes {stable_mosaic.version = 11 : i64} {
  func.func @_gemm_nm_kernel(%arg0: i32, %arg1: memref<1x256xbf16, #tpu.memory_space<vmem>>, %arg2: memref<256x1568xbf16, #tpu.memory_space<vmem>>, %arg3: memref<1x1xf32, #tpu.memory_space<vmem>>, %arg4: memref<1x1568xf32, #tpu.memory_space<vmem>>) attributes {dimension_semantics = [#tpu.dimension_semantics<arbitrary>], iteration_bounds = array<i64: 1>, scalar_prefetch = 0 : i64, scratch_operands = 0 : i64, tpu.core_type = #tpu.core_type<tc>, window_params = [{pipeline_mode = #tpu.pipeline_mode<synchronous>, transform_indices = @transform_0, window_bounds = array<i64: 1, 256>}, {pipeline_mode = #tpu.pipeline_mode<synchronous>, transform_indices = @transform_1, window_bounds = array<i64: 256, 1568>}, {pipeline_mode = #tpu.pipeline_mode<synchronous>, transform_indices = @transform_2, window_bounds = array<i64: 1, 1>}, {pipeline_mode = #tpu.pipeline_mode<synchronous>, transform_indices = @transform_3, window_bounds = array<i64: 1, 1568>}]} {
    %c0 = arith.constant 0 : index
    %c0_0 = arith.constant 0 : index
    %0 = vector.load %arg1[%c0, %c0_0] : memref<1x256xbf16, #tpu.memory_space<vmem>>, vector<1x256xbf16>
    %c0_1 = arith.constant 0 : index
    %c0_2 = arith.constant 0 : index
    %1 = vector.load %arg2[%c0_1, %c0_2] : memref<256x1568xbf16, #tpu.memory_space<vmem>>, vector<256x1568xbf16>
    %cst = arith.constant dense<0.000000e+00> : vector<1x1568xf32>
    %2 = tpu.matmul %0, %1, %cst {dimension_numbers = #tpu.dot_dimension_numbers<[1], [0], [0], [1], [0, 0, 1, 1], [], []>} : vector<1x256xbf16>, vector<256x1568xbf16>, vector<1x1568xf32> -> vector<1x1568xf32>
    %c0_3 = arith.constant 0 : index
    %c0_4 = arith.constant 0 : index
    %3 = vector.load %arg3[%c0_3, %c0_4] : memref<1x1xf32, #tpu.memory_space<vmem>>, vector<1x1xf32>
    %4 = vector.broadcast %3 : vector<1x1xf32> to vector<1x1568xf32>
    %5 = arith.addf %2, %4 : vector<1x1568xf32>
    %c0_5 = arith.constant 0 : index
    %c0_6 = arith.constant 0 : index
    %6 = vector.load %arg4[%c0_5, %c0_6] : memref<1x1568xf32, #tpu.memory_space<vmem>>, vector<1x1568xf32>
    tpu.vector_store %arg4[%c0_5, %c0_6], %5 {strides = array<i32>} : memref<1x1568xf32, #tpu.memory_space<vmem>>, vector<1x1568xf32>,
    return
  }
  func.func @transform_0(%arg0: i32) -> (i32, i32) {
    %c0_i32 = arith.constant 0 : i32
    %c0_i32_0 = arith.constant 0 : i32
    %c0_i32_1 = arith.constant 0 : i32
    return %c0_i32, %c0_i32_0 : i32, i32
  }
  func.func @transform_1(%arg0: i32) -> (i32, i32) {
    %c0_i32 = arith.constant 0 : i32
    %c0_i32_0 = arith.constant 0 : i32
    %c0_i32_1 = arith.constant 0 : i32
    return %c0_i32, %c0_i32_0 : i32, i32
  }
  func.func @transform_2(%arg0: i32) -> (i32, i32) {
    %c0_i32 = arith.constant 0 : i32
    %c0_i32_0 = arith.constant 0 : i32
    %c0_i32_1 = arith.constant 0 : i32
    return %c0_i32, %c0_i32_0 : i32, i32
  }
  func.func @transform_3(%arg0: i32) -> (i32, i32) {
    %c0_i32 = arith.constant 0 : i32
    %c0_i32_0 = arith.constant 0 : i32
    %c0_i32_1 = arith.constant 0 : i32
    return %c0_i32, %c0_i32_0 : i32, i32
  }
}

</mosaic_0001>

<llo_original>
// kernel: vae_forward.5
$region0: #{vae_forward.5}
  #allocation0 [shape = 'u32[]', space=smem, size = 0x4, offset = 0x4, fixed_abs, tag = 'smem constant byte address 0x4 - core index']
  #allocation1 [shape = 'u32[144,128]{1,0:T(1,128)}', space=vmem, size = 0x12000, scoped, tag = 'internal scratch']
  %s0 = inlined_call_operand.vmem [shape: bf16[16,16], index: 0, kind: input, shape index: {}]
  %s1 = inlined_call_operand.vmem [shape: bf16[16,392], index: 1, kind: input, shape index: {}]
  %s2 = inlined_call_operand.vmem [shape: f32[16,1], index: 2, kind: input, shape index: {}]
  %s3 = inlined_call_operand.vmem [shape: bf16[16,392], index: 3, kind: output, shape index: {}]
  %s4 = sld [smem:[#allocation0]]
  $region22: #{vae_forward.5} parent=0
    _
  %s6 = ssub.s32 1, %s4
  %s7 = scalar_select 0, %s6, %s4
  // Predicated region
  $region2: #{vae_forward.5} parent=0 // pred_check
    _
  $region3: #{vae_forward.5} parent=0 // pred_check_branch
    %9 = sbr.rel (0) target = $region5
  $region4: #{vae_forward.5} parent=0 // pred_region
    _
  $region5: #{vae_forward.5} parent=0 // pred_fallthru
    _
  // Predicated region
  $region6: #{vae_forward.5} parent=0 // pred_check
    _
  $region7: #{vae_forward.5} parent=0 // pred_check_branch
    %11 = sbr.rel (0) target = $region9
  $region8: #{vae_forward.5} parent=0 // pred_region
    _
  $region9: #{vae_forward.5} parent=0 // pred_fallthru
    _
  // Predicated region
  $region10: #{vae_forward.5} parent=0 // pred_check
    _
  $region11: #{vae_forward.5} parent=0 // pred_check_branch
    %13 = sbr.rel (0) target = $region13
  $region12: #{vae_forward.5} parent=0 // pred_region
    _
  $region13: #{vae_forward.5} parent=0 // pred_fallthru
    _
  %v15 = vld [vmem:[%s0] sm:$0xf]
  %v16 = vld [vmem:[%s0 + $0x4] sm:$0xf]
  %v17 = vld [vmem:[%s1] sm:$0xff]
  %v18 = vld [vmem:[%s1 + $0x8] sm:$0xff]
  %v19 = vld [vmem:[%s1 + $0x10] sm:$0xff]
  %v20 = vld [vmem:[%s1 + $0x18] sm:$0xff]
  %v21 = vld [vmem:[%s2] sm:$0xff]
  %v22 = vld [vmem:[%s2 + $0x8] sm:$0xff]
  %24 = vset.pattern.permute.xlu0 0
  %25 = vperm.xlu0 %24, %v21
  %v26 = vpop.permute.xlu0 %25
  %29 = vset.pattern.permute.xlu0 0
  %30 = vperm.xlu0 %29, %v22
  %v31 = vpop.permute.xlu0 %30
  %v35 = vunpack.c.l.b16 %v15
  %v36 = vunpack.c.l.b16 %v16
  %v37 = vpack.c.b16 %v36, %v35
  %v42 = vunpack.c.l.b16 %v17
  %v43 = vunpack.c.h.b16 %v17
  %v44 = vunpack.c.l.b16 %v18
  %v45 = vunpack.c.h.b16 %v18
  %v46 = vunpack.c.l.b16 %v19
  %v47 = vunpack.c.h.b16 %v19
  %v48 = vunpack.c.l.b16 %v20
  %v49 = vunpack.c.h.b16 %v20
  %v50 = vpack.c.b16 %v46, %v42
  %v51 = vpack.c.b16 %v47, %v43
  %v52 = vpack.c.b16 %v48, %v44
  %v53 = vpack.c.b16 %v49, %v45
  %vm58 = vcmask 130048
  %v60 = vsel %vm58, %v37, 0
  %62 = vmatprep.subr.bf16.mxu0 0
  %63 = vmatpush1.bf16.msra.mxu0 0
  %64 = vmatprep.subr.bf16.mxu0 0
  %65 = vmatpush1.bf16.msra.mxu0 0
  %66 = vmatprep.subr.bf16.mxu0 0
  %67 = vmatpush1.bf16.msra.mxu0 0
  %68 = vmatprep.subr.bf16.mxu0 0
  %69 = vmatpush1.bf16.msra.mxu0 0
  %70 = vmatprep.subr.bf16.mxu0 0
  %71 = vmatpush1.bf16.msra.mxu0 0
  %72 = vmatprep.subr.bf16.mxu0 0
  %73 = vmatpush1.bf16.msra.mxu0 0
  %74 = vmatprep.subr.bf16.mxu0 0
  %75 = vmatpush1.bf16.msra.mxu0 0
  %76 = vmatprep.subr.bf16.mxu0 %v51
  %77 = vmatpush1.bf16.msra.mxu0 %v50
  %78 = vmatprep.subr.bf16.mxu0 0
  %79 = vmatpush2.bf16.msra.mxu0 0
  %80 = vmatprep.subr.bf16.mxu0 0
  %81 = vmatpush2.bf16.msra.mxu0 0
  %82 = vmatprep.subr.bf16.mxu0 0
  %83 = vmatpush2.bf16.msra.mxu0 0
  %84 = vmatprep.subr.bf16.mxu0 0
  %85 = vmatpush2.bf16.msra.mxu0 0
  %86 = vmatprep.subr.bf16.mxu0 0
  %87 = vmatpush2.bf16.msra.mxu0 0
  %88 = vmatprep.subr.bf16.mxu0 0
  %89 = vmatpush2.bf16.msra.mxu0 0
  %90 = vmatprep.subr.bf16.mxu0 0
  %91 = vmatpush2.bf16.msra.mxu0 0
  %92 = vmatprep.subr.bf16.mxu0 0
  %93 = vmatpush2.bf16.msra.mxu0 0
  %94 = vmatprep.mubr.bf16.mxu0 0
  %95 = vmatmul.mubr.bf16.gmra.mxu0 %v60
  %v96 = vpop.f32.mrf.mxu0
  %v97 = vadd.f32 %v26, %v96
  %v98 = vpop.f32.mrf.mxu0
  %v99 = vadd.f32 %v26, %v98
  %v100 = vpop.f32.mrf.mxu0
  %v101 = vadd.f32 %v31, %v100
  %v102 = vpop.f32.mrf.mxu0
  %v103 = vadd.f32 %v31, %v102
  %104 = vdwg.mxu0
  %105 = vmatprep.subr.bf16.mxu0 0
  %106 = vmatpush1.bf16.msra.mxu0 0
  %107 = vmatprep.subr.bf16.mxu0 0
  %108 = vmatpush1.bf16.msra.mxu0 0
  %109 = vmatprep.subr.bf16.mxu0 0
  %110 = vmatpush1.bf16.msra.mxu0 0
  %111 = vmatprep.subr.bf16.mxu0 0
  %112 = vmatpush1.bf16.msra.mxu0 0
  %113 = vmatprep.subr.bf16.mxu0 0
  %114 = vmatpush1.bf16.msra.mxu0 0
  %115 = vmatprep.subr.bf16.mxu0 0
  %116 = vmatpush1.bf16.msra.mxu0 0
  %117 = vmatprep.subr.bf16.mxu0 0
  %118 = vmatpush1.bf16.msra.mxu0 0
  %119 = vmatprep.subr.bf16.mxu0 %v53
  %120 = vmatpush1.bf16.msra.mxu0 %v52
  %121 = vmatprep.subr.bf16.mxu0 0
  %122 = vmatpush2.bf16.msra.mxu0 0
  %123 = vmatprep.subr.bf16.mxu0 0
  %124 = vmatpush2.bf16.msra.mxu0 0
  %125 = vmatprep.subr.bf16.mxu0 0
  %126 = vmatpush2.bf16.msra.mxu0 0
  %127 = vmatprep.subr.bf16.mxu0 0
  %128 = vmatpush2.bf16.msra.mxu0 0
  %129 = vmatprep.subr.bf16.mxu0 0
  %130 = vmatpush2.bf16.msra.mxu0 0
  %131 = vmatprep.subr.bf16.mxu0 0
  %132 = vmatpush2.bf16.msra.mxu0 0
  %133 = vmatprep.subr.bf16.mxu0 0
  %134 = vmatpush2.bf16.msra.mxu0 0
  %135 = vmatprep.subr.bf16.mxu0 0
  %136 = vmatpush2.bf16.msra.mxu0 0
  %137 = vmatprep.mubr.bf16.mxu0 0
  %138 = vmatmul.mubr.bf16.gmra.mxu0 %v60
  %v139 = vpop.f32.mrf.mxu0
  %v140 = vadd.f32 %v26, %v139
  %v141 = vpop.f32.mrf.mxu0
  %v142 = vadd.f32 %v26, %v141
  %v143 = vpop.f32.mrf.mxu0
  %v144 = vadd.f32 %v31, %v143
  %v145 = vpop.f32.mrf.mxu0
  %v146 = vadd.f32 %v31, %v145
  %147 = vdwg.mxu0
  %v148 = vmax.f32 %v97, 0.0
  %v149 = vmax.f32 %v99, 0.0
  %v150 = vmax.f32 %v140, 0.0
  %v151 = vmax.f32 %v142, 0.0
  %v152 = vmax.f32 %v101, 0.0
  %v153 = vmax.f32 %v103, 0.0
  %v154 = vmax.f32 %v144, 0.0
  %v155 = vmax.f32 %v146, 0.0
  %v156 = vpack.c.bf16 %v152, %v148
  %v157 = vpack.c.bf16 %v153, %v149
  %v158 = vpack.c.bf16 %v154, %v150
  %v159 = vpack.c.bf16 %v155, %v151
  %v164 = vunpack.c.l.b16 %v156
  %v165 = vunpack.c.l.b16 %v157
  %v166 = vunpack.c.l.b16 %v158
  %v167 = vunpack.c.l.b16 %v159
  %v168 = vunpack.c.h.b16 %v156
  %v169 = vunpack.c.h.b16 %v157
  %v170 = vunpack.c.h.b16 %v158
  %v171 = vunpack.c.h.b16 %v159
  %v172 = vpack.c.b16 %v165, %v164
  %v173 = vpack.c.b16 %v167, %v166
  %v174 = vpack.c.b16 %v169, %v168
  %v175 = vpack.c.b16 %v171, %v170
  %180 = vst [vmem:[%s3] sm:$0xff] %v172
  %vm181 = vcmask 1043456
  %vm182 = vcmask 64516
  %vm183 = vmor %vm182, %vm181
  %184 = vst.msk [vmem:[%s3 + $0x8] sm:$0xff] %vm183, %v173
  %185 = vst [vmem:[%s3 + $0x10] sm:$0xff] %v174
  %186 = vst.msk [vmem:[%s3 + $0x18] sm:$0xff] %vm183, %v175
  // Predicated region
  $region14: #{vae_forward.5} parent=0 // pred_check
    _
  $region15: #{vae_forward.5} parent=0 // pred_check_branch
    %188 = sbr.rel (0) target = $region17
  $region16: #{vae_forward.5} parent=0 // pred_region
    _
  $region17: #{vae_forward.5} parent=0 // pred_fallthru
    _
  // Predicated region
  $region18: #{vae_forward.5} parent=0 // pred_check
    _
  $region19: #{vae_forward.5} parent=0 // pred_check_branch
    %190 = sbr.rel (0) target = $region21
  $region20: #{vae_forward.5} parent=0 // pred_region
    _
  $region21: #{vae_forward.5} parent=0 // pred_fallthru
    _

// kernel: vae_forward.6
$region0: #{vae_forward.6}
  #allocation0 [shape = 'u32[]', space=smem, size = 0x4, offset = 0x4, fixed_abs, tag = 'smem constant byte address 0x4 - core index']
  #allocation1 [shape = 'u32[144,128]{1,0:T(1,128)}', space=vmem, size = 0x12000, scoped, tag = 'internal scratch']
  %s0 = inlined_call_operand.vmem [shape: bf16[32,256], index: 0, kind: input, shape index: {}]
  %s1 = inlined_call_operand.vmem [shape: bf16[256,98], index: 1, kind: input, shape index: {}]
  %s2 = inlined_call_operand.vmem [shape: f32[32,1], index: 2, kind: input, shape index: {}]
  %s3 = inlined_call_operand.vmem [shape: bf16[32,98], index: 3, kind: output, shape index: {}]
  %s4 = sld [smem:[#allocation0]]
  $region22: #{vae_forward.6} parent=0
    _
  %s6 = ssub.s32 1, %s4
  %s7 = scalar_select 0, %s6, %s4
  // Predicated region
  $region2: #{vae_forward.6} parent=0 // pred_check
    _
  $region3: #{vae_forward.6} parent=0 // pred_check_branch
    %9 = sbr.rel (0) target = $region5
  $region4: #{vae_forward.6} parent=0 // pred_region
    _
  $region5: #{vae_forward.6} parent=0 // pred_fallthru
    _
  // Predicated region
  $region6: #{vae_forward.6} parent=0 // pred_check
    _
  $region7: #{vae_forward.6} parent=0 // pred_check_branch
    %11 = sbr.rel (0) target = $region9
  $region8: #{vae_forward.6} parent=0 // pred_region
    _
  $region9: #{vae_forward.6} parent=0 // pred_fallthru
    _
  // Predicated region
  $region10: #{vae_forward.6} parent=0 // pred_check
    _
  $region11: #{vae_forward.6} parent=0 // pred_check_branch
    %13 = sbr.rel (0) target = $region13
  $region12: #{vae_forward.6} parent=0 // pred_region
    _
  $region13: #{vae_forward.6} parent=0 // pred_fallthru
    _
  %v15 = vld [vmem:[%s0] sm:$0xff]
  %v16 = vld [vmem:[%s0 + $0x8] sm:$0xff]
  %v17 = vld [vmem:[%s0 + $0x10] sm:$0xff]
  %v18 = vld [vmem:[%s0 + $0x18] sm:$0xff]
  %v19 = vld [vmem:[%s1] sm:$0xf]
  %v20 = vld [vmem:[%s1 + $0x4] sm:$0xf]
  %v21 = vld [vmem:[%s1 + $0x8] sm:$0xf]
  %v22 = vld [vmem:[%s1 + $0xc] sm:$0xf]
  %v23 = vld [vmem:[%s1 + $0x10] sm:$0xf]
  %v24 = vld [vmem:[%s1 + $0x14] sm:$0xf]
  %v25 = vld [vmem:[%s1 + $0x18] sm:$0xf]
  %v26 = vld [vmem:[%s1 + $0x1c] sm:$0xf]
  %v27 = vld [vmem:[%s1 + $0x20] sm:$0xf]
  %v28 = vld [vmem:[%s1 + $0x24] sm:$0xf]
  %v29 = vld [vmem:[%s1 + $0x28] sm:$0xf]
  %v30 = vld [vmem:[%s1 + $0x2c] sm:$0xf]
  %v31 = vld [vmem:[%s1 + $0x30] sm:$0xf]
  %v32 = vld [vmem:[%s1 + $0x34] sm:$0xf]
  %v33 = vld [vmem:[%s1 + $0x38] sm:$0xf]
  %v34 = vld [vmem:[%s1 + $0x3c] sm:$0xf]
  %v35 = vld [vmem:[%s1 + $0x40] sm:$0xf]
  %v36 = vld [vmem:[%s1 + $0x44] sm:$0xf]
  %v37 = vld [vmem:[%s1 + $0x48] sm:$0xf]
  %v38 = vld [vmem:[%s1 + $0x4c] sm:$0xf]
  %v39 = vld [vmem:[%s1 + $0x50] sm:$0xf]
  %v40 = vld [vmem:[%s1 + $0x54] sm:$0xf]
  %v41 = vld [vmem:[%s1 + $0x58] sm:$0xf]
  %v42 = vld [vmem:[%s1 + $0x5c] sm:$0xf]
  %v43 = vld [vmem:[%s1 + $0x60] sm:$0xf]
  %v44 = vld [vmem:[%s1 + $0x64] sm:$0xf]
  %v45 = vld [vmem:[%s1 + $0x68] sm:$0xf]
  %v46 = vld [vmem:[%s1 + $0x6c] sm:$0xf]
  %v47 = vld [vmem:[%s1 + $0x70] sm:$0xf]
  %v48 = vld [vmem:[%s1 + $0x74] sm:$0xf]
  %v49 = vld [vmem:[%s1 + $0x78] sm:$0xf]
  %v50 = vld [vmem:[%s1 + $0x7c] sm:$0xf]
  %v51 = vld [vmem:[%s2] sm:$0xff]
  %v52 = vld [vmem:[%s2 + $0x8] sm:$0xff]
  %v53 = vld [vmem:[%s2 + $0x10] sm:$0xff]
  %v54 = vld [vmem:[%s2 + $0x18] sm:$0xff]
  %56 = vset.pattern.permute.xlu0 0
  %57 = vperm.xlu0 %56, %v51
  %v58 = vpop.permute.xlu0 %57
  %61 = vset.pattern.permute.xlu0 0
  %62 = vperm.xlu0 %61, %v52
  %v63 = vpop.permute.xlu0 %62
  %66 = vset.pattern.permute.xlu0 0
  %67 = vperm.xlu0 %66, %v53
  %v68 = vpop.permute.xlu0 %67
  %71 = vset.pattern.permute.xlu0 0
  %72 = vperm.xlu0 %71, %v54
  %v73 = vpop.permute.xlu0 %72
  %v79 = vunpack.c.l.b16 %v15
  %v80 = vunpack.c.h.b16 %v15
  %v81 = vunpack.c.l.b16 %v16
  %v82 = vunpack.c.h.b16 %v16
  %v83 = vunpack.c.l.b16 %v17
  %v84 = vunpack.c.h.b16 %v17
  %v85 = vunpack.c.l.b16 %v18
  %v86 = vunpack.c.h.b16 %v18
  %v87 = vpack.c.b16 %v81, %v79
  %v88 = vpack.c.b16 %v82, %v80
  %v89 = vpack.c.b16 %v85, %v83
  %v90 = vpack.c.b16 %v86, %v84
  %v127 = vunpack.c.l.b16 %v19
  %v128 = vunpack.c.l.b16 %v20
  %v129 = vunpack.c.l.b16 %v21
  %v130 = vunpack.c.l.b16 %v22
  %v131 = vunpack.c.l.b16 %v23
  %v132 = vunpack.c.l.b16 %v24
  %v133 = vunpack.c.l.b16 %v25
  %v134 = vunpack.c.l.b16 %v26
  %v135 = vunpack.c.l.b16 %v27
  %v136 = vunpack.c.l.b16 %v28
  %v137 = vunpack.c.l.b16 %v29
  %v138 = vunpack.c.l.b16 %v30
  %v139 = vunpack.c.l.b16 %v31
  %v140 = vunpack.c.l.b16 %v32
  %v141 = vunpack.c.l.b16 %v33
  %v142 = vunpack.c.l.b16 %v34
  %v143 = vunpack.c.l.b16 %v35
  %v144 = vunpack.c.l.b16 %v36
  %v145 = vunpack.c.l.b16 %v37
  %v146 = vunpack.c.l.b16 %v38
  %v147 = vunpack.c.l.b16 %v39
  %v148 = vunpack.c.l.b16 %v40
  %v149 = vunpack.c.l.b16 %v41
  %v150 = vunpack.c.l.b16 %v42
  %v151 = vunpack.c.l.b16 %v43
  %v152 = vunpack.c.l.b16 %v44
  %v153 = vunpack.c.l.b16 %v45
  %v154 = vunpack.c.l.b16 %v46
  %v155 = vunpack.c.l.b16 %v47
  %v156 = vunpack.c.l.b16 %v48
  %v157 = vunpack.c.l.b16 %v49
  %v158 = vunpack.c.l.b16 %v50
  %v159 = vpack.c.b16 %v128, %v127
  %v160 = vpack.c.b16 %v130, %v129
  %v161 = vpack.c.b16 %v132, %v131
  %v162 = vpack.c.b16 %v134, %v133
  %v163 = vpack.c.b16 %v136, %v135
  %v164 = vpack.c.b16 %v138, %v137
  %v165 = vpack.c.b16 %v140, %v139
  %v166 = vpack.c.b16 %v142, %v141
  %v167 = vpack.c.b16 %v144, %v143
  %v168 = vpack.c.b16 %v146, %v145
  %v169 = vpack.c.b16 %v148, %v147
  %v170 = vpack.c.b16 %v150, %v149
  %v171 = vpack.c.b16 %v152, %v151
  %v172 = vpack.c.b16 %v154, %v153
  %v173 = vpack.c.b16 %v156, %v155
  %v174 = vpack.c.b16 %v158, %v157
  %191 = vmatprep.subr.bf16.mxu0 0
  %192 = vmatpush1.bf16.msra.mxu0 %v166
  %193 = vmatprep.subr.bf16.mxu0 0
  %194 = vmatpush1.bf16.msra.mxu0 %v165
  %195 = vmatprep.subr.bf16.mxu0 0
  %196 = vmatpush1.bf16.msra.mxu0 %v164
  %197 = vmatprep.subr.bf16.mxu0 0
  %198 = vmatpush1.bf16.msra.mxu0 %v163
  %199 = vmatprep.subr.bf16.mxu0 0
  %200 = vmatpush1.bf16.msra.mxu0 %v162
  %201 = vmatprep.subr.bf16.mxu0 0
  %202 = vmatpush1.bf16.msra.mxu0 %v161
  %203 = vmatprep.subr.bf16.mxu0 0
  %204 = vmatpush1.bf16.msra.mxu0 %v160
  %205 = vmatprep.subr.bf16.mxu0 0
  %206 = vmatpush1.bf16.msra.mxu0 %v159
  %207 = vmatprep.subr.bf16.mxu0 0
  %208 = vmatpush2.bf16.msra.mxu0 %v174
  %209 = vmatprep.subr.bf16.mxu0 0
  %210 = vmatpush2.bf16.msra.mxu0 %v173
  %211 = vmatprep.subr.bf16.mxu0 0
  %212 = vmatpush2.bf16.msra.mxu0 %v172
  %213 = vmatprep.subr.bf16.mxu0 0
  %214 = vmatpush2.bf16.msra.mxu0 %v171
  %215 = vmatprep.subr.bf16.mxu0 0
  %216 = vmatpush2.bf16.msra.mxu0 %v170
  %217 = vmatprep.subr.bf16.mxu0 0
  %218 = vmatpush2.bf16.msra.mxu0 %v169
  %219 = vmatprep.subr.bf16.mxu0 0
  %220 = vmatpush2.bf16.msra.mxu0 %v168
  %221 = vmatprep.subr.bf16.mxu0 0
  %222 = vmatpush2.bf16.msra.mxu0 %v167
  %223 = vmatprep.mubr.bf16.mxu0 %v88
  %224 = vmatmul.mubr.bf16.gmra.mxu0 %v87
  %v225 = vpop.f32.mrf.mxu0
  %v226 = vadd.f32 %v58, %v225
  %v227 = vpop.f32.mrf.mxu0
  %v228 = vpop.f32.mrf.mxu0
  %v229 = vadd.f32 %v63, %v228
  %v230 = vpop.f32.mrf.mxu0
  %231 = vmatprep.mubr.bf16.mxu0 %v90
  %232 = vmatmul.mubr.bf16.gmra.mxu0 %v89
  %v233 = vpop.f32.mrf.mxu0
  %v234 = vadd.f32 %v68, %v233
  %v235 = vpop.f32.mrf.mxu0
  %v236 = vpop.f32.mrf.mxu0
  %v237 = vadd.f32 %v73, %v236
  %v238 = vpop.f32.mrf.mxu0
  %239 = vdwg.mxu0
  %v240 = vmax.f32 %v226, 0.0
  %v241 = vmax.f32 %v229, 0.0
  %v242 = vmax.f32 %v234, 0.0
  %v243 = vmax.f32 %v237, 0.0
  %v244 = vpack.c.bf16 %v241, %v240
  %v245 = vpack.c.bf16 %v243, %v242
  %v248 = vunpack.c.l.b16 %v244
  %v249 = vunpack.c.h.b16 %v244
  %v250 = vunpack.c.l.b16 %v245
  %v251 = vunpack.c.h.b16 %v245
  %v252 = vpack.c.b16 %v248, %v248
  %v253 = vpack.c.b16 %v249, %v249
  %v254 = vpack.c.b16 %v250, %v250
  %v255 = vpack.c.b16 %v251, %v251
  %vm260 = vcmask 797696
  %261 = vst.msk [vmem:[%s3] sm:$0xf] %vm260, %v252
  %262 = vst.msk [vmem:[%s3 + $0x4] sm:$0xf] %vm260, %v253
  %263 = vst.msk [vmem:[%s3 + $0x8] sm:$0xf] %vm260, %v254
  %264 = vst.msk [vmem:[%s3 + $0xc] sm:$0xf] %vm260, %v255
  // Predicated region
  $region14: #{vae_forward.6} parent=0 // pred_check
    _
  $region15: #{vae_forward.6} parent=0 // pred_check_branch
    %266 = sbr.rel (0) target = $region17
  $region16: #{vae_forward.6} parent=0 // pred_region
    _
  $region17: #{vae_forward.6} parent=0 // pred_fallthru
    _
  // Predicated region
  $region18: #{vae_forward.6} parent=0 // pred_check
    _
  $region19: #{vae_forward.6} parent=0 // pred_check_branch
    %268 = sbr.rel (0) target = $region21
  $region20: #{vae_forward.6} parent=0 // pred_region
    _
  $region21: #{vae_forward.6} parent=0 // pred_fallthru
    _

// kernel: vae_forward.7
$region0: #{vae_forward.7}
  #allocation0 [shape = 'u32[]', space=smem, size = 0x4, offset = 0x4, fixed_abs, tag = 'smem constant byte address 0x4 - core index']
  #allocation1 [shape = 'u32[144,128]{1,0:T(1,128)}', space=vmem, size = 0x12000, scoped, tag = 'internal scratch']
  %s0 = inlined_call_operand.vmem [shape: bf16[2,1568], index: 0, kind: input, shape index: {}]
  %s1 = inlined_call_operand.vmem [shape: f32[2,8], index: 1, kind: input, shape index: {}]
  %s2 = inlined_call_operand.vmem [shape: bf16[1568,128], index: 2, kind: input, shape index: {}]
  %s3 = inlined_call_operand.vmem [shape: f32[1,128], index: 3, kind: input, shape index: {}]
  %s4 = inlined_call_operand.vmem [shape: bf16[128,16], index: 4, kind: input, shape index: {}]
  %s5 = inlined_call_operand.vmem [shape: f32[1,16], index: 5, kind: input, shape index: {}]
  %s6 = inlined_call_operand.vmem [shape: bf16[8,128], index: 6, kind: input, shape index: {}]
  %s7 = inlined_call_operand.vmem [shape: f32[1,128], index: 7, kind: input, shape index: {}]
  %s8 = inlined_call_operand.vmem [shape: bf16[128,1568], index: 8, kind: input, shape index: {}]
  %s9 = inlined_call_operand.vmem [shape: f32[1,1568], index: 9, kind: input, shape index: {}]
  %s10 = inlined_call_operand.hbm [shape: f32[2,8], index: 10, kind: output, shape index: {0}]
  %s11 = inlined_call_operand.hbm [shape: f32[2,8], index: 11, kind: output, shape index: {1}]
  %s12 = inlined_call_operand.vmem [shape: bf16[2,1568], index: 12, kind: output, shape index: {2}]
  %13 = xla_tuple %s10, %s11, %s12
  %s14 = sld [smem:[#allocation0]]
  $region66: #{vae_forward.7} parent=0
    _
  %s16 = ssub.s32 1, %s14
  %s17 = scalar_select 0, %s16, %s14
  $region1: #{vae_forward.7} parent=0
    #allocation2 [shape = 'u8[1024]{0}', space=vmem, size = 0x400, scoped, tag = 'output window, operand 0, single buffered']
    #allocation3 [shape = 's32[1]{0}', space=sflag, size = 0x4, scoped, tag = 'scoped memory for vae_forward.7']
    #allocation4 [shape = 'u8[1024]{0}', space=vmem, size = 0x400, scoped, tag = 'output window, operand 1, single buffered']
    #allocation5 [shape = 's32[1]{0}', space=sflag, size = 0x4, scoped, tag = 'scoped memory for vae_forward.7']
    %18 = vsyncpa [#allocation3], 0
    %19 = vsyncpa [#allocation5], 0
    // Predicated region
    $region2: #{vae_forward.7} parent=1 // pred_check
      _
    $region3: #{vae_forward.7} parent=1 // pred_check_branch
      %21 = sbr.rel (0) target = $region5
    $region4: #{vae_forward.7} parent=1 // pred_region
      _
    $region5: #{vae_forward.7} parent=1 // pred_fallthru
      _
    // Predicated region
    $region6: #{vae_forward.7} parent=1 // pred_check
      _
    $region7: #{vae_forward.7} parent=1 // pred_check_branch
      %23 = sbr.rel (0) target = $region9
    $region8: #{vae_forward.7} parent=1 // pred_region
      _
    $region9: #{vae_forward.7} parent=1 // pred_fallthru
      _
    // Predicated region
    $region10: #{vae_forward.7} parent=1 // pred_check
      _
    $region11: #{vae_forward.7} parent=1 // pred_check_branch
      %25 = sbr.rel (0) target = $region13
    $region12: #{vae_forward.7} parent=1 // pred_region
      _
    $region13: #{vae_forward.7} parent=1 // pred_fallthru
      _
    // Predicated region
    $region14: #{vae_forward.7} parent=1 // pred_check
      _
    $region15: #{vae_forward.7} parent=1 // pred_check_branch
      %27 = sbr.rel (0) target = $region17
    $region16: #{vae_forward.7} parent=1 // pred_region
      _
    $region17: #{vae_forward.7} parent=1 // pred_fallthru
      _
    // Predicated region
    $region18: #{vae_forward.7} parent=1 // pred_check
      _
    $region19: #{vae_forward.7} parent=1 // pred_check_branch
      %29 = sbr.rel (0) target = $region21
    $region20: #{vae_forward.7} parent=1 // pred_region
      _
    $region21: #{vae_forward.7} parent=1 // pred_fallthru
      _
    // Predicated region
    $region22: #{vae_forward.7} parent=1 // pred_check
      _
    $region23: #{vae_forward.7} parent=1 // pred_check_branch
      %31 = sbr.rel (0) target = $region25
    $region24: #{vae_forward.7} parent=1 // pred_region
      _
    $region25: #{vae_forward.7} parent=1 // pred_fallthru
      _
    // Predicated region
    $region26: #{vae_forward.7} parent=1 // pred_check
      _
    $region27: #{vae_forward.7} parent=1 // pred_check_branch
      %33 = sbr.rel (0) target = $region29
    $region28: #{vae_forward.7} parent=1 // pred_region
      _
    $region29: #{vae_forward.7} parent=1 // pred_fallthru
      _
    // Predicated region
    $region30: #{vae_forward.7} parent=1 // pred_check
      _
    $region31: #{vae_forward.7} parent=1 // pred_check_branch
      %35 = sbr.rel (0) target = $region33
    $region32: #{vae_forward.7} parent=1 // pred_region
      _
    $region33: #{vae_forward.7} parent=1 // pred_fallthru
      _
    // Predicated region
    $region34: #{vae_forward.7} parent=1 // pred_check
      _
    $region35: #{vae_forward.7} parent=1 // pred_check_branch
      %37 = sbr.rel (0) target = $region37
    $region36: #{vae_forward.7} parent=1 // pred_region
      _
    $region37: #{vae_forward.7} parent=1 // pred_fallthru
      _
    // Predicated region
    $region38: #{vae_forward.7} parent=1 // pred_check
      _
    $region39: #{vae_forward.7} parent=1 // pred_check_branch
      %39 = sbr.rel (0) target = $region41
    $region40: #{vae_forward.7} parent=1 // pred_region
      _
    $region41: #{vae_forward.7} parent=1 // pred_fallthru
      _
    %v41 = vld [vmem:[%s0] sm:$0xff]
    %v42 = vld [vmem:[%s0 + $0x8] sm:$0x1f]
    %v43 = vld [vmem:[%s2] sm:$0xf]
    %v44 = vld [vmem:[%s2 + $0x4] sm:$0xf]
    %v45 = vld [vmem:[%s2 + $0x8] sm:$0xf]
    %v46 = vld [vmem:[%s2 + $0xc] sm:$0xf]
    %v47 = vld [vmem:[%s2 + $0x10] sm:$0xf]
    %v48 = vld [vmem:[%s2 + $0x14] sm:$0xf]
    %v49 = vld [vmem:[%s2 + $0x18] sm:$0xf]
    %v50 = vld [vmem:[%s2 + $0x1c] sm:$0xf]
    %v51 = vld [vmem:[%s2 + $0x20] sm:$0xf]
    %v52 = vld [vmem:[%s2 + $0x24] sm:$0xf]
    %v53 = vld [vmem:[%s2 + $0x28] sm:$0xf]
    %v54 = vld [vmem:[%s2 + $0x2c] sm:$0xf]
    %v55 = vld [vmem:[%s2 + $0x30] sm:$0xf]
    %v56 = vld [vmem:[%s2 + $0x34] sm:$0xf]
    %v57 = vld [vmem:[%s2 + $0x38] sm:$0xf]
    %v58 = vld [vmem:[%s2 + $0x3c] sm:$0xf]
    %v59 = vld [vmem:[%s2 + $0x40] sm:$0xf]
    %v60 = vld [vmem:[%s2 + $0x44] sm:$0xf]
    %v61 = vld [vmem:[%s2 + $0x48] sm:$0xf]
    %v62 = vld [vmem:[%s2 + $0x4c] sm:$0xf]
    %v63 = vld [vmem:[%s2 + $0x50] sm:$0xf]
    %v64 = vld [vmem:[%s2 + $0x54] sm:$0xf]
    %v65 = vld [vmem:[%s2 + $0x58] sm:$0xf]
    %v66 = vld [vmem:[%s2 + $0x5c] sm:$0xf]
    %v67 = vld [vmem:[%s2 + $0x60] sm:$0xf]
    %v68 = vld [vmem:[%s2 + $0x64] sm:$0xf]
    %v69 = vld [vmem:[%s2 + $0x68] sm:$0xf]
    %v70 = vld [vmem:[%s2 + $0x6c] sm:$0xf]
    %v71 = vld [vmem:[%s2 + $0x70] sm:$0xf]
    %v72 = vld [vmem:[%s2 + $0x74] sm:$0xf]
    %v73 = vld [vmem:[%s2 + $0x78] sm:$0xf]
    %v74 = vld [vmem:[%s2 + $0x7c] sm:$0xf]
    %v75 = vld [vmem:[%s2 + $0x80] sm:$0xf]
    %v76 = vld [vmem:[%s2 + $0x84] sm:$0xf]
    %v77 = vld [vmem:[%s2 + $0x88] sm:$0xf]
    %v78 = vld [vmem:[%s2 + $0x8c] sm:$0xf]
    %v79 = vld [vmem:[%s2 + $0x90] sm:$0xf]
    %v80 = vld [vmem:[%s2 + $0x94] sm:$0xf]
    %v81 = vld [vmem:[%s2 + $0x98] sm:$0xf]
    %v82 = vld [vmem:[%s2 + $0x9c] sm:$0xf]
    %v83 = vld [vmem:[%s2 + $0xa0] sm:$0xf]
    %v84 = vld [vmem:[%s2 + $0xa4] sm:$0xf]
    %v85 = vld [vmem:[%s2 + $0xa8] sm:$0xf]
    %v86 = vld [vmem:[%s2 + $0xac] sm:$0xf]
    %v87 = vld [vmem:[%s2 + $0xb0] sm:$0xf]
    %v88 = vld [vmem:[%s2 + $0xb4] sm:$0xf]
    %v89 = vld [vmem:[%s2 + $0xb8] sm:$0xf]
    %v90 = vld [vmem:[%s2 + $0xbc] sm:$0xf]
    %v91 = vld [vmem:[%s2 + $0xc0] sm:$0xf]
    %v92 = vld [vmem:[%s2 + $0xc4] sm:$0xf]
    %v93 = vld [vmem:[%s2 + $0xc8] sm:$0xf]
    %v94 = vld [vmem:[%s2 + $0xcc] sm:$0xf]
    %v95 = vld [vmem:[%s2 + $0xd0] sm:$0xf]
    %v96 = vld [vmem:[%s2 + $0xd4] sm:$0xf]
    %v97 = vld [vmem:[%s2 + $0xd8] sm:$0xf]
    %v98 = vld [vmem:[%s2 + $0xdc] sm:$0xf]
    %v99 = vld [vmem:[%s2 + $0xe0] sm:$0xf]
    %v100 = vld [vmem:[%s2 + $0xe4] sm:$0xf]
    %v101 = vld [vmem:[%s2 + $0xe8] sm:$0xf]
    %v102 = vld [vmem:[%s2 + $0xec] sm:$0xf]
    %v103 = vld [vmem:[%s2 + $0xf0] sm:$0xf]
    %v104 = vld [vmem:[%s2 + $0xf4] sm:$0xf]
    %v105 = vld [vmem:[%s2 + $0xf8] sm:$0xf]
    %v106 = vld [vmem:[%s2 + $0xfc] sm:$0xf]
    %v107 = vld [vmem:[%s2 + $0x100] sm:$0xf]
    %v108 = vld [vmem:[%s2 + $0x104] sm:$0xf]
    %v109 = vld [vmem:[%s2 + $0x108] sm:$0xf]
    %v110 = vld [vmem:[%s2 + $0x10c] sm:$0xf]
    %v111 = vld [vmem:[%s2 + $0x110] sm:$0xf]
    %v112 = vld [vmem:[%s2 + $0x114] sm:$0xf]
    %v113 = vld [vmem:[%s2 + $0x118] sm:$0xf]
    %v114 = vld [vmem:[%s2 + $0x11c] sm:$0xf]
    %v115 = vld [vmem:[%s2 + $0x120] sm:$0xf]
    %v116 = vld [vmem:[%s2 + $0x124] sm:$0xf]
    %v117 = vld [vmem:[%s2 + $0x128] sm:$0xf]
    %v118 = vld [vmem:[%s2 + $0x12c] sm:$0xf]
    %v119 = vld [vmem:[%s2 + $0x130] sm:$0xf]
    %v120 = vld [vmem:[%s2 + $0x134] sm:$0xf]
    %v121 = vld [vmem:[%s2 + $0x138] sm:$0xf]
    %v122 = vld [vmem:[%s2 + $0x13c] sm:$0xf]
    %v123 = vld [vmem:[%s2 + $0x140] sm:$0xf]
    %v124 = vld [vmem:[%s2 + $0x144] sm:$0xf]
    %v125 = vld [vmem:[%s2 + $0x148] sm:$0xf]
    %v126 = vld [vmem:[%s2 + $0x14c] sm:$0xf]
    %v127 = vld [vmem:[%s2 + $0x150] sm:$0xf]
    %v128 = vld [vmem:[%s2 + $0x154] sm:$0xf]
    %v129 = vld [vmem:[%s2 + $0x158] sm:$0xf]
    %v130 = vld [vmem:[%s2 + $0x15c] sm:$0xf]
    %v131 = vld [vmem:[%s2 + $0x160] sm:$0xf]
    %v132 = vld [vmem:[%s2 + $0x164] sm:$0xf]
    %v133 = vld [vmem:[%s2 + $0x168] sm:$0xf]
    %v134 = vld [vmem:[%s2 + $0x16c] sm:$0xf]
    %v135 = vld [vmem:[%s2 + $0x170] sm:$0xf]
    %v136 = vld [vmem:[%s2 + $0x174] sm:$0xf]
    %v137 = vld [vmem:[%s2 + $0x178] sm:$0xf]
    %v138 = vld [vmem:[%s2 + $0x17c] sm:$0xf]
    %v139 = vld [vmem:[%s2 + $0x180] sm:$0xf]
    %v140 = vld [vmem:[%s2 + $0x184] sm:$0xf]
    %v141 = vld [vmem:[%s2 + $0x188] sm:$0xf]
    %v142 = vld [vmem:[%s2 + $0x18c] sm:$0xf]
    %v143 = vld [vmem:[%s2 + $0x190] sm:$0xf]
    %v144 = vld [vmem:[%s2 + $0x194] sm:$0xf]
    %v145 = vld [vmem:[%s2 + $0x198] sm:$0xf]
    %v146 = vld [vmem:[%s2 + $0x19c] sm:$0xf]
    %v147 = vld [vmem:[%s2 + $0x1a0] sm:$0xf]
    %v148 = vld [vmem:[%s2 + $0x1a4] sm:$0xf]
    %v149 = vld [vmem:[%s2 + $0x1a8] sm:$0xf]
    %v150 = vld [vmem:[%s2 + $0x1ac] sm:$0xf]
    %v151 = vld [vmem:[%s2 + $0x1b0] sm:$0xf]
    %v152 = vld [vmem:[%s2 + $0x1b4] sm:$0xf]
    %v153 = vld [vmem:[%s2 + $0x1b8] sm:$0xf]
    %v154 = vld [vmem:[%s2 + $0x1bc] sm:$0xf]
    %v155 = vld [vmem:[%s2 + $0x1c0] sm:$0xf]
    %v156 = vld [vmem:[%s2 + $0x1c4] sm:$0xf]
    %v157 = vld [vmem:[%s2 + $0x1c8] sm:$0xf]
    %v158 = vld [vmem:[%s2 + $0x1cc] sm:$0xf]
    %v159 = vld [vmem:[%s2 + $0x1d0] sm:$0xf]
    %v160 = vld [vmem:[%s2 + $0x1d4] sm:$0xf]
    %v161 = vld [vmem:[%s2 + $0x1d8] sm:$0xf]
    %v162 = vld [vmem:[%s2 + $0x1dc] sm:$0xf]
    %v163 = vld [vmem:[%s2 + $0x1e0] sm:$0xf]
    %v164 = vld [vmem:[%s2 + $0x1e4] sm:$0xf]
    %v165 = vld [vmem:[%s2 + $0x1e8] sm:$0xf]
    %v166 = vld [vmem:[%s2 + $0x1ec] sm:$0xf]
    %v167 = vld [vmem:[%s2 + $0x1f0] sm:$0xf]
    %v168 = vld [vmem:[%s2 + $0x1f4] sm:$0xf]
    %v169 = vld [vmem:[%s2 + $0x1f8] sm:$0xf]
    %v170 = vld [vmem:[%s2 + $0x1fc] sm:$0xf]
    %v171 = vld [vmem:[%s2 + $0x200] sm:$0xf]
    %v172 = vld [vmem:[%s2 + $0x204] sm:$0xf]
    %v173 = vld [vmem:[%s2 + $0x208] sm:$0xf]
    %v174 = vld [vmem:[%s2 + $0x20c] sm:$0xf]
    %v175 = vld [vmem:[%s2 + $0x210] sm:$0xf]
    %v176 = vld [vmem:[%s2 + $0x214] sm:$0xf]
    %v177 = vld [vmem:[%s2 + $0x218] sm:$0xf]
    %v178 = vld [vmem:[%s2 + $0x21c] sm:$0xf]
    %v179 = vld [vmem:[%s2 + $0x220] sm:$0xf]
    %v180 = vld [vmem:[%s2 + $0x224] sm:$0xf]
    %v181 = vld [vmem:[%s2 + $0x228] sm:$0xf]
    %v182 = vld [vmem:[%s2 + $0x22c] sm:$0xf]
    %v183 = vld [vmem:[%s2 + $0x230] sm:$0xf]
    %v184 = vld [vmem:[%s2 + $0x234] sm:$0xf]
    %v185 = vld [vmem:[%s2 + $0x238] sm:$0xf]
    %v186 = vld [vmem:[%s2 + $0x23c] sm:$0xf]
    %v187 = vld [vmem:[%s2 + $0x240] sm:$0xf]
    %v188 = vld [vmem:[%s2 + $0x244] sm:$0xf]
    %v189 = vld [vmem:[%s2 + $0x248] sm:$0xf]
    %v190 = vld [vmem:[%s2 + $0x24c] sm:$0xf]
    %v191 = vld [vmem:[%s2 + $0x250] sm:$0xf]
    %v192 = vld [vmem:[%s2 + $0x254] sm:$0xf]
    %v193 = vld [vmem:[%s2 + $0x258] sm:$0xf]
    %v194 = vld [vmem:[%s2 + $0x25c] sm:$0xf]
    %v195 = vld [vmem:[%s2 + $0x260] sm:$0xf]
    %v196 = vld [vmem:[%s2 + $0x264] sm:$0xf]
    %v197 = vld [vmem:[%s2 + $0x268] sm:$0xf]
    %v198 = vld [vmem:[%s2 + $0x26c] sm:$0xf]
    %v199 = vld [vmem:[%s2 + $0x270] sm:$0xf]
    %v200 = vld [vmem:[%s2 + $0x274] sm:$0xf]
    %v201 = vld [vmem:[%s2 + $0x278] sm:$0xf]
    %v202 = vld [vmem:[%s2 + $0x27c] sm:$0xf]
    %v203 = vld [vmem:[%s2 + $0x280] sm:$0xf]
    %v204 = vld [vmem:[%s2 + $0x284] sm:$0xf]
    %v205 = vld [vmem:[%s2 + $0x288] sm:$0xf]
    %v206 = vld [vmem:[%s2 + $0x28c] sm:$0xf]
    %v207 = vld [vmem:[%s2 + $0x290] sm:$0xf]
    %v208 = vld [vmem:[%s2 + $0x294] sm:$0xf]
    %v209 = vld [vmem:[%s2 + $0x298] sm:$0xf]
    %v210 = vld [vmem:[%s2 + $0x29c] sm:$0xf]
    %v211 = vld [vmem:[%s2 + $0x2a0] sm:$0xf]
    %v212 = vld [vmem:[%s2 + $0x2a4] sm:$0xf]
    %v213 = vld [vmem:[%s2 + $0x2a8] sm:$0xf]
    %v214 = vld [vmem:[%s2 + $0x2ac] sm:$0xf]
    %v215 = vld [vmem:[%s2 + $0x2b0] sm:$0xf]
    %v216 = vld [vmem:[%s2 + $0x2b4] sm:$0xf]
    %v217 = vld [vmem:[%s2 + $0x2b8] sm:$0xf]
    %v218 = vld [vmem:[%s2 + $0x2bc] sm:$0xf]
    %v219 = vld [vmem:[%s2 + $0x2c0] sm:$0xf]
    %v220 = vld [vmem:[%s2 + $0x2c4] sm:$0xf]
    %v221 = vld [vmem:[%s2 + $0x2c8] sm:$0xf]
    %v222 = vld [vmem:[%s2 + $0x2cc] sm:$0xf]
    %v223 = vld [vmem:[%s2 + $0x2d0] sm:$0xf]
    %v224 = vld [vmem:[%s2 + $0x2d4] sm:$0xf]
    %v225 = vld [vmem:[%s2 + $0x2d8] sm:$0xf]
    %v226 = vld [vmem:[%s2 + $0x2dc] sm:$0xf]
    %v227 = vld [vmem:[%s2 + $0x2e0] sm:$0xf]
    %v228 = vld [vmem:[%s2 + $0x2e4] sm:$0xf]
    %v229 = vld [vmem:[%s2 + $0x2e8] sm:$0xf]
    %v230 = vld [vmem:[%s2 + $0x2ec] sm:$0xf]
    %v231 = vld [vmem:[%s2 + $0x2f0] sm:$0xf]
    %v232 = vld [vmem:[%s2 + $0x2f4] sm:$0xf]
    %v233 = vld [vmem:[%s2 + $0x2f8] sm:$0xf]
    %v234 = vld [vmem:[%s2 + $0x2fc] sm:$0xf]
    %v235 = vld [vmem:[%s2 + $0x300] sm:$0xf]
    %v236 = vld [vmem:[%s2 + $0x304] sm:$0xf]
    %v237 = vld [vmem:[%s2 + $0x308] sm:$0xf]
    %v238 = vld [vmem:[%s2 + $0x30c] sm:$0xf]
    %v239 = vld [vmem:[%s3] sm:$0x1]
    %v241 = vlaneseq
    %v242 = vshrl.u32 %v241, 7
    %v243 = vsub.s32 0, %v242
    %v244 = vrot.slane %v239, %v243
    %v248 = vcombine.high %v41, %v41
    %v250 = vunpack.c.l.s4 1966171168
    %v251 = vunpack.c.0.s8 %v250
    %v252 = vlaneseq
    %v253 = vshrl.u32 %v252, 7
    %v254 = vsub.s32 %v251, %v253
    %v255 = vrot.slane %v41, %v254
    %v257 = vunpack.c.l.s4 1966171168
    %v258 = vunpack.c.0.s8 %v257
    %v259 = vlaneseq
    %v260 = vshrl.u32 %v259, 7
    %v261 = vsub.s32 %v258, %v260
    %v262 = vrot.slane %v248, %v261
    %v263 = vcombine.high %v255, %v255
    %v264 = vcombine.high %v262, %v262
    %v266 = vunpack.c.l.s4 1966171168
    %v267 = vunpack.c.0.s8 %v266
    %v268 = vlaneseq
    %v269 = vshrl.u32 %v268, 7
    %v270 = vsub.s32 %v267, %v269
    %v271 = vrot.slane %v255, %v270
    %v273 = vunpack.c.l.s4 1966171168
    %v274 = vunpack.c.0.s8 %v273
    %v275 = vlaneseq
    %v276 = vshrl.u32 %v275, 7
    %v277 = vsub.s32 %v274, %v276
    %v278 = vrot.slane %v262, %v277
    %v280 = vunpack.c.l.s4 1966171168
    %v281 = vunpack.c.0.s8 %v280
    %v282 = vlaneseq
    %v283 = vshrl.u32 %v282, 7
    %v284 = vsub.s32 %v281, %v283
    %v285 = vrot.slane %v263, %v284
    %v287 = vunpack.c.l.s4 1966171168
    %v288 = vunpack.c.0.s8 %v287
    %v289 = vlaneseq
    %v290 = vshrl.u32 %v289, 7
    %v291 = vsub.s32 %v288, %v290
    %v292 = vrot.slane %v264, %v291
    %v293 = vcombine.high %v271, %v271
    %v294 = vcombine.high %v278, %v278
    %v295 = vcombine.high %v285, %v285
    %v296 = vcombine.high %v292, %v292
    %v297 = vcombine.high %v42, %v42
    %v299 = vunpack.c.l.s4 1966171168
    %v300 = vunpack.c.0.s8 %v299
    %v301 = vlaneseq
    %v302 = vshrl.u32 %v301, 7
    %v303 = vsub.s32 %v300, %v302
    %v304 = vrot.slane %v42, %v303
    %v306 = vunpack.c.l.s4 1966171168
    %v307 = vunpack.c.0.s8 %v306
    %v308 = vlaneseq
    %v309 = vshrl.u32 %v308, 7
    %v310 = vsub.s32 %v307, %v309
    %v311 = vrot.slane %v297, %v310
    %v312 = vcombine.high %v304, %v304
    %v314 = vunpack.c.l.s4 1966171168
    %v315 = vunpack.c.0.s8 %v314
    %v316 = vlaneseq
    %v317 = vshrl.u32 %v316, 7
    %v318 = vsub.s32 %v315, %v317
    %v319 = vrot.slane %v304, %v318
    %v321 = vunpack.c.l.s4 1966171168
    %v322 = vunpack.c.0.s8 %v321
    %v323 = vlaneseq
    %v324 = vshrl.u32 %v323, 7
    %v325 = vsub.s32 %v322, %v324
    %v326 = vrot.slane %v311, %v325
    %v328 = vunpack.c.l.s4 1966171168
    %v329 = vunpack.c.0.s8 %v328
    %v330 = vlaneseq
    %v331 = vshrl.u32 %v330, 7
    %v332 = vsub.s32 %v329, %v331
    %v333 = vrot.slane %v312, %v332
    %v334 = vcombine.high %v319, %v319
    %v335 = vcombine.high %v333, %v333
    %v544 = vunpack.c.l.b16 %v43
    %v545 = vunpack.c.l.b16 %v44
    %v546 = vunpack.c.l.b16 %v45
    %v547 = vunpack.c.l.b16 %v46
    %v548 = vunpack.c.l.b16 %v47
    %v549 = vunpack.c.l.b16 %v48
    %v550 = vunpack.c.l.b16 %v49
    %v551 = vunpack.c.l.b16 %v50
    %v552 = vunpack.c.l.b16 %v51
    %v553 = vunpack.c.l.b16 %v52
    %v554 = vunpack.c.l.b16 %v53
    %v555 = vunpack.c.l.b16 %v54
    %v556 = vunpack.c.l.b16 %v55
    %v557 = vunpack.c.l.b16 %v56
    %v558 = vunpack.c.l.b16 %v57
    %v559 = vunpack.c.l.b16 %v58
    %v560 = vunpack.c.l.b16 %v59
    %v561 = vunpack.c.l.b16 %v60
    %v562 = vunpack.c.l.b16 %v61
    %v563 = vunpack.c.l.b16 %v62
    %v564 = vunpack.c.l.b16 %v63
    %v565 = vunpack.c.l.b16 %v64
    %v566 = vunpack.c.l.b16 %v65
    %v567 = vunpack.c.l.b16 %v66
    %v568 = vunpack.c.l.b16 %v67
    %v569 = vunpack.c.l.b16 %v68
    %v570 = vunpack.c.l.b16 %v69
    %v571 = vunpack.c.l.b16 %v70
    %v572 = vunpack.c.l.b16 %v71
    %v573 = vunpack.c.l.b16 %v72
    %v574 = vunpack.c.l.b16 %v73
    %v575 = vunpack.c.l.b16 %v74
    %v576 = vunpack.c.l.b16 %v75
    %v577 = vunpack.c.l.b16 %v76
    %v578 = vunpack.c.l.b16 %v77
    %v579 = vunpack.c.l.b16 %v78
    %v580 = vunpack.c.l.b16 %v79
    %v581 = vunpack.c.l.b16 %v80
    %v582 = vunpack.c.l.b16 %v81
    %v583 = vunpack.c.l.b16 %v82
    %v584 = vunpack.c.l.b16 %v83
    %v585 = vunpack.c.l.b16 %v84
    %v586 = vunpack.c.l.b16 %v85
    %v587 = vunpack.c.l.b16 %v86
    %v588 = vunpack.c.l.b16 %v87
    %v589 = vunpack.c.l.b16 %v88
    %v590 = vunpack.c.l.b16 %v89
    %v591 = vunpack.c.l.b16 %v90
    %v592 = vunpack.c.l.b16 %v91
    %v593 = vunpack.c.l.b16 %v92
    %v594 = vunpack.c.l.b16 %v93
    %v595 = vunpack.c.l.b16 %v94
    %v596 = vunpack.c.l.b16 %v95
    %v597 = vunpack.c.l.b16 %v96
    %v598 = vunpack.c.l.b16 %v97
    %v599 = vunpack.c.l.b16 %v98
    %v600 = vunpack.c.l.b16 %v99
    %v601 = vunpack.c.l.b16 %v100
    %v602 = vunpack.c.l.b16 %v101
    %v603 = vunpack.c.l.b16 %v102
    %v604 = vunpack.c.l.b16 %v103
    %v605 = vunpack.c.l.b16 %v104
    %v606 = vunpack.c.l.b16 %v105
    %v607 = vunpack.c.l.b16 %v106
    %v608 = vunpack.c.l.b16 %v107
    %v609 = vunpack.c.l.b16 %v108
    %v610 = vunpack.c.l.b16 %v109
    %v611 = vunpack.c.l.b16 %v110
    %v612 = vunpack.c.l.b16 %v111
    %v613 = vunpack.c.l.b16 %v112
    %v614 = vunpack.c.l.b16 %v113
    %v615 = vunpack.c.l.b16 %v114
    %v616 = vunpack.c.l.b16 %v115
    %v617 = vunpack.c.l.b16 %v116
    %v618 = vunpack.c.l.b16 %v117
    %v619 = vunpack.c.l.b16 %v118
    %v620 = vunpack.c.l.b16 %v119
    %v621 = vunpack.c.l.b16 %v120
    %v622 = vunpack.c.l.b16 %v121
    %v623 = vunpack.c.l.b16 %v122
    %v624 = vunpack.c.l.b16 %v123
    %v625 = vunpack.c.l.b16 %v124
    %v626 = vunpack.c.l.b16 %v125
    %v627 = vunpack.c.l.b16 %v126
    %v628 = vunpack.c.l.b16 %v127
    %v629 = vunpack.c.l.b16 %v128
    %v630 = vunpack.c.l.b16 %v129
    %v631 = vunpack.c.l.b16 %v130
    %v632 = vunpack.c.l.b16 %v131
    %v633 = vunpack.c.l.b16 %v132
    %v634 = vunpack.c.l.b16 %v133
    %v635 = vunpack.c.l.b16 %v134
    %v636 = vunpack.c.l.b16 %v135
    %v637 = vunpack.c.l.b16 %v136
    %v638 = vunpack.c.l.b16 %v137
    %v639 = vunpack.c.l.b16 %v138
    %v640 = vunpack.c.l.b16 %v139
    %v641 = vunpack.c.l.b16 %v140
    %v642 = vunpack.c.l.b16 %v141
    %v643 = vunpack.c.l.b16 %v142
    %v644 = vunpack.c.l.b16 %v143
    %v645 = vunpack.c.l.b16 %v144
    %v646 = vunpack.c.l.b16 %v145
    %v647 = vunpack.c.l.b16 %v146
    %v648 = vunpack.c.l.b16 %v147
    %v649 = vunpack.c.l.b16 %v148
    %v650 = vunpack.c.l.b16 %v149
    %v651 = vunpack.c.l.b16 %v150
    %v652 = vunpack.c.l.b16 %v151
    %v653 = vunpack.c.l.b16 %v152
    %v654 = vunpack.c.l.b16 %v153
    %v655 = vunpack.c.l.b16 %v154
    %v656 = vunpack.c.l.b16 %v155
    %v657 = vunpack.c.l.b16 %v156
    %v658 = vunpack.c.l.b16 %v157
    %v659 = vunpack.c.l.b16 %v158
    %v660 = vunpack.c.l.b16 %v159
    %v661 = vunpack.c.l.b16 %v160
    %v662 = vunpack.c.l.b16 %v161
    %v663 = vunpack.c.l.b16 %v162
    %v664 = vunpack.c.l.b16 %v163
    %v665 = vunpack.c.l.b16 %v164
    %v666 = vunpack.c.l.b16 %v165
    %v667 = vunpack.c.l.b16 %v166
    %v668 = vunpack.c.l.b16 %v167
    %v669 = vunpack.c.l.b16 %v168
    %v670 = vunpack.c.l.b16 %v169
    %v671 = vunpack.c.l.b16 %v170
    %v672 = vunpack.c.l.b16 %v171
    %v673 = vunpack.c.l.b16 %v172
    %v674 = vunpack.c.l.b16 %v173
    %v675 = vunpack.c.l.b16 %v174
    %v676 = vunpack.c.l.b16 %v175
    %v677 = vunpack.c.l.b16 %v176
    %v678 = vunpack.c.l.b16 %v177
    %v679 = vunpack.c.l.b16 %v178
    %v680 = vunpack.c.l.b16 %v179
    %v681 = vunpack.c.l.b16 %v180
    %v682 = vunpack.c.l.b16 %v181
    %v683 = vunpack.c.l.b16 %v182
    %v684 = vunpack.c.l.b16 %v183
    %v685 = vunpack.c.l.b16 %v184
    %v686 = vunpack.c.l.b16 %v185
    %v687 = vunpack.c.l.b16 %v186
    %v688 = vunpack.c.l.b16 %v187
    %v689 = vunpack.c.l.b16 %v188
    %v690 = vunpack.c.l.b16 %v189
    %v691 = vunpack.c.l.b16 %v190
    %v692 = vunpack.c.l.b16 %v191
    %v693 = vunpack.c.l.b16 %v192
    %v694 = vunpack.c.l.b16 %v193
    %v695 = vunpack.c.l.b16 %v194
    %v696 = vunpack.c.l.b16 %v195
    %v697 = vunpack.c.l.b16 %v196
    %v698 = vunpack.c.l.b16 %v197
    %v699 = vunpack.c.l.b16 %v198
    %v700 = vunpack.c.l.b16 %v199
    %v701 = vunpack.c.l.b16 %v200
    %v702 = vunpack.c.l.b16 %v201
    %v703 = vunpack.c.l.b16 %v202
    %v704 = vunpack.c.l.b16 %v203
    %v705 = vunpack.c.l.b16 %v204
    %v706 = vunpack.c.l.b16 %v205
    %v707 = vunpack.c.l.b16 %v206
    %v708 = vunpack.c.l.b16 %v207
    %v709 = vunpack.c.l.b16 %v208
    %v710 = vunpack.c.l.b16 %v209
    %v711 = vunpack.c.l.b16 %v210
    %v712 = vunpack.c.l.b16 %v211
    %v713 = vunpack.c.l.b16 %v212
    %v714 = vunpack.c.l.b16 %v213
    %v715 = vunpack.c.l.b16 %v214
    %v716 = vunpack.c.l.b16 %v215
    %v717 = vunpack.c.l.b16 %v216
    %v718 = vunpack.c.l.b16 %v217
    %v719 = vunpack.c.l.b16 %v218
    %v720 = vunpack.c.l.b16 %v219
    %v721 = vunpack.c.l.b16 %v220
    %v722 = vunpack.c.l.b16 %v221
    %v723 = vunpack.c.l.b16 %v222
    %v724 = vunpack.c.l.b16 %v223
    %v725 = vunpack.c.l.b16 %v224
    %v726 = vunpack.c.l.b16 %v225
    %v727 = vunpack.c.l.b16 %v226
    %v728 = vunpack.c.l.b16 %v227
    %v729 = vunpack.c.l.b16 %v228
    %v730 = vunpack.c.l.b16 %v229
    %v731 = vunpack.c.l.b16 %v230
    %v732 = vunpack.c.l.b16 %v231
    %v733 = vunpack.c.l.b16 %v232
    %v734 = vunpack.c.l.b16 %v233
    %v735 = vunpack.c.l.b16 %v234
    %v736 = vunpack.c.l.b16 %v235
    %v737 = vunpack.c.l.b16 %v236
    %v738 = vunpack.c.l.b16 %v237
    %v739 = vunpack.c.l.b16 %v238
    %v740 = vpack.c.b16 %v545, %v544
    %v741 = vpack.c.b16 %v547, %v546
    %v742 = vpack.c.b16 %v549, %v548
    %v743 = vpack.c.b16 %v551, %v550
    %v744 = vpack.c.b16 %v553, %v552
    %v745 = vpack.c.b16 %v555, %v554
    %v746 = vpack.c.b16 %v557, %v556
    %v747 = vpack.c.b16 %v559, %v558
    %v748 = vpack.c.b16 %v561, %v560
    %v749 = vpack.c.b16 %v563, %v562
    %v750 = vpack.c.b16 %v565, %v564
    %v751 = vpack.c.b16 %v567, %v566
    %v752 = vpack.c.b16 %v569, %v568
    %v753 = vpack.c.b16 %v571, %v570
    %v754 = vpack.c.b16 %v573, %v572
    %v755 = vpack.c.b16 %v575, %v574
    %v756 = vpack.c.b16 %v577, %v576
    %v757 = vpack.c.b16 %v579, %v578
    %v758 = vpack.c.b16 %v581, %v580
    %v759 = vpack.c.b16 %v583, %v582
    %v760 = vpack.c.b16 %v585, %v584
    %v761 = vpack.c.b16 %v587, %v586
    %v762 = vpack.c.b16 %v589, %v588
    %v763 = vpack.c.b16 %v591, %v590
    %v764 = vpack.c.b16 %v593, %v592
    %v765 = vpack.c.b16 %v595, %v594
    %v766 = vpack.c.b16 %v597, %v596
    %v767 = vpack.c.b16 %v599, %v598
    %v768 = vpack.c.b16 %v601, %v600
    %v769 = vpack.c.b16 %v603, %v602
    %v770 = vpack.c.b16 %v605, %v604
    %v771 = vpack.c.b16 %v607, %v606
    %v772 = vpack.c.b16 %v609, %v608
    %v773 = vpack.c.b16 %v611, %v610
    %v774 = vpack.c.b16 %v613, %v612
    %v775 = vpack.c.b16 %v615, %v614
    %v776 = vpack.c.b16 %v617, %v616
    %v777 = vpack.c.b16 %v619, %v618
    %v778 = vpack.c.b16 %v621, %v620
    %v779 = vpack.c.b16 %v623, %v622
    %v780 = vpack.c.b16 %v625, %v624
    %v781 = vpack.c.b16 %v627, %v626
    %v782 = vpack.c.b16 %v629, %v628
    %v783 = vpack.c.b16 %v631, %v630
    %v784 = vpack.c.b16 %v633, %v632
    %v785 = vpack.c.b16 %v635, %v634
    %v786 = vpack.c.b16 %v637, %v636
    %v787 = vpack.c.b16 %v639, %v638
    %v788 = vpack.c.b16 %v641, %v640
    %v789 = vpack.c.b16 %v643, %v642
    %v790 = vpack.c.b16 %v645, %v644
    %v791 = vpack.c.b16 %v647, %v646
    %v792 = vpack.c.b16 %v649, %v648
    %v793 = vpack.c.b16 %v651, %v650
    %v794 = vpack.c.b16 %v653, %v652
    %v795 = vpack.c.b16 %v655, %v654
    %v796 = vpack.c.b16 %v657, %v656
    %v797 = vpack.c.b16 %v659, %v658
    %v798 = vpack.c.b16 %v661, %v660
    %v799 = vpack.c.b16 %v663, %v662
    %v800 = vpack.c.b16 %v665, %v664
    %v801 = vpack.c.b16 %v667, %v666
    %v802 = vpack.c.b16 %v669, %v668
    %v803 = vpack.c.b16 %v671, %v670
    %v804 = vpack.c.b16 %v673, %v672
    %v805 = vpack.c.b16 %v675, %v674
    %v806 = vpack.c.b16 %v677, %v676
    %v807 = vpack.c.b16 %v679, %v678
    %v808 = vpack.c.b16 %v681, %v680
    %v809 = vpack.c.b16 %v683, %v682
    %v810 = vpack.c.b16 %v685, %v684
    %v811 = vpack.c.b16 %v687, %v686
    %v812 = vpack.c.b16 %v689, %v688
    %v813 = vpack.c.b16 %v691, %v690
    %v814 = vpack.c.b16 %v693, %v692
    %v815 = vpack.c.b16 %v695, %v694
    %v816 = vpack.c.b16 %v697, %v696
    %v817 = vpack.c.b16 %v699, %v698
    %v818 = vpack.c.b16 %v701, %v700
    %v819 = vpack.c.b16 %v703, %v702
    %v820 = vpack.c.b16 %v705, %v704
    %v821 = vpack.c.b16 %v707, %v706
    %v822 = vpack.c.b16 %v709, %v708
    %v823 = vpack.c.b16 %v711, %v710
    %v824 = vpack.c.b16 %v713, %v712
    %v825 = vpack.c.b16 %v715, %v714
    %v826 = vpack.c.b16 %v717, %v716
    %v827 = vpack.c.b16 %v719, %v718
    %v828 = vpack.c.b16 %v721, %v720
    %v829 = vpack.c.b16 %v723, %v722
    %v830 = vpack.c.b16 %v725, %v724
    %v831 = vpack.c.b16 %v727, %v726
    %v832 = vpack.c.b16 %v729, %v728
    %v833 = vpack.c.b16 %v731, %v730
    %v834 = vpack.c.b16 %v733, %v732
    %v835 = vpack.c.b16 %v735, %v734
    %v836 = vpack.c.b16 %v737, %v736
    %v837 = vpack.c.b16 %v739, %v738
    %vm936 = vcmask 261120
    %v938 = vsel %vm936, %v326, 0
    %940 = vmatprep.subr.bf16.mxu0 0
    %941 = vmatpush1.bf16.msra.mxu0 %v747
    %942 = vmatprep.subr.bf16.mxu0 0
    %943 = vmatpush1.bf16.msra.mxu0 %v746
    %944 = vmatprep.subr.bf16.mxu0 0
    %945 = vmatpush1.bf16.msra.mxu0 %v745
    %946 = vmatprep.subr.bf16.mxu0 0
    %947 = vmatpush1.bf16.msra.mxu0 %v744
    %948 = vmatprep.subr.bf16.mxu0 0
    %949 = vmatpush1.bf16.msra.mxu0 %v743
    %950 = vmatprep.subr.bf16.mxu0 0
    %951 = vmatpush1.bf16.msra.mxu0 %v742
    %952 = vmatprep.subr.bf16.mxu0 0
    %953 = vmatpush1.bf16.msra.mxu0 %v741
    %954 = vmatprep.subr.bf16.mxu0 0
    %955 = vmatpush1.bf16.msra.mxu0 %v740
    %956 = vmatprep.subr.bf16.mxu0 0
    %957 = vmatpush2.bf16.msra.mxu0 %v755
    %958 = vmatprep.subr.bf16.mxu0 0
    %959 = vmatpush2.bf16.msra.mxu0 %v754
    %960 = vmatprep.subr.bf16.mxu0 0
    %961 = vmatpush2.bf16.msra.mxu0 %v753
    %962 = vmatprep.subr.bf16.mxu0 0
    %963 = vmatpush2.bf16.msra.mxu0 %v752
    %964 = vmatprep.subr.bf16.mxu0 0
    %965 = vmatpush2.bf16.msra.mxu0 %v751
    %966 = vmatprep.subr.bf16.mxu0 0
    %967 = vmatpush2.bf16.msra.mxu0 %v750
    %968 = vmatprep.subr.bf16.mxu0 0
    %969 = vmatpush2.bf16.msra.mxu0 %v749
    %970 = vmatprep.subr.bf16.mxu0 0
    %971 = vmatpush2.bf16.msra.mxu0 %v748
    %972 = vmatprep.mubr.bf16.mxu0 %v285
    %973 = vmatmul.mubr.bf16.gmra.mxu0 %v271
    %v974 = vpop.f32.mrf.mxu0
    %v975 = vadd.f32 %v244, %v974
    %v976 = vpop.f32.mrf.mxu0
    %v977 = vpop.f32.mrf.mxu0
    %v978 = vpop.f32.mrf.mxu0
    %979 = vdwg.mxu0
    %980 = vmatprep.subr.bf16.mxu0 0
    %981 = vmatpush1.bf16.msra.mxu0 %v763
    %982 = vmatprep.subr.bf16.mxu0 0
    %983 = vmatpush1.bf16.msra.mxu0 %v762
    %984 = vmatprep.subr.bf16.mxu0 0
    %985 = vmatpush1.bf16.msra.mxu0 %v761
    %986 = vmatprep.subr.bf16.mxu0 0
    %987 = vmatpush1.bf16.msra.mxu0 %v760
    %988 = vmatprep.subr.bf16.mxu0 0
    %989 = vmatpush1.bf16.msra.mxu0 %v759
    %990 = vmatprep.subr.bf16.mxu0 0
    %991 = vmatpush1.bf16.msra.mxu0 %v758
    %992 = vmatprep.subr.bf16.mxu0 0
    %993 = vmatpush1.bf16.msra.mxu0 %v757
    %994 = vmatprep.subr.bf16.mxu0 0
    %995 = vmatpush1.bf16.msra.mxu0 %v756
    %996 = vmatprep.subr.bf16.mxu0 0
    %997 = vmatpush2.bf16.msra.mxu0 %v771
    %998 = vmatprep.subr.bf16.mxu0 0
    %999 = vmatpush2.bf16.msra.mxu0 %v770
    %1000 = vmatprep.subr.bf16.mxu0 0
    %1001 = vmatpush2.bf16.msra.mxu0 %v769
    %1002 = vmatprep.subr.bf16.mxu0 0
    %1003 = vmatpush2.bf16.msra.mxu0 %v768
    %1004 = vmatprep.subr.bf16.mxu0 0
    %1005 = vmatpush2.bf16.msra.mxu0 %v767
    %1006 = vmatprep.subr.bf16.mxu0 0
    %1007 = vmatpush2.bf16.msra.mxu0 %v766
    %1008 = vmatprep.subr.bf16.mxu0 0
    %1009 = vmatpush2.bf16.msra.mxu0 %v765
    %1010 = vmatprep.subr.bf16.mxu0 0
    %1011 = vmatpush2.bf16.msra.mxu0 %v764
    %1012 = vmatprep.mubr.bf16.mxu0 %v295
    %1013 = vmatmul.mubr.bf16.gmra.mxu0 %v293
    %v1014 = vpop.f32.mrf.mxu0
    %v1015 = vadd.f32 %v975, %v1014
    %v1016 = vpop.f32.mrf.mxu0
    %v1017 = vpop.f32.mrf.mxu0
    %v1018 = vpop.f32.mrf.mxu0
    %1019 = vdwg.mxu0
    %1020 = vmatprep.subr.bf16.mxu0 0
    %1021 = vmatpush1.bf16.msra.mxu0 %v779
    %1022 = vmatprep.subr.bf16.mxu0 0
    %1023 = vmatpush1.bf16.msra.mxu0 %v778
    %1024 = vmatprep.subr.bf16.mxu0 0
    %1025 = vmatpush1.bf16.msra.mxu0 %v777
    %1026 = vmatprep.subr.bf16.mxu0 0
    %1027 = vmatpush1.bf16.msra.mxu0 %v776
    %1028 = vmatprep.subr.bf16.mxu0 0
    %1029 = vmatpush1.bf16.msra.mxu0 %v775
    %1030 = vmatprep.subr.bf16.mxu0 0
    %1031 = vmatpush1.bf16.msra.mxu0 %v774
    %1032 = vmatprep.subr.bf16.mxu0 0
    %1033 = vmatpush1.bf16.msra.mxu0 %v773
    %1034 = vmatprep.subr.bf16.mxu0 0
    %1035 = vmatpush1.bf16.msra.mxu0 %v772
    %1036 = vmatprep.subr.bf16.mxu0 0
    %1037 = vmatpush2.bf16.msra.mxu0 %v787
    %1038 = vmatprep.subr.bf16.mxu0 0
    %1039 = vmatpush2.bf16.msra.mxu0 %v786
    %1040 = vmatprep.subr.bf16.mxu0 0
    %1041 = vmatpush2.bf16.msra.mxu0 %v785
    %1042 = vmatprep.subr.bf16.mxu0 0
    %1043 = vmatpush2.bf16.msra.mxu0 %v784
    %1044 = vmatprep.subr.bf16.mxu0 0
    %1045 = vmatpush2.bf16.msra.mxu0 %v783
    %1046 = vmatprep.subr.bf16.mxu0 0
    %1047 = vmatpush2.bf16.msra.mxu0 %v782
    %1048 = vmatprep.subr.bf16.mxu0 0
    %1049 = vmatpush2.bf16.msra.mxu0 %v781
    %1050 = vmatprep.subr.bf16.mxu0 0
    %1051 = vmatpush2.bf16.msra.mxu0 %v780
    %1052 = vmatprep.mubr.bf16.mxu0 %v292
    %1053 = vmatmul.mubr.bf16.gmra.mxu0 %v278
    %v1054 = vpop.f32.mrf.mxu0
    %v1055 = vadd.f32 %v1015, %v1054
    %v1056 = vpop.f32.mrf.mxu0
    %v1057 = vpop.f32.mrf.mxu0
    %v1058 = vpop.f32.mrf.mxu0
    %1059 = vdwg.mxu0
    %1060 = vmatprep.subr.bf16.mxu0 0
    %1061 = vmatpush1.bf16.msra.mxu0 %v795
    %1062 = vmatprep.subr.bf16.mxu0 0
    %1063 = vmatpush1.bf16.msra.mxu0 %v794
    %1064 = vmatprep.subr.bf16.mxu0 0
    %1065 = vmatpush1.bf16.msra.mxu0 %v793
    %1066 = vmatprep.subr.bf16.mxu0 0
    %1067 = vmatpush1.bf16.msra.mxu0 %v792
    %1068 = vmatprep.subr.bf16.mxu0 0
    %1069 = vmatpush1.bf16.msra.mxu0 %v791
    %1070 = vmatprep.subr.bf16.mxu0 0
    %1071 = vmatpush1.bf16.msra.mxu0 %v790
    %1072 = vmatprep.subr.bf16.mxu0 0
    %1073 = vmatpush1.bf16.msra.mxu0 %v789
    %1074 = vmatprep.subr.bf16.mxu0 0
    %1075 = vmatpush1.bf16.msra.mxu0 %v788
    %1076 = vmatprep.subr.bf16.mxu0 0
    %1077 = vmatpush2.bf16.msra.mxu0 %v803
    %1078 = vmatprep.subr.bf16.mxu0 0
    %1079 = vmatpush2.bf16.msra.mxu0 %v802
    %1080 = vmatprep.subr.bf16.mxu0 0
    %1081 = vmatpush2.bf16.msra.mxu0 %v801
    %1082 = vmatprep.subr.bf16.mxu0 0
    %1083 = vmatpush2.bf16.msra.mxu0 %v800
    %1084 = vmatprep.subr.bf16.mxu0 0
    %1085 = vmatpush2.bf16.msra.mxu0 %v799
    %1086 = vmatprep.subr.bf16.mxu0 0
    %1087 = vmatpush2.bf16.msra.mxu0 %v798
    %1088 = vmatprep.subr.bf16.mxu0 0
    %1089 = vmatpush2.bf16.msra.mxu0 %v797
    %1090 = vmatprep.subr.bf16.mxu0 0
    %1091 = vmatpush2.bf16.msra.mxu0 %v796
    %1092 = vmatprep.mubr.bf16.mxu0 %v296
    %1093 = vmatmul.mubr.bf16.gmra.mxu0 %v294
    %v1094 = vpop.f32.mrf.mxu0
    %v1095 = vadd.f32 %v1055, %v1094
    %v1096 = vpop.f32.mrf.mxu0
    %v1097 = vpop.f32.mrf.mxu0
    %v1098 = vpop.f32.mrf.mxu0
    %1099 = vdwg.mxu0
    %1100 = vmatprep.subr.bf16.mxu0 0
    %1101 = vmatpush1.bf16.msra.mxu0 %v811
    %1102 = vmatprep.subr.bf16.mxu0 0
    %1103 = vmatpush1.bf16.msra.mxu0 %v810
    %1104 = vmatprep.subr.bf16.mxu0 0
    %1105 = vmatpush1.bf16.msra.mxu0 %v809
    %1106 = vmatprep.subr.bf16.mxu0 0
    %1107 = vmatpush1.bf16.msra.mxu0 %v808
    %1108 = vmatprep.subr.bf16.mxu0 0
    %1109 = vmatpush1.bf16.msra.mxu0 %v807
    %1110 = vmatprep.subr.bf16.mxu0 0
    %1111 = vmatpush1.bf16.msra.mxu0 %v806
    %1112 = vmatprep.subr.bf16.mxu0 0
    %1113 = vmatpush1.bf16.msra.mxu0 %v805
    %1114 = vmatprep.subr.bf16.mxu0 0
    %1115 = vmatpush1.bf16.msra.mxu0 %v804
    %1116 = vmatprep.subr.bf16.mxu0 0
    %1117 = vmatpush2.bf16.msra.mxu0 %v819
    %1118 = vmatprep.subr.bf16.mxu0 0
    %1119 = vmatpush2.bf16.msra.mxu0 %v818
    %1120 = vmatprep.subr.bf16.mxu0 0
    %1121 = vmatpush2.bf16.msra.mxu0 %v817
    %1122 = vmatprep.subr.bf16.mxu0 0
    %1123 = vmatpush2.bf16.msra.mxu0 %v816
    %1124 = vmatprep.subr.bf16.mxu0 0
    %1125 = vmatpush2.bf16.msra.mxu0 %v815
    %1126 = vmatprep.subr.bf16.mxu0 0
    %1127 = vmatpush2.bf16.msra.mxu0 %v814
    %1128 = vmatprep.subr.bf16.mxu0 0
    %1129 = vmatpush2.bf16.msra.mxu0 %v813
    %1130 = vmatprep.subr.bf16.mxu0 0
    %1131 = vmatpush2.bf16.msra.mxu0 %v812
    %1132 = vmatprep.mubr.bf16.mxu0 %v333
    %1133 = vmatmul.mubr.bf16.gmra.mxu0 %v319
    %v1134 = vpop.f32.mrf.mxu0
    %v1135 = vadd.f32 %v1095, %v1134
    %v1136 = vpop.f32.mrf.mxu0
    %v1137 = vpop.f32.mrf.mxu0
    %v1138 = vpop.f32.mrf.mxu0
    %1139 = vdwg.mxu0
    %1140 = vmatprep.subr.bf16.mxu0 0
    %1141 = vmatpush1.bf16.msra.mxu0 %v827
    %1142 = vmatprep.subr.bf16.mxu0 0
    %1143 = vmatpush1.bf16.msra.mxu0 %v826
    %1144 = vmatprep.subr.bf16.mxu0 0
    %1145 = vmatpush1.bf16.msra.mxu0 %v825
    %1146 = vmatprep.subr.bf16.mxu0 0
    %1147 = vmatpush1.bf16.msra.mxu0 %v824
    %1148 = vmatprep.subr.bf16.mxu0 0
    %1149 = vmatpush1.bf16.msra.mxu0 %v823
    %1150 = vmatprep.subr.bf16.mxu0 0
    %1151 = vmatpush1.bf16.msra.mxu0 %v822
    %1152 = vmatprep.subr.bf16.mxu0 0
    %1153 = vmatpush1.bf16.msra.mxu0 %v821
    %1154 = vmatprep.subr.bf16.mxu0 0
    %1155 = vmatpush1.bf16.msra.mxu0 %v820
    %1156 = vmatprep.subr.bf16.mxu0 0
    %1157 = vmatpush2.bf16.msra.mxu0 %v835
    %1158 = vmatprep.subr.bf16.mxu0 0
    %1159 = vmatpush2.bf16.msra.mxu0 %v834
    %1160 = vmatprep.subr.bf16.mxu0 0
    %1161 = vmatpush2.bf16.msra.mxu0 %v833
    %1162 = vmatprep.subr.bf16.mxu0 0
    %1163 = vmatpush2.bf16.msra.mxu0 %v832
    %1164 = vmatprep.subr.bf16.mxu0 0
    %1165 = vmatpush2.bf16.msra.mxu0 %v831
    %1166 = vmatprep.subr.bf16.mxu0 0
    %1167 = vmatpush2.bf16.msra.mxu0 %v830
    %1168 = vmatprep.subr.bf16.mxu0 0
    %1169 = vmatpush2.bf16.msra.mxu0 %v829
    %1170 = vmatprep.subr.bf16.mxu0 0
    %1171 = vmatpush2.bf16.msra.mxu0 %v828
    %1172 = vmatprep.mubr.bf16.mxu0 %v335
    %1173 = vmatmul.mubr.bf16.gmra.mxu0 %v334
    %v1174 = vpop.f32.mrf.mxu0
    %v1175 = vadd.f32 %v1135, %v1174
    %v1176 = vpop.f32.mrf.mxu0
    %v1177 = vpop.f32.mrf.mxu0
    %v1178 = vpop.f32.mrf.mxu0
    %1179 = vdwg.mxu0
    %1180 = vmatprep.subr.bf16.mxu0 0
    %1181 = vmatpush1.bf16.msra.mxu0 0
    %1182 = vmatprep.subr.bf16.mxu0 0
    %1183 = vmatpush1.bf16.msra.mxu0 0
    %1184 = vmatprep.subr.bf16.mxu0 0
    %1185 = vmatpush1.bf16.msra.mxu0 0
    %1186 = vmatprep.subr.bf16.mxu0 0
    %1187 = vmatpush1.bf16.msra.mxu0 0
    %1188 = vmatprep.subr.bf16.mxu0 0
    %1189 = vmatpush1.bf16.msra.mxu0 0
    %1190 = vmatprep.subr.bf16.mxu0 0
    %1191 = vmatpush1.bf16.msra.mxu0 0
    %1192 = vmatprep.subr.bf16.mxu0 0
    %1193 = vmatpush1.bf16.msra.mxu0 %v837
    %1194 = vmatprep.subr.bf16.mxu0 0
    %1195 = vmatpush1.bf16.msra.mxu0 %v836
    %1196 = vmatprep.subr.bf16.mxu0 0
    %1197 = vmatpush2.bf16.msra.mxu0 0
    %1198 = vmatprep.subr.bf16.mxu0 0
    %1199 = vmatpush2.bf16.msra.mxu0 0
    %1200 = vmatprep.subr.bf16.mxu0 0
    %1201 = vmatpush2.bf16.msra.mxu0 0
    %1202 = vmatprep.subr.bf16.mxu0 0
    %1203 = vmatpush2.bf16.msra.mxu0 0
    %1204 = vmatprep.subr.bf16.mxu0 0
    %1205 = vmatpush2.bf16.msra.mxu0 0
    %1206 = vmatprep.subr.bf16.mxu0 0
    %1207 = vmatpush2.bf16.msra.mxu0 0
    %1208 = vmatprep.subr.bf16.mxu0 0
    %1209 = vmatpush2.bf16.msra.mxu0 0
    %1210 = vmatprep.subr.bf16.mxu0 0
    %1211 = vmatpush2.bf16.msra.mxu0 0
    %1212 = vmatprep.mubr.bf16.mxu0 0
    %1213 = vmatmul.mubr.bf16.gmra.mxu0 %v938
    %v1214 = vpop.f32.mrf.mxu0
    %v1215 = vadd.f32 %v1175, %v1214
    %v1216 = vpop.f32.mrf.mxu0
    %v1217 = vpop.f32.mrf.mxu0
    %v1218 = vpop.f32.mrf.mxu0
    %1219 = vdwg.mxu0
    %v1220 = vmax.f32 %v1215, 0.0
    %v1221 = vpack.c.bf16 %v1220, %v1220
    %v1222 = vld [vmem:[%s4] sm:$0xf]
    %v1223 = vld [vmem:[%s4 + $0x4] sm:$0xf]
    %v1224 = vld [vmem:[%s4 + $0x8] sm:$0xf]
    %v1225 = vld [vmem:[%s4 + $0xc] sm:$0xf]
    %v1226 = vld [vmem:[%s4 + $0x10] sm:$0xf]
    %v1227 = vld [vmem:[%s4 + $0x14] sm:$0xf]
    %v1228 = vld [vmem:[%s4 + $0x18] sm:$0xf]
    %v1229 = vld [vmem:[%s4 + $0x1c] sm:$0xf]
    %v1230 = vld [vmem:[%s4 + $0x20] sm:$0xf]
    %v1231 = vld [vmem:[%s4 + $0x24] sm:$0xf]
    %v1232 = vld [vmem:[%s4 + $0x28] sm:$0xf]
    %v1233 = vld [vmem:[%s4 + $0x2c] sm:$0xf]
    %v1234 = vld [vmem:[%s4 + $0x30] sm:$0xf]
    %v1235 = vld [vmem:[%s4 + $0x34] sm:$0xf]
    %v1236 = vld [vmem:[%s4 + $0x38] sm:$0xf]
    %v1237 = vld [vmem:[%s4 + $0x3c] sm:$0xf]
    %v1238 = vld [vmem:[%s5] sm:$0x1]
    %v1240 = vlaneseq
    %v1241 = vshrl.u32 %v1240, 7
    %v1242 = vsub.s32 0, %v1241
    %v1243 = vrot.slane %v1238, %v1242
    %v1261 = vunpack.c.l.b16 %v1222
    %v1262 = vunpack.c.l.b16 %v1223
    %v1263 = vunpack.c.l.b16 %v1224
    %v1264 = vunpack.c.l.b16 %v1225
    %v1265 = vunpack.c.l.b16 %v1226
    %v1266 = vunpack.c.l.b16 %v1227
    %v1267 = vunpack.c.l.b16 %v1228
    %v1268 = vunpack.c.l.b16 %v1229
    %v1269 = vunpack.c.l.b16 %v1230
    %v1270 = vunpack.c.l.b16 %v1231
    %v1271 = vunpack.c.l.b16 %v1232
    %v1272 = vunpack.c.l.b16 %v1233
    %v1273 = vunpack.c.l.b16 %v1234
    %v1274 = vunpack.c.l.b16 %v1235
    %v1275 = vunpack.c.l.b16 %v1236
    %v1276 = vunpack.c.l.b16 %v1237
    %v1277 = vpack.c.b16 %v1262, %v1261
    %v1278 = vpack.c.b16 %v1264, %v1263
    %v1279 = vpack.c.b16 %v1266, %v1265
    %v1280 = vpack.c.b16 %v1268, %v1267
    %v1281 = vpack.c.b16 %v1270, %v1269
    %v1282 = vpack.c.b16 %v1272, %v1271
    %v1283 = vpack.c.b16 %v1274, %v1273
    %v1284 = vpack.c.b16 %v1276, %v1275
    %1293 = vmatprep.subr.bf16.mxu0 0
    %1294 = vmatpush1.bf16.msra.mxu0 %v1284
    %1295 = vmatprep.subr.bf16.mxu0 0
    %1296 = vmatpush1.bf16.msra.mxu0 %v1283
    %1297 = vmatprep.subr.bf16.mxu0 0
    %1298 = vmatpush1.bf16.msra.mxu0 %v1282
    %1299 = vmatprep.subr.bf16.mxu0 0
    %1300 = vmatpush1.bf16.msra.mxu0 %v1281
    %1301 = vmatprep.subr.bf16.mxu0 0
    %1302 = vmatpush1.bf16.msra.mxu0 %v1280
    %1303 = vmatprep.subr.bf16.mxu0 0
    %1304 = vmatpush1.bf16.msra.mxu0 %v1279
    %1305 = vmatprep.subr.bf16.mxu0 0
    %1306 = vmatpush1.bf16.msra.mxu0 %v1278
    %1307 = vmatprep.subr.bf16.mxu0 0
    %1308 = vmatpush1.bf16.msra.mxu0 %v1277
    %1309 = vmatprep.subr.bf16.mxu0 0
    %1310 = vmatpush2.bf16.msra.mxu0 0
    %1311 = vmatprep.subr.bf16.mxu0 0
    %1312 = vmatpush2.bf16.msra.mxu0 0
    %1313 = vmatprep.subr.bf16.mxu0 0
    %1314 = vmatpush2.bf16.msra.mxu0 0
    %1315 = vmatprep.subr.bf16.mxu0 0
    %1316 = vmatpush2.bf16.msra.mxu0 0
    %1317 = vmatprep.subr.bf16.mxu0 0
    %1318 = vmatpush2.bf16.msra.mxu0 0
    %1319 = vmatprep.subr.bf16.mxu0 0
    %1320 = vmatpush2.bf16.msra.mxu0 0
    %1321 = vmatprep.subr.bf16.mxu0 0
    %1322 = vmatpush2.bf16.msra.mxu0 0
    %1323 = vmatprep.subr.bf16.mxu0 0
    %1324 = vmatpush2.bf16.msra.mxu0 0
    %1325 = vmatprep.mubr.bf16.mxu0 0
    %1326 = vmatmul.mubr.bf16.gmra.mxu0 %v1221
    %v1327 = vpop.f32.mrf.mxu0
    %v1328 = vadd.f32 %v1243, %v1327
    %v1329 = vpop.f32.mrf.mxu0
    %v1330 = vpop.f32.mrf.mxu0
    %v1331 = vpop.f32.mrf.mxu0
    %1332 = vdwg.mxu0
    %vm1333 = vcmask 58368
    %1334 = vst.msk [vmem:[#allocation2] sm:$0x3] %vm1333, %v1328
    %1336 = vrot.lane.b32.xlu0 %v1328, 120
    %v1337 = vpop.permute.xlu0 %1336
    %1339 = vst.msk [vmem:[#allocation4] sm:$0x3] %vm1333, %v1337
    %v1340 = vmul.f32 %v1328, 1.442695
    %v1341 = vpow.pop %v1340
    %v1342 = vld [vmem:[%s1] sm:$0x3]
    %1344 = vrot.lane.b32.xlu0 %v1342, 8
    %v1345 = vpop.permute.xlu0 %1344
    %v1347 = vmul.f32 %v1341, %v1345
    %1349 = vrot.lane.b32.xlu0 %v1347, 120
    %v1350 = vpop.permute.xlu0 %1349
    %v1352 = vadd.f32 %v1328, %v1350
    %v1353 = vpack.c.bf16 %v1352, %v1352
    %v1354 = vld [vmem:[%s6] sm:$0xf]
    %v1355 = vld [vmem:[%s7] sm:$0x1]
    %v1357 = vlaneseq
    %v1358 = vshrl.u32 %v1357, 7
    %v1359 = vsub.s32 0, %v1358
    %v1360 = vrot.slane %v1355, %v1359
    %vm1362 = vcmask 64512
    %v1364 = vsel %vm1362, %v1353, 0
    %vm1366 = vcmask 1043456
    %v1368 = vsel %vm1366, %v1354, 0
    %1370 = vmatprep.subr.bf16.mxu0 0
    %1371 = vmatpush1.bf16.msra.mxu0 0
    %1372 = vmatprep.subr.bf16.mxu0 0
    %1373 = vmatpush1.bf16.msra.mxu0 0
    %1374 = vmatprep.subr.bf16.mxu0 0
    %1375 = vmatpush1.bf16.msra.mxu0 0
    %1376 = vmatprep.subr.bf16.mxu0 0
    %1377 = vmatpush1.bf16.msra.mxu0 0
    %1378 = vmatprep.subr.bf16.mxu0 0
    %1379 = vmatpush1.bf16.msra.mxu0 0
    %1380 = vmatprep.subr.bf16.mxu0 0
    %1381 = vmatpush1.bf16.msra.mxu0 0
    %1382 = vmatprep.subr.bf16.mxu0 0
    %1383 = vmatpush1.bf16.msra.mxu0 0
    %1384 = vmatprep.subr.bf16.mxu0 0
    %1385 = vmatpush1.bf16.msra.mxu0 %v1368
    %1386 = vmatprep.subr.bf16.mxu0 0
    %1387 = vmatpush2.bf16.msra.mxu0 0
    %1388 = vmatprep.subr.bf16.mxu0 0
    %1389 = vmatpush2.bf16.msra.mxu0 0
    %1390 = vmatprep.subr.bf16.mxu0 0
    %1391 = vmatpush2.bf16.msra.mxu0 0
    %1392 = vmatprep.subr.bf16.mxu0 0
    %1393 = vmatpush2.bf16.msra.mxu0 0
    %1394 = vmatprep.subr.bf16.mxu0 0
    %1395 = vmatpush2.bf16.msra.mxu0 0
    %1396 = vmatprep.subr.bf16.mxu0 0
    %1397 = vmatpush2.bf16.msra.mxu0 0
    %1398 = vmatprep.subr.bf16.mxu0 0
    %1399 = vmatpush2.bf16.msra.mxu0 0
    %1400 = vmatprep.subr.bf16.mxu0 0
    %1401 = vmatpush2.bf16.msra.mxu0 0
    %1402 = vmatprep.mubr.bf16.mxu0 0
    %1403 = vmatmul.mubr.bf16.gmra.mxu0 %v1364
    %v1404 = vpop.f32.mrf.mxu0
    %v1405 = vadd.f32 %v1360, %v1404
    %v1406 = vpop.f32.mrf.mxu0
    %v1407 = vpop.f32.mrf.mxu0
    %v1408 = vpop.f32.mrf.mxu0
    %1409 = vdwg.mxu0
    %v1410 = vmax.f32 %v1405, 0.0
    %v1411 = vpack.c.bf16 %v1410, %v1410
    %v1412 = vld [vmem:[%s8] sm:$0xff]
    %v1413 = vld [vmem:[%s8 + $0x8] sm:$0xff]
    %v1414 = vld [vmem:[%s8 + $0x10] sm:$0xff]
    %v1415 = vld [vmem:[%s8 + $0x18] sm:$0xff]
    %v1416 = vld [vmem:[%s8 + $0x20] sm:$0xff]
    %v1417 = vld [vmem:[%s8 + $0x28] sm:$0xff]
    %v1418 = vld [vmem:[%s8 + $0x30] sm:$0xf]
    %v1419 = vld [vmem:[%s8 + $0x34] sm:$0xff]
    %v1420 = vld [vmem:[%s8 + $0x3c] sm:$0xff]
    %v1421 = vld [vmem:[%s8 + $0x44] sm:$0xff]
    %v1422 = vld [vmem:[%s8 + $0x4c] sm:$0xff]
    %v1423 = vld [vmem:[%s8 + $0x54] sm:$0xff]
    %v1424 = vld [vmem:[%s8 + $0x5c] sm:$0xff]
    %v1425 = vld [vmem:[%s8 + $0x64] sm:$0xf]
    %v1426 = vld [vmem:[%s8 + $0x68] sm:$0xff]
    %v1427 = vld [vmem:[%s8 + $0x70] sm:$0xff]
    %v1428 = vld [vmem:[%s8 + $0x78] sm:$0xff]
    %v1429 = vld [vmem:[%s8 + $0x80] sm:$0xff]
    %v1430 = vld [vmem:[%s8 + $0x88] sm:$0xff]
    %v1431 = vld [vmem:[%s8 + $0x90] sm:$0xff]
    %v1432 = vld [vmem:[%s8 + $0x98] sm:$0xf]
    %v1433 = vld [vmem:[%s8 + $0x9c] sm:$0xff]
    %v1434 = vld [vmem:[%s8 + $0xa4] sm:$0xff]
    %v1435 = vld [vmem:[%s8 + $0xac] sm:$0xff]
    %v1436 = vld [vmem:[%s8 + $0xb4] sm:$0xff]
    %v1437 = vld [vmem:[%s8 + $0xbc] sm:$0xff]
    %v1438 = vld [vmem:[%s8 + $0xc4] sm:$0xff]
    %v1439 = vld [vmem:[%s8 + $0xcc] sm:$0xf]
    %v1440 = vld [vmem:[%s8 + $0xd0] sm:$0xff]
    %v1441 = vld [vmem:[%s8 + $0xd8] sm:$0xff]
    %v1442 = vld [vmem:[%s8 + $0xe0] sm:$0xff]
    %v1443 = vld [vmem:[%s8 + $0xe8] sm:$0xff]
    %v1444 = vld [vmem:[%s8 + $0xf0] sm:$0xff]
    %v1445 = vld [vmem:[%s8 + $0xf8] sm:$0xff]
    %v1446 = vld [vmem:[%s8 + $0x100] sm:$0xf]
    %v1447 = vld [vmem:[%s8 + $0x104] sm:$0xff]
    %v1448 = vld [vmem:[%s8 + $0x10c] sm:$0xff]
    %v1449 = vld [vmem:[%s8 + $0x114] sm:$0xff]
    %v1450 = vld [vmem:[%s8 + $0x11c] sm:$0xff]
    %v1451 = vld [vmem:[%s8 + $0x124] sm:$0xff]
    %v1452 = vld [vmem:[%s8 + $0x12c] sm:$0xff]
    %v1453 = vld [vmem:[%s8 + $0x134] sm:$0xf]
    %v1454 = vld [vmem:[%s8 + $0x138] sm:$0xff]
    %v1455 = vld [vmem:[%s8 + $0x140] sm:$0xff]
    %v1456 = vld [vmem:[%s8 + $0x148] sm:$0xff]
    %v1457 = vld [vmem:[%s8 + $0x150] sm:$0xff]
    %v1458 = vld [vmem:[%s8 + $0x158] sm:$0xff]
    %v1459 = vld [vmem:[%s8 + $0x160] sm:$0xff]
    %v1460 = vld [vmem:[%s8 + $0x168] sm:$0xf]
    %v1461 = vld [vmem:[%s8 + $0x16c] sm:$0xff]
    %v1462 = vld [vmem:[%s8 + $0x174] sm:$0xff]
    %v1463 = vld [vmem:[%s8 + $0x17c] sm:$0xff]
    %v1464 = vld [vmem:[%s8 + $0x184] sm:$0xff]
    %v1465 = vld [vmem:[%s8 + $0x18c] sm:$0xff]
    %v1466 = vld [vmem:[%s8 + $0x194] sm:$0xff]
    %v1467 = vld [vmem:[%s8 + $0x19c] sm:$0xf]
    %v1468 = vld [vmem:[%s8 + $0x1a0] sm:$0xff]
    %v1469 = vld [vmem:[%s8 + $0x1a8] sm:$0xff]
    %v1470 = vld [vmem:[%s8 + $0x1b0] sm:$0xff]
    %v1471 = vld [vmem:[%s8 + $0x1b8] sm:$0xff]
    %v1472 = vld [vmem:[%s8 + $0x1c0] sm:$0xff]
    %v1473 = vld [vmem:[%s8 + $0x1c8] sm:$0xff]
    %v1474 = vld [vmem:[%s8 + $0x1d0] sm:$0xf]
    %v1475 = vld [vmem:[%s8 + $0x1d4] sm:$0xff]
    %v1476 = vld [vmem:[%s8 + $0x1dc] sm:$0xff]
    %v1477 = vld [vmem:[%s8 + $0x1e4] sm:$0xff]
    %v1478 = vld [vmem:[%s8 + $0x1ec] sm:$0xff]
    %v1479 = vld [vmem:[%s8 + $0x1f4] sm:$0xff]
    %v1480 = vld [vmem:[%s8 + $0x1fc] sm:$0xff]
    %v1481 = vld [vmem:[%s8 + $0x204] sm:$0xf]
    %v1482 = vld [vmem:[%s8 + $0x208] sm:$0xff]
    %v1483 = vld [vmem:[%s8 + $0x210] sm:$0xff]
    %v1484 = vld [vmem:[%s8 + $0x218] sm:$0xff]
    %v1485 = vld [vmem:[%s8 + $0x220] sm:$0xff]
    %v1486 = vld [vmem:[%s8 + $0x228] sm:$0xff]
    %v1487 = vld [vmem:[%s8 + $0x230] sm:$0xff]
    %v1488 = vld [vmem:[%s8 + $0x238] sm:$0xf]
    %v1489 = vld [vmem:[%s8 + $0x23c] sm:$0xff]
    %v1490 = vld [vmem:[%s8 + $0x244] sm:$0xff]
    %v1491 = vld [vmem:[%s8 + $0x24c] sm:$0xff]
    %v1492 = vld [vmem:[%s8 + $0x254] sm:$0xff]
    %v1493 = vld [vmem:[%s8 + $0x25c] sm:$0xff]
    %v1494 = vld [vmem:[%s8 + $0x264] sm:$0xff]
    %v1495 = vld [vmem:[%s8 + $0x26c] sm:$0xf]
    %v1496 = vld [vmem:[%s8 + $0x270] sm:$0xff]
    %v1497 = vld [vmem:[%s8 + $0x278] sm:$0xff]
    %v1498 = vld [vmem:[%s8 + $0x280] sm:$0xff]
    %v1499 = vld [vmem:[%s8 + $0x288] sm:$0xff]
    %v1500 = vld [vmem:[%s8 + $0x290] sm:$0xff]
    %v1501 = vld [vmem:[%s8 + $0x298] sm:$0xff]
    %v1502 = vld [vmem:[%s8 + $0x2a0] sm:$0xf]
    %v1503 = vld [vmem:[%s8 + $0x2a4] sm:$0xff]
    %v1504 = vld [vmem:[%s8 + $0x2ac] sm:$0xff]
    %v1505 = vld [vmem:[%s8 + $0x2b4] sm:$0xff]
    %v1506 = vld [vmem:[%s8 + $0x2bc] sm:$0xff]
    %v1507 = vld [vmem:[%s8 + $0x2c4] sm:$0xff]
    %v1508 = vld [vmem:[%s8 + $0x2cc] sm:$0xff]
    %v1509 = vld [vmem:[%s8 + $0x2d4] sm:$0xf]
    %v1510 = vld [vmem:[%s8 + $0x2d8] sm:$0xff]
    %v1511 = vld [vmem:[%s8 + $0x2e0] sm:$0xff]
    %v1512 = vld [vmem:[%s8 + $0x2e8] sm:$0xff]
    %v1513 = vld [vmem:[%s8 + $0x2f0] sm:$0xff]
    %v1514 = vld [vmem:[%s8 + $0x2f8] sm:$0xff]
    %v1515 = vld [vmem:[%s8 + $0x300] sm:$0xff]
    %v1516 = vld [vmem:[%s8 + $0x308] sm:$0xf]
    %v1517 = vld [vmem:[%s8 + $0x30c] sm:$0xff]
    %v1518 = vld [vmem:[%s8 + $0x314] sm:$0xff]
    %v1519 = vld [vmem:[%s8 + $0x31c] sm:$0xff]
    %v1520 = vld [vmem:[%s8 + $0x324] sm:$0xff]
    %v1521 = vld [vmem:[%s8 + $0x32c] sm:$0xff]
    %v1522 = vld [vmem:[%s8 + $0x334] sm:$0xff]
    %v1523 = vld [vmem:[%s8 + $0x33c] sm:$0xf]
    %v1524 = vld [vmem:[%s9] sm:$0xff]
    %v1525 = vld [vmem:[%s9 + $0x8] sm:$0x1f]
    %v1528 = vlaneseq
    %v1529 = vshrl.u32 %v1528, 7
    %v1530 = vsub.s32 0, %v1529
    %v1531 = vrot.slane %v1524, %v1530
    %v1532 = vlaneseq
    %v1533 = vshrl.u32 %v1532, 7
    %v1534 = vsub.s32 1, %v1533
    %v1535 = vrot.slane %v1524, %v1534
    %v1536 = vlaneseq
    %v1537 = vshrl.u32 %v1536, 7
    %v1538 = vsub.s32 2, %v1537
    %v1539 = vrot.slane %v1524, %v1538
    %v1540 = vlaneseq
    %v1541 = vshrl.u32 %v1540, 7
    %v1542 = vsub.s32 3, %v1541
    %v1543 = vrot.slane %v1524, %v1542
    %v1544 = vlaneseq
    %v1545 = vshrl.u32 %v1544, 7
    %v1546 = vsub.s32 4, %v1545
    %v1547 = vrot.slane %v1524, %v1546
    %v1548 = vlaneseq
    %v1549 = vshrl.u32 %v1548, 7
    %v1550 = vsub.s32 5, %v1549
    %v1551 = vrot.slane %v1524, %v1550
    %v1552 = vlaneseq
    %v1553 = vshrl.u32 %v1552, 7
    %v1554 = vsub.s32 6, %v1553
    %v1555 = vrot.slane %v1524, %v1554
    %v1556 = vlaneseq
    %v1557 = vshrl.u32 %v1556, 7
    %v1558 = vsub.s32 7, %v1557
    %v1559 = vrot.slane %v1524, %v1558
    %v1560 = vlaneseq
    %v1561 = vshrl.u32 %v1560, 7
    %v1562 = vsub.s32 0, %v1561
    %v1563 = vrot.slane %v1525, %v1562
    %v1564 = vlaneseq
    %v1565 = vshrl.u32 %v1564, 7
    %v1566 = vsub.s32 1, %v1565
    %v1567 = vrot.slane %v1525, %v1566
    %v1568 = vlaneseq
    %v1569 = vshrl.u32 %v1568, 7
    %v1570 = vsub.s32 2, %v1569
    %v1571 = vrot.slane %v1525, %v1570
    %v1572 = vlaneseq
    %v1573 = vshrl.u32 %v1572, 7
    %v1574 = vsub.s32 3, %v1573
    %v1575 = vrot.slane %v1525, %v1574
    %v1576 = vlaneseq
    %v1577 = vshrl.u32 %v1576, 7
    %v1578 = vsub.s32 4, %v1577
    %v1579 = vrot.slane %v1525, %v1578
    %v1705 = vunpack.c.l.b16 %v1412
    %v1706 = vunpack.c.h.b16 %v1412
    %v1707 = vunpack.c.l.b16 %v1413
    %v1708 = vunpack.c.h.b16 %v1413
    %v1709 = vunpack.c.l.b16 %v1414
    %v1710 = vunpack.c.h.b16 %v1414
    %v1711 = vunpack.c.l.b16 %v1415
    %v1712 = vunpack.c.h.b16 %v1415
    %v1713 = vunpack.c.l.b16 %v1416
    %v1714 = vunpack.c.h.b16 %v1416
    %v1715 = vunpack.c.l.b16 %v1417
    %v1716 = vunpack.c.h.b16 %v1417
    %v1717 = vunpack.c.l.b16 %v1418
    %v1718 = vunpack.c.l.b16 %v1419
    %v1719 = vunpack.c.h.b16 %v1419
    %v1720 = vunpack.c.l.b16 %v1420
    %v1721 = vunpack.c.h.b16 %v1420
    %v1722 = vunpack.c.l.b16 %v1421
    %v1723 = vunpack.c.h.b16 %v1421
    %v1724 = vunpack.c.l.b16 %v1422
    %v1725 = vunpack.c.h.b16 %v1422
    %v1726 = vunpack.c.l.b16 %v1423
    %v1727 = vunpack.c.h.b16 %v1423
    %v1728 = vunpack.c.l.b16 %v1424
    %v1729 = vunpack.c.h.b16 %v1424
    %v1730 = vunpack.c.l.b16 %v1425
    %v1731 = vunpack.c.l.b16 %v1426
    %v1732 = vunpack.c.h.b16 %v1426
    %v1733 = vunpack.c.l.b16 %v1427
    %v1734 = vunpack.c.h.b16 %v1427
    %v1735 = vunpack.c.l.b16 %v1428
    %v1736 = vunpack.c.h.b16 %v1428
    %v1737 = vunpack.c.l.b16 %v1429
    %v1738 = vunpack.c.h.b16 %v1429
    %v1739 = vunpack.c.l.b16 %v1430
    %v1740 = vunpack.c.h.b16 %v1430
    %v1741 = vunpack.c.l.b16 %v1431
    %v1742 = vunpack.c.h.b16 %v1431
    %v1743 = vunpack.c.l.b16 %v1432
    %v1744 = vunpack.c.l.b16 %v1433
    %v1745 = vunpack.c.h.b16 %v1433
    %v1746 = vunpack.c.l.b16 %v1434
    %v1747 = vunpack.c.h.b16 %v1434
    %v1748 = vunpack.c.l.b16 %v1435
    %v1749 = vunpack.c.h.b16 %v1435
    %v1750 = vunpack.c.l.b16 %v1436
    %v1751 = vunpack.c.h.b16 %v1436
    %v1752 = vunpack.c.l.b16 %v1437
    %v1753 = vunpack.c.h.b16 %v1437
    %v1754 = vunpack.c.l.b16 %v1438
    %v1755 = vunpack.c.h.b16 %v1438
    %v1756 = vunpack.c.l.b16 %v1439
    %v1757 = vunpack.c.l.b16 %v1440
    %v1758 = vunpack.c.h.b16 %v1440
    %v1759 = vunpack.c.l.b16 %v1441
    %v1760 = vunpack.c.h.b16 %v1441
    %v1761 = vunpack.c.l.b16 %v1442
    %v1762 = vunpack.c.h.b16 %v1442
    %v1763 = vunpack.c.l.b16 %v1443
    %v1764 = vunpack.c.h.b16 %v1443
    %v1765 = vunpack.c.l.b16 %v1444
    %v1766 = vunpack.c.h.b16 %v1444
    %v1767 = vunpack.c.l.b16 %v1445
    %v1768 = vunpack.c.h.b16 %v1445
    %v1769 = vunpack.c.l.b16 %v1446
    %v1770 = vunpack.c.l.b16 %v1447
    %v1771 = vunpack.c.h.b16 %v1447
    %v1772 = vunpack.c.l.b16 %v1448
    %v1773 = vunpack.c.h.b16 %v1448
    %v1774 = vunpack.c.l.b16 %v1449
    %v1775 = vunpack.c.h.b16 %v1449
    %v1776 = vunpack.c.l.b16 %v1450
    %v1777 = vunpack.c.h.b16 %v1450
    %v1778 = vunpack.c.l.b16 %v1451
    %v1779 = vunpack.c.h.b16 %v1451
    %v1780 = vunpack.c.l.b16 %v1452
    %v1781 = vunpack.c.h.b16 %v1452
    %v1782 = vunpack.c.l.b16 %v1453
    %v1783 = vunpack.c.l.b16 %v1454
    %v1784 = vunpack.c.h.b16 %v1454
    %v1785 = vunpack.c.l.b16 %v1455
    %v1786 = vunpack.c.h.b16 %v1455
    %v1787 = vunpack.c.l.b16 %v1456
    %v1788 = vunpack.c.h.b16 %v1456
    %v1789 = vunpack.c.l.b16 %v1457
    %v1790 = vunpack.c.h.b16 %v1457
    %v1791 = vunpack.c.l.b16 %v1458
    %v1792 = vunpack.c.h.b16 %v1458
    %v1793 = vunpack.c.l.b16 %v1459
    %v1794 = vunpack.c.h.b16 %v1459
    %v1795 = vunpack.c.l.b16 %v1460
    %v1796 = vunpack.c.l.b16 %v1461
    %v1797 = vunpack.c.h.b16 %v1461
    %v1798 = vunpack.c.l.b16 %v1462
    %v1799 = vunpack.c.h.b16 %v1462
    %v1800 = vunpack.c.l.b16 %v1463
    %v1801 = vunpack.c.h.b16 %v1463
    %v1802 = vunpack.c.l.b16 %v1464
    %v1803 = vunpack.c.h.b16 %v1464
    %v1804 = vunpack.c.l.b16 %v1465
    %v1805 = vunpack.c.h.b16 %v1465
    %v1806 = vunpack.c.l.b16 %v1466
    %v1807 = vunpack.c.h.b16 %v1466
    %v1808 = vunpack.c.l.b16 %v1467
    %v1809 = vunpack.c.l.b16 %v1468
    %v1810 = vunpack.c.h.b16 %v1468
    %v1811 = vunpack.c.l.b16 %v1469
    %v1812 = vunpack.c.h.b16 %v1469
    %v1813 = vunpack.c.l.b16 %v1470
    %v1814 = vunpack.c.h.b16 %v1470
    %v1815 = vunpack.c.l.b16 %v1471
    %v1816 = vunpack.c.h.b16 %v1471
    %v1817 = vunpack.c.l.b16 %v1472
    %v1818 = vunpack.c.h.b16 %v1472
    %v1819 = vunpack.c.l.b16 %v1473
    %v1820 = vunpack.c.h.b16 %v1473
    %v1821 = vunpack.c.l.b16 %v1474
    %v1822 = vunpack.c.l.b16 %v1475
    %v1823 = vunpack.c.h.b16 %v1475
    %v1824 = vunpack.c.l.b16 %v1476
    %v1825 = vunpack.c.h.b16 %v1476
    %v1826 = vunpack.c.l.b16 %v1477
    %v1827 = vunpack.c.h.b16 %v1477
    %v1828 = vunpack.c.l.b16 %v1478
    %v1829 = vunpack.c.h.b16 %v1478
    %v1830 = vunpack.c.l.b16 %v1479
    %v1831 = vunpack.c.h.b16 %v1479
    %v1832 = vunpack.c.l.b16 %v1480
    %v1833 = vunpack.c.h.b16 %v1480
    %v1834 = vunpack.c.l.b16 %v1481
    %v1835 = vunpack.c.l.b16 %v1482
    %v1836 = vunpack.c.h.b16 %v1482
    %v1837 = vunpack.c.l.b16 %v1483
    %v1838 = vunpack.c.h.b16 %v1483
    %v1839 = vunpack.c.l.b16 %v1484
    %v1840 = vunpack.c.h.b16 %v1484
    %v1841 = vunpack.c.l.b16 %v1485
    %v1842 = vunpack.c.h.b16 %v1485
    %v1843 = vunpack.c.l.b16 %v1486
    %v1844 = vunpack.c.h.b16 %v1486
    %v1845 = vunpack.c.l.b16 %v1487
    %v1846 = vunpack.c.h.b16 %v1487
    %v1847 = vunpack.c.l.b16 %v1488
    %v1848 = vunpack.c.l.b16 %v1489
    %v1849 = vunpack.c.h.b16 %v1489
    %v1850 = vunpack.c.l.b16 %v1490
    %v1851 = vunpack.c.h.b16 %v1490
    %v1852 = vunpack.c.l.b16 %v1491
    %v1853 = vunpack.c.h.b16 %v1491
    %v1854 = vunpack.c.l.b16 %v1492
    %v1855 = vunpack.c.h.b16 %v1492
    %v1856 = vunpack.c.l.b16 %v1493
    %v1857 = vunpack.c.h.b16 %v1493
    %v1858 = vunpack.c.l.b16 %v1494
    %v1859 = vunpack.c.h.b16 %v1494
    %v1860 = vunpack.c.l.b16 %v1495
    %v1861 = vunpack.c.l.b16 %v1496
    %v1862 = vunpack.c.h.b16 %v1496
    %v1863 = vunpack.c.l.b16 %v1497
    %v1864 = vunpack.c.h.b16 %v1497
    %v1865 = vunpack.c.l.b16 %v1498
    %v1866 = vunpack.c.h.b16 %v1498
    %v1867 = vunpack.c.l.b16 %v1499
    %v1868 = vunpack.c.h.b16 %v1499
    %v1869 = vunpack.c.l.b16 %v1500
    %v1870 = vunpack.c.h.b16 %v1500
    %v1871 = vunpack.c.l.b16 %v1501
    %v1872 = vunpack.c.h.b16 %v1501
    %v1873 = vunpack.c.l.b16 %v1502
    %v1874 = vunpack.c.l.b16 %v1503
    %v1875 = vunpack.c.h.b16 %v1503
    %v1876 = vunpack.c.l.b16 %v1504
    %v1877 = vunpack.c.h.b16 %v1504
    %v1878 = vunpack.c.l.b16 %v1505
    %v1879 = vunpack.c.h.b16 %v1505
    %v1880 = vunpack.c.l.b16 %v1506
    %v1881 = vunpack.c.h.b16 %v1506
    %v1882 = vunpack.c.l.b16 %v1507
    %v1883 = vunpack.c.h.b16 %v1507
    %v1884 = vunpack.c.l.b16 %v1508
    %v1885 = vunpack.c.h.b16 %v1508
    %v1886 = vunpack.c.l.b16 %v1509
    %v1887 = vunpack.c.l.b16 %v1510
    %v1888 = vunpack.c.h.b16 %v1510
    %v1889 = vunpack.c.l.b16 %v1511
    %v1890 = vunpack.c.h.b16 %v1511
    %v1891 = vunpack.c.l.b16 %v1512
    %v1892 = vunpack.c.h.b16 %v1512
    %v1893 = vunpack.c.l.b16 %v1513
    %v1894 = vunpack.c.h.b16 %v1513
    %v1895 = vunpack.c.l.b16 %v1514
    %v1896 = vunpack.c.h.b16 %v1514
    %v1897 = vunpack.c.l.b16 %v1515
    %v1898 = vunpack.c.h.b16 %v1515
    %v1899 = vunpack.c.l.b16 %v1516
    %v1900 = vunpack.c.l.b16 %v1517
    %v1901 = vunpack.c.h.b16 %v1517
    %v1902 = vunpack.c.l.b16 %v1518
    %v1903 = vunpack.c.h.b16 %v1518
    %v1904 = vunpack.c.l.b16 %v1519
    %v1905 = vunpack.c.h.b16 %v1519
    %v1906 = vunpack.c.l.b16 %v1520
    %v1907 = vunpack.c.h.b16 %v1520
    %v1908 = vunpack.c.l.b16 %v1521
    %v1909 = vunpack.c.h.b16 %v1521
    %v1910 = vunpack.c.l.b16 %v1522
    %v1911 = vunpack.c.h.b16 %v1522
    %v1912 = vunpack.c.l.b16 %v1523
    %v1913 = vpack.c.b16 %v1718, %v1705
    %v1914 = vpack.c.b16 %v1719, %v1706
    %v1915 = vpack.c.b16 %v1720, %v1707
    %v1916 = vpack.c.b16 %v1721, %v1708
    %v1917 = vpack.c.b16 %v1722, %v1709
    %v1918 = vpack.c.b16 %v1723, %v1710
    %v1919 = vpack.c.b16 %v1724, %v1711
    %v1920 = vpack.c.b16 %v1725, %v1712
    %v1921 = vpack.c.b16 %v1726, %v1713
    %v1922 = vpack.c.b16 %v1727, %v1714
    %v1923 = vpack.c.b16 %v1728, %v1715
    %v1924 = vpack.c.b16 %v1729, %v1716
    %v1925 = vpack.c.b16 %v1730, %v1717
    %v1926 = vpack.c.b16 %v1744, %v1731
    %v1927 = vpack.c.b16 %v1745, %v1732
    %v1928 = vpack.c.b16 %v1746, %v1733
    %v1929 = vpack.c.b16 %v1747, %v1734
    %v1930 = vpack.c.b16 %v1748, %v1735
    %v1931 = vpack.c.b16 %v1749, %v1736
    %v1932 = vpack.c.b16 %v1750, %v1737
    %v1933 = vpack.c.b16 %v1751, %v1738
    %v1934 = vpack.c.b16 %v1752, %v1739
    %v1935 = vpack.c.b16 %v1753, %v1740
    %v1936 = vpack.c.b16 %v1754, %v1741
    %v1937 = vpack.c.b16 %v1755, %v1742
    %v1938 = vpack.c.b16 %v1756, %v1743
    %v1939 = vpack.c.b16 %v1770, %v1757
    %v1940 = vpack.c.b16 %v1771, %v1758
    %v1941 = vpack.c.b16 %v1772, %v1759
    %v1942 = vpack.c.b16 %v1773, %v1760
    %v1943 = vpack.c.b16 %v1774, %v1761
    %v1944 = vpack.c.b16 %v1775, %v1762
    %v1945 = vpack.c.b16 %v1776, %v1763
    %v1946 = vpack.c.b16 %v1777, %v1764
    %v1947 = vpack.c.b16 %v1778, %v1765
    %v1948 = vpack.c.b16 %v1779, %v1766
    %v1949 = vpack.c.b16 %v1780, %v1767
    %v1950 = vpack.c.b16 %v1781, %v1768
    %v1951 = vpack.c.b16 %v1782, %v1769
    %v1952 = vpack.c.b16 %v1796, %v1783
    %v1953 = vpack.c.b16 %v1797, %v1784
    %v1954 = vpack.c.b16 %v1798, %v1785
    %v1955 = vpack.c.b16 %v1799, %v1786
    %v1956 = vpack.c.b16 %v1800, %v1787
    %v1957 = vpack.c.b16 %v1801, %v1788
    %v1958 = vpack.c.b16 %v1802, %v1789
    %v1959 = vpack.c.b16 %v1803, %v1790
    %v1960 = vpack.c.b16 %v1804, %v1791
    %v1961 = vpack.c.b16 %v1805, %v1792
    %v1962 = vpack.c.b16 %v1806, %v1793
    %v1963 = vpack.c.b16 %v1807, %v1794
    %v1964 = vpack.c.b16 %v1808, %v1795
    %v1965 = vpack.c.b16 %v1822, %v1809
    %v1966 = vpack.c.b16 %v1823, %v1810
    %v1967 = vpack.c.b16 %v1824, %v1811
    %v1968 = vpack.c.b16 %v1825, %v1812
    %v1969 = vpack.c.b16 %v1826, %v1813
    %v1970 = vpack.c.b16 %v1827, %v1814
    %v1971 = vpack.c.b16 %v1828, %v1815
    %v1972 = vpack.c.b16 %v1829, %v1816
    %v1973 = vpack.c.b16 %v1830, %v1817
    %v1974 = vpack.c.b16 %v1831, %v1818
    %v1975 = vpack.c.b16 %v1832, %v1819
    %v1976 = vpack.c.b16 %v1833, %v1820
    %v1977 = vpack.c.b16 %v1834, %v1821
    %v1978 = vpack.c.b16 %v1848, %v1835
    %v1979 = vpack.c.b16 %v1849, %v1836
    %v1980 = vpack.c.b16 %v1850, %v1837
    %v1981 = vpack.c.b16 %v1851, %v1838
    %v1982 = vpack.c.b16 %v1852, %v1839
    %v1983 = vpack.c.b16 %v1853, %v1840
    %v1984 = vpack.c.b16 %v1854, %v1841
    %v1985 = vpack.c.b16 %v1855, %v1842
    %v1986 = vpack.c.b16 %v1856, %v1843
    %v1987 = vpack.c.b16 %v1857, %v1844
    %v1988 = vpack.c.b16 %v1858, %v1845
    %v1989 = vpack.c.b16 %v1859, %v1846
    %v1990 = vpack.c.b16 %v1860, %v1847
    %v1991 = vpack.c.b16 %v1874, %v1861
    %v1992 = vpack.c.b16 %v1875, %v1862
    %v1993 = vpack.c.b16 %v1876, %v1863
    %v1994 = vpack.c.b16 %v1877, %v1864
    %v1995 = vpack.c.b16 %v1878, %v1865
    %v1996 = vpack.c.b16 %v1879, %v1866
    %v1997 = vpack.c.b16 %v1880, %v1867
    %v1998 = vpack.c.b16 %v1881, %v1868
    %v1999 = vpack.c.b16 %v1882, %v1869
    %v2000 = vpack.c.b16 %v1883, %v1870
    %v2001 = vpack.c.b16 %v1884, %v1871
    %v2002 = vpack.c.b16 %v1885, %v1872
    %v2003 = vpack.c.b16 %v1886, %v1873
    %v2004 = vpack.c.b16 %v1900, %v1887
    %v2005 = vpack.c.b16 %v1901, %v1888
    %v2006 = vpack.c.b16 %v1902, %v1889
    %v2007 = vpack.c.b16 %v1903, %v1890
    %v2008 = vpack.c.b16 %v1904, %v1891
    %v2009 = vpack.c.b16 %v1905, %v1892
    %v2010 = vpack.c.b16 %v1906, %v1893
    %v2011 = vpack.c.b16 %v1907, %v1894
    %v2012 = vpack.c.b16 %v1908, %v1895
    %v2013 = vpack.c.b16 %v1909, %v1896
    %v2014 = vpack.c.b16 %v1910, %v1897
    %v2015 = vpack.c.b16 %v1911, %v1898
    %v2016 = vpack.c.b16 %v1912, %v1899
    %2121 = vmatprep.subr.bf16.mxu0 %v2005
    %2122 = vmatpush1.bf16.msra.mxu0 %v2004
    %2123 = vmatprep.subr.bf16.mxu0 %v1992
    %2124 = vmatpush1.bf16.msra.mxu0 %v1991
    %2125 = vmatprep.subr.bf16.mxu0 %v1979
    %2126 = vmatpush1.bf16.msra.mxu0 %v1978
    %2127 = vmatprep.subr.bf16.mxu0 %v1966
    %2128 = vmatpush1.bf16.msra.mxu0 %v1965
    %2129 = vmatprep.subr.bf16.mxu0 %v1953
    %2130 = vmatpush1.bf16.msra.mxu0 %v1952
    %2131 = vmatprep.subr.bf16.mxu0 %v1940
    %2132 = vmatpush1.bf16.msra.mxu0 %v1939
    %2133 = vmatprep.subr.bf16.mxu0 %v1927
    %2134 = vmatpush1.bf16.msra.mxu0 %v1926
    %2135 = vmatprep.subr.bf16.mxu0 %v1914
    %2136 = vmatpush1.bf16.msra.mxu0 %v1913
    %2137 = vmatprep.subr.bf16.mxu0 0
    %2138 = vmatpush2.bf16.msra.mxu0 0
    %2139 = vmatprep.subr.bf16.mxu0 0
    %2140 = vmatpush2.bf16.msra.mxu0 0
    %2141 = vmatprep.subr.bf16.mxu0 0
    %2142 = vmatpush2.bf16.msra.mxu0 0
    %2143 = vmatprep.subr.bf16.mxu0 0
    %2144 = vmatpush2.bf16.msra.mxu0 0
    %2145 = vmatprep.subr.bf16.mxu0 0
    %2146 = vmatpush2.bf16.msra.mxu0 0
    %2147 = vmatprep.subr.bf16.mxu0 0
    %2148 = vmatpush2.bf16.msra.mxu0 0
    %2149 = vmatprep.subr.bf16.mxu0 0
    %2150 = vmatpush2.bf16.msra.mxu0 0
    %2151 = vmatprep.subr.bf16.mxu0 0
    %2152 = vmatpush2.bf16.msra.mxu0 0
    %2153 = vmatprep.mubr.bf16.mxu0 0
    %2154 = vmatmul.mubr.bf16.gmra.mxu0 %v1411
    %v2155 = vpop.f32.mrf.mxu0
    %v2156 = vadd.f32 %v1531, %v2155
    %v2157 = vpop.f32.mrf.mxu0
    %v2158 = vadd.f32 %v1535, %v2157
    %v2159 = vpop.f32.mrf.mxu0
    %v2160 = vpop.f32.mrf.mxu0
    %2161 = vdwg.mxu0
    %2162 = vmatprep.subr.bf16.mxu0 %v2007
    %2163 = vmatpush1.bf16.msra.mxu0 %v2006
    %2164 = vmatprep.subr.bf16.mxu0 %v1994
    %2165 = vmatpush1.bf16.msra.mxu0 %v1993
    %2166 = vmatprep.subr.bf16.mxu0 %v1981
    %2167 = vmatpush1.bf16.msra.mxu0 %v1980
    %2168 = vmatprep.subr.bf16.mxu0 %v1968
    %2169 = vmatpush1.bf16.msra.mxu0 %v1967
    %2170 = vmatprep.subr.bf16.mxu0 %v1955
    %2171 = vmatpush1.bf16.msra.mxu0 %v1954
    %2172 = vmatprep.subr.bf16.mxu0 %v1942
    %2173 = vmatpush1.bf16.msra.mxu0 %v1941
    %2174 = vmatprep.subr.bf16.mxu0 %v1929
    %2175 = vmatpush1.bf16.msra.mxu0 %v1928
    %2176 = vmatprep.subr.bf16.mxu0 %v1916
    %2177 = vmatpush1.bf16.msra.mxu0 %v1915
    %2178 = vmatprep.subr.bf16.mxu0 0
    %2179 = vmatpush2.bf16.msra.mxu0 0
    %2180 = vmatprep.subr.bf16.mxu0 0
    %2181 = vmatpush2.bf16.msra.mxu0 0
    %2182 = vmatprep.subr.bf16.mxu0 0
    %2183 = vmatpush2.bf16.msra.mxu0 0
    %2184 = vmatprep.subr.bf16.mxu0 0
    %2185 = vmatpush2.bf16.msra.mxu0 0
    %2186 = vmatprep.subr.bf16.mxu0 0
    %2187 = vmatpush2.bf16.msra.mxu0 0
    %2188 = vmatprep.subr.bf16.mxu0 0
    %2189 = vmatpush2.bf16.msra.mxu0 0
    %2190 = vmatprep.subr.bf16.mxu0 0
    %2191 = vmatpush2.bf16.msra.mxu0 0
    %2192 = vmatprep.subr.bf16.mxu0 0
    %2193 = vmatpush2.bf16.msra.mxu0 0
    %2194 = vmatprep.mubr.bf16.mxu0 0
    %2195 = vmatmul.mubr.bf16.gmra.mxu0 %v1411
    %v2196 = vpop.f32.mrf.mxu0
    %v2197 = vadd.f32 %v1539, %v2196
    %v2198 = vpop.f32.mrf.mxu0
    %v2199 = vadd.f32 %v1543, %v2198
    %v2200 = vpop.f32.mrf.mxu0
    %v2201 = vpop.f32.mrf.mxu0
    %2202 = vdwg.mxu0
    %2203 = vmatprep.subr.bf16.mxu0 %v2009
    %2204 = vmatpush1.bf16.msra.mxu0 %v2008
    %2205 = vmatprep.subr.bf16.mxu0 %v1996
    %2206 = vmatpush1.bf16.msra.mxu0 %v1995
    %2207 = vmatprep.subr.bf16.mxu0 %v1983
    %2208 = vmatpush1.bf16.msra.mxu0 %v1982
    %2209 = vmatprep.subr.bf16.mxu0 %v1970
    %2210 = vmatpush1.bf16.msra.mxu0 %v1969
    %2211 = vmatprep.subr.bf16.mxu0 %v1957
    %2212 = vmatpush1.bf16.msra.mxu0 %v1956
    %2213 = vmatprep.subr.bf16.mxu0 %v1944
    %2214 = vmatpush1.bf16.msra.mxu0 %v1943
    %2215 = vmatprep.subr.bf16.mxu0 %v1931
    %2216 = vmatpush1.bf16.msra.mxu0 %v1930
    %2217 = vmatprep.subr.bf16.mxu0 %v1918
    %2218 = vmatpush1.bf16.msra.mxu0 %v1917
    %2219 = vmatprep.subr.bf16.mxu0 0
    %2220 = vmatpush2.bf16.msra.mxu0 0
    %2221 = vmatprep.subr.bf16.mxu0 0
    %2222 = vmatpush2.bf16.msra.mxu0 0
    %2223 = vmatprep.subr.bf16.mxu0 0
    %2224 = vmatpush2.bf16.msra.mxu0 0
    %2225 = vmatprep.subr.bf16.mxu0 0
    %2226 = vmatpush2.bf16.msra.mxu0 0
    %2227 = vmatprep.subr.bf16.mxu0 0
    %2228 = vmatpush2.bf16.msra.mxu0 0
    %2229 = vmatprep.subr.bf16.mxu0 0
    %2230 = vmatpush2.bf16.msra.mxu0 0
    %2231 = vmatprep.subr.bf16.mxu0 0
    %2232 = vmatpush2.bf16.msra.mxu0 0
    %2233 = vmatprep.subr.bf16.mxu0 0
    %2234 = vmatpush2.bf16.msra.mxu0 0
    %2235 = vmatprep.mubr.bf16.mxu0 0
    %2236 = vmatmul.mubr.bf16.gmra.mxu0 %v1411
    %v2237 = vpop.f32.mrf.mxu0
    %v2238 = vadd.f32 %v1547, %v2237
    %v2239 = vpop.f32.mrf.mxu0
    %v2240 = vadd.f32 %v1551, %v2239
    %v2241 = vpop.f32.mrf.mxu0
    %v2242 = vpop.f32.mrf.mxu0
    %2243 = vdwg.mxu0
    %2244 = vmatprep.subr.bf16.mxu0 %v2011
    %2245 = vmatpush1.bf16.msra.mxu0 %v2010
    %2246 = vmatprep.subr.bf16.mxu0 %v1998
    %2247 = vmatpush1.bf16.msra.mxu0 %v1997
    %2248 = vmatprep.subr.bf16.mxu0 %v1985
    %2249 = vmatpush1.bf16.msra.mxu0 %v1984
    %2250 = vmatprep.subr.bf16.mxu0 %v1972
    %2251 = vmatpush1.bf16.msra.mxu0 %v1971
    %2252 = vmatprep.subr.bf16.mxu0 %v1959
    %2253 = vmatpush1.bf16.msra.mxu0 %v1958
    %2254 = vmatprep.subr.bf16.mxu0 %v1946
    %2255 = vmatpush1.bf16.msra.mxu0 %v1945
    %2256 = vmatprep.subr.bf16.mxu0 %v1933
    %2257 = vmatpush1.bf16.msra.mxu0 %v1932
    %2258 = vmatprep.subr.bf16.mxu0 %v1920
    %2259 = vmatpush1.bf16.msra.mxu0 %v1919
    %2260 = vmatprep.subr.bf16.mxu0 0
    %2261 = vmatpush2.bf16.msra.mxu0 0
    %2262 = vmatprep.subr.bf16.mxu0 0
    %2263 = vmatpush2.bf16.msra.mxu0 0
    %2264 = vmatprep.subr.bf16.mxu0 0
    %2265 = vmatpush2.bf16.msra.mxu0 0
    %2266 = vmatprep.subr.bf16.mxu0 0
    %2267 = vmatpush2.bf16.msra.mxu0 0
    %2268 = vmatprep.subr.bf16.mxu0 0
    %2269 = vmatpush2.bf16.msra.mxu0 0
    %2270 = vmatprep.subr.bf16.mxu0 0
    %2271 = vmatpush2.bf16.msra.mxu0 0
    %2272 = vmatprep.subr.bf16.mxu0 0
    %2273 = vmatpush2.bf16.msra.mxu0 0
    %2274 = vmatprep.subr.bf16.mxu0 0
    %2275 = vmatpush2.bf16.msra.mxu0 0
    %2276 = vmatprep.mubr.bf16.mxu0 0
    %2277 = vmatmul.mubr.bf16.gmra.mxu0 %v1411
    %v2278 = vpop.f32.mrf.mxu0
    %v2279 = vadd.f32 %v1555, %v2278
    %v2280 = vpop.f32.mrf.mxu0
    %v2281 = vadd.f32 %v1559, %v2280
    %v2282 = vpop.f32.mrf.mxu0
    %v2283 = vpop.f32.mrf.mxu0
    %2284 = vdwg.mxu0
    %2285 = vmatprep.subr.bf16.mxu0 %v2013
    %2286 = vmatpush1.bf16.msra.mxu0 %v2012
    %2287 = vmatprep.subr.bf16.mxu0 %v2000
    %2288 = vmatpush1.bf16.msra.mxu0 %v1999
    %2289 = vmatprep.subr.bf16.mxu0 %v1987
    %2290 = vmatpush1.bf16.msra.mxu0 %v1986
    %2291 = vmatprep.subr.bf16.mxu0 %v1974
    %2292 = vmatpush1.bf16.msra.mxu0 %v1973
    %2293 = vmatprep.subr.bf16.mxu0 %v1961
    %2294 = vmatpush1.bf16.msra.mxu0 %v1960
    %2295 = vmatprep.subr.bf16.mxu0 %v1948
    %2296 = vmatpush1.bf16.msra.mxu0 %v1947
    %2297 = vmatprep.subr.bf16.mxu0 %v1935
    %2298 = vmatpush1.bf16.msra.mxu0 %v1934
    %2299 = vmatprep.subr.bf16.mxu0 %v1922
    %2300 = vmatpush1.bf16.msra.mxu0 %v1921
    %2301 = vmatprep.subr.bf16.mxu0 0
    %2302 = vmatpush2.bf16.msra.mxu0 0
    %2303 = vmatprep.subr.bf16.mxu0 0
    %2304 = vmatpush2.bf16.msra.mxu0 0
    %2305 = vmatprep.subr.bf16.mxu0 0
    %2306 = vmatpush2.bf16.msra.mxu0 0
    %2307 = vmatprep.subr.bf16.mxu0 0
    %2308 = vmatpush2.bf16.msra.mxu0 0
    %2309 = vmatprep.subr.bf16.mxu0 0
    %2310 = vmatpush2.bf16.msra.mxu0 0
    %2311 = vmatprep.subr.bf16.mxu0 0
    %2312 = vmatpush2.bf16.msra.mxu0 0
    %2313 = vmatprep.subr.bf16.mxu0 0
    %2314 = vmatpush2.bf16.msra.mxu0 0
    %2315 = vmatprep.subr.bf16.mxu0 0
    %2316 = vmatpush2.bf16.msra.mxu0 0
    %2317 = vmatprep.mubr.bf16.mxu0 0
    %2318 = vmatmul.mubr.bf16.gmra.mxu0 %v1411
    %v2319 = vpop.f32.mrf.mxu0
    %v2320 = vadd.f32 %v1563, %v2319
    %v2321 = vpop.f32.mrf.mxu0
    %v2322 = vadd.f32 %v1567, %v2321
    %v2323 = vpop.f32.mrf.mxu0
    %v2324 = vpop.f32.mrf.mxu0
    %2325 = vdwg.mxu0
    %2326 = vmatprep.subr.bf16.mxu0 %v2015
    %2327 = vmatpush1.bf16.msra.mxu0 %v2014
    %2328 = vmatprep.subr.bf16.mxu0 %v2002
    %2329 = vmatpush1.bf16.msra.mxu0 %v2001
    %2330 = vmatprep.subr.bf16.mxu0 %v1989
    %2331 = vmatpush1.bf16.msra.mxu0 %v1988
    %2332 = vmatprep.subr.bf16.mxu0 %v1976
    %2333 = vmatpush1.bf16.msra.mxu0 %v1975
    %2334 = vmatprep.subr.bf16.mxu0 %v1963
    %2335 = vmatpush1.bf16.msra.mxu0 %v1962
    %2336 = vmatprep.subr.bf16.mxu0 %v1950
    %2337 = vmatpush1.bf16.msra.mxu0 %v1949
    %2338 = vmatprep.subr.bf16.mxu0 %v1937
    %2339 = vmatpush1.bf16.msra.mxu0 %v1936
    %2340 = vmatprep.subr.bf16.mxu0 %v1924
    %2341 = vmatpush1.bf16.msra.mxu0 %v1923
    %2342 = vmatprep.subr.bf16.mxu0 0
    %2343 = vmatpush2.bf16.msra.mxu0 0
    %2344 = vmatprep.subr.bf16.mxu0 0
    %2345 = vmatpush2.bf16.msra.mxu0 0
    %2346 = vmatprep.subr.bf16.mxu0 0
    %2347 = vmatpush2.bf16.msra.mxu0 0
    %2348 = vmatprep.subr.bf16.mxu0 0
    %2349 = vmatpush2.bf16.msra.mxu0 0
    %2350 = vmatprep.subr.bf16.mxu0 0
    %2351 = vmatpush2.bf16.msra.mxu0 0
    %2352 = vmatprep.subr.bf16.mxu0 0
    %2353 = vmatpush2.bf16.msra.mxu0 0
    %2354 = vmatprep.subr.bf16.mxu0 0
    %2355 = vmatpush2.bf16.msra.mxu0 0
    %2356 = vmatprep.subr.bf16.mxu0 0
    %2357 = vmatpush2.bf16.msra.mxu0 0
    %2358 = vmatprep.mubr.bf16.mxu0 0
    %2359 = vmatmul.mubr.bf16.gmra.mxu0 %v1411
    %v2360 = vpop.f32.mrf.mxu0
    %v2361 = vadd.f32 %v1571, %v2360
    %v2362 = vpop.f32.mrf.mxu0
    %v2363 = vadd.f32 %v1575, %v2362
    %v2364 = vpop.f32.mrf.mxu0
    %v2365 = vpop.f32.mrf.mxu0
    %2366 = vdwg.mxu0
    %2367 = vmatprep.subr.bf16.mxu0 0
    %2368 = vmatpush1.bf16.msra.mxu0 %v2016
    %2369 = vmatprep.subr.bf16.mxu0 0
    %2370 = vmatpush1.bf16.msra.mxu0 %v2003
    %2371 = vmatprep.subr.bf16.mxu0 0
    %2372 = vmatpush1.bf16.msra.mxu0 %v1990
    %2373 = vmatprep.subr.bf16.mxu0 0
    %2374 = vmatpush1.bf16.msra.mxu0 %v1977
    %2375 = vmatprep.subr.bf16.mxu0 0
    %2376 = vmatpush1.bf16.msra.mxu0 %v1964
    %2377 = vmatprep.subr.bf16.mxu0 0
    %2378 = vmatpush1.bf16.msra.mxu0 %v1951
    %2379 = vmatprep.subr.bf16.mxu0 0
    %2380 = vmatpush1.bf16.msra.mxu0 %v1938
    %2381 = vmatprep.subr.bf16.mxu0 0
    %2382 = vmatpush1.bf16.msra.mxu0 %v1925
    %2383 = vmatprep.subr.bf16.mxu0 0
    %2384 = vmatpush2.bf16.msra.mxu0 0
    %2385 = vmatprep.subr.bf16.mxu0 0
    %2386 = vmatpush2.bf16.msra.mxu0 0
    %2387 = vmatprep.subr.bf16.mxu0 0
    %2388 = vmatpush2.bf16.msra.mxu0 0
    %2389 = vmatprep.subr.bf16.mxu0 0
    %2390 = vmatpush2.bf16.msra.mxu0 0
    %2391 = vmatprep.subr.bf16.mxu0 0
    %2392 = vmatpush2.bf16.msra.mxu0 0
    %2393 = vmatprep.subr.bf16.mxu0 0
    %2394 = vmatpush2.bf16.msra.mxu0 0
    %2395 = vmatprep.subr.bf16.mxu0 0
    %2396 = vmatpush2.bf16.msra.mxu0 0
    %2397 = vmatprep.subr.bf16.mxu0 0
    %2398 = vmatpush2.bf16.msra.mxu0 0
    %2399 = vmatprep.mubr.bf16.mxu0 0
    %2400 = vmatmul.mubr.bf16.gmra.mxu0 %v1411
    %v2401 = vpop.f32.mrf.mxu0
    %v2402 = vadd.f32 %v1579, %v2401
    %v2403 = vpop.f32.mrf.mxu0
    %v2404 = vpop.f32.mrf.mxu0
    %v2405 = vpop.f32.mrf.mxu0
    %2406 = vdwg.mxu0
    %v2407 = vmax.f32 %v2156, 0.0
    %v2408 = vmax.f32 %v2158, 0.0
    %v2409 = vmax.f32 %v2197, 0.0
    %v2410 = vmax.f32 %v2199, 0.0
    %v2411 = vmax.f32 %v2238, 0.0
    %v2412 = vmax.f32 %v2240, 0.0
    %v2413 = vmax.f32 %v2279, 0.0
    %v2414 = vmax.f32 %v2281, 0.0
    %v2415 = vmax.f32 %v2320, 0.0
    %v2416 = vmax.f32 %v2322, 0.0
    %v2417 = vmax.f32 %v2361, 0.0
    %v2418 = vmax.f32 %v2363, 0.0
    %v2419 = vmax.f32 %v2402, 0.0
    %v2420 = vpack.c.bf16 %v2407, %v2407
    %v2421 = vpack.c.bf16 %v2408, %v2408
    %v2422 = vpack.c.bf16 %v2409, %v2409
    %v2423 = vpack.c.bf16 %v2410, %v2410
    %v2424 = vpack.c.bf16 %v2411, %v2411
    %v2425 = vpack.c.bf16 %v2412, %v2412
    %v2426 = vpack.c.bf16 %v2413, %v2413
    %v2427 = vpack.c.bf16 %v2414, %v2414
    %v2428 = vpack.c.bf16 %v2415, %v2415
    %v2429 = vpack.c.bf16 %v2416, %v2416
    %v2430 = vpack.c.bf16 %v2417, %v2417
    %v2431 = vpack.c.bf16 %v2418, %v2418
    %v2432 = vpack.c.bf16 %v2419, %v2419
    %v2446 = vcombine.low %v2420, %v2421
    %v2447 = vcombine.low %v2422, %v2423
    %v2448 = vcombine.low %v2424, %v2425
    %v2449 = vcombine.low %v2426, %v2427
    %v2451 = vunpack.c.l.s4 1966171168
    %v2452 = vunpack.c.0.s8 %v2451
    %v2453 = vlaneseq
    %v2454 = vshrl.u32 %v2453, 7
    %v2455 = vsub.s32 %v2452, %v2454
    %v2456 = vrot.slane %v2446, %v2455
    %v2458 = vunpack.c.l.s4 1966171168
    %v2459 = vunpack.c.0.s8 %v2458
    %v2460 = vlaneseq
    %v2461 = vshrl.u32 %v2460, 7
    %v2462 = vsub.s32 %v2459, %v2461
    %v2463 = vrot.slane %v2447, %v2462
    %v2465 = vunpack.c.l.s4 1966171168
    %v2466 = vunpack.c.0.s8 %v2465
    %v2467 = vlaneseq
    %v2468 = vshrl.u32 %v2467, 7
    %v2469 = vsub.s32 %v2466, %v2468
    %v2470 = vrot.slane %v2448, %v2469
    %v2472 = vunpack.c.l.s4 1966171168
    %v2473 = vunpack.c.0.s8 %v2472
    %v2474 = vlaneseq
    %v2475 = vshrl.u32 %v2474, 7
    %v2476 = vsub.s32 %v2473, %v2475
    %v2477 = vrot.slane %v2449, %v2476
    %v2478 = vcombine.low %v2456, %v2463
    %v2479 = vcombine.low %v2470, %v2477
    %v2481 = vunpack.c.l.s4 1966171168
    %v2482 = vunpack.c.0.s8 %v2481
    %v2483 = vlaneseq
    %v2484 = vshrl.u32 %v2483, 7
    %v2485 = vsub.s32 %v2482, %v2484
    %v2486 = vrot.slane %v2478, %v2485
    %v2488 = vunpack.c.l.s4 1966171168
    %v2489 = vunpack.c.0.s8 %v2488
    %v2490 = vlaneseq
    %v2491 = vshrl.u32 %v2490, 7
    %v2492 = vsub.s32 %v2489, %v2491
    %v2493 = vrot.slane %v2479, %v2492
    %v2494 = vcombine.low %v2486, %v2493
    %v2495 = vcombine.low %v2428, %v2429
    %v2496 = vcombine.low %v2430, %v2431
    %v2498 = vunpack.c.l.s4 1966171168
    %v2499 = vunpack.c.0.s8 %v2498
    %v2500 = vlaneseq
    %v2501 = vshrl.u32 %v2500, 7
    %v2502 = vsub.s32 %v2499, %v2501
    %v2503 = vrot.slane %v2495, %v2502
    %v2505 = vunpack.c.l.s4 1966171168
    %v2506 = vunpack.c.0.s8 %v2505
    %v2507 = vlaneseq
    %v2508 = vshrl.u32 %v2507, 7
    %v2509 = vsub.s32 %v2506, %v2508
    %v2510 = vrot.slane %v2496, %v2509
    %v2512 = vunpack.c.l.s4 1966171168
    %v2513 = vunpack.c.0.s8 %v2512
    %v2514 = vlaneseq
    %v2515 = vshrl.u32 %v2514, 7
    %v2516 = vsub.s32 %v2513, %v2515
    %v2517 = vrot.slane %v2432, %v2516
    %v2518 = vcombine.low %v2503, %v2510
    %v2520 = vunpack.c.l.s4 1966171168
    %v2521 = vunpack.c.0.s8 %v2520
    %v2522 = vlaneseq
    %v2523 = vshrl.u32 %v2522, 7
    %v2524 = vsub.s32 %v2521, %v2523
    %v2525 = vrot.slane %v2518, %v2524
    %v2527 = vunpack.c.l.s4 1966171168
    %v2528 = vunpack.c.0.s8 %v2527
    %v2529 = vlaneseq
    %v2530 = vshrl.u32 %v2529, 7
    %v2531 = vsub.s32 %v2528, %v2530
    %v2532 = vrot.slane %v2517, %v2531
    %v2533 = vcombine.low %v2525, %v2532
    %2536 = vst [vmem:[%s12] sm:$0xff] %v2494
    %vm2537 = vcmask 1040384
    %vm2538 = vcmask 1041409
    %vm2539 = vmor %vm2538, %vm2537
    %vm2540 = vcmask 1042434
    %vm2541 = vmor %vm2540, %vm2539
    %vm2542 = vcmask 1043459
    %vm2543 = vmor %vm2542, %vm2541
    %vm2544 = vcmask 258052
    %vm2545 = vmor %vm2544, %vm2543
    %2546 = vst.msk [vmem:[%s12 + $0x8] sm:$0x1f] %vm2545, %v2533
    // Predicated region
    $region42: #{vae_forward.7} parent=1 // pred_check
      _
    $region43: #{vae_forward.7} parent=1 // pred_check_branch
      %2548 = sbr.rel (0) target = $region45
    $region44: #{vae_forward.7} parent=1 // pred_region
      %s2550 = ssub.s32 32, 32
      %2551 = vsyncadd [#allocation3], %s2550
      %s2553 = sshll.u32 [#allocation2], 4
      %s2554 = int_to_ptr.vmem [resolvable:$true] %s2553
      %2556 = dma.vmem_to_hbm [thread:$0]  %s2554, 32, %s10, [#allocation3]
    $region45: #{vae_forward.7} parent=1 // pred_fallthru
      _
    // Predicated region
    $region46: #{vae_forward.7} parent=1 // pred_check
      _
    $region47: #{vae_forward.7} parent=1 // pred_check_branch
      %2558 = sbr.rel (0) target = $region49
    $region48: #{vae_forward.7} parent=1 // pred_region
      %s2560 = ssub.s32 32, 32
      %2561 = vsyncadd [#allocation5], %s2560
      %s2563 = sshll.u32 [#allocation4], 4
      %s2564 = int_to_ptr.vmem [resolvable:$true] %s2563
      %2566 = dma.vmem_to_hbm [thread:$0]  %s2564, 32, %s11, [#allocation5]
    $region49: #{vae_forward.7} parent=1 // pred_fallthru
      _
    // Predicated region
    $region50: #{vae_forward.7} parent=1 // pred_check
      _
    $region51: #{vae_forward.7} parent=1 // pred_check_branch
      %2568 = sbr.rel (0) target = $region53
    $region52: #{vae_forward.7} parent=1 // pred_region
      _
    $region53: #{vae_forward.7} parent=1 // pred_fallthru
      _
    // Predicated region
    $region54: #{vae_forward.7} parent=1 // pred_check
      _
    $region55: #{vae_forward.7} parent=1 // pred_check_branch
      %2570 = sbr.rel (0) target = $region57
    $region56: #{vae_forward.7} parent=1 // pred_region
      %2571 = dma.done [#allocation3], 32
    $region57: #{vae_forward.7} parent=1 // pred_fallthru
      _
    // Predicated region
    $region58: #{vae_forward.7} parent=1 // pred_check
      _
    $region59: #{vae_forward.7} parent=1 // pred_check_branch
      %2573 = sbr.rel (0) target = $region61
    $region60: #{vae_forward.7} parent=1 // pred_region
      %2574 = dma.done [#allocation5], 32
    $region61: #{vae_forward.7} parent=1 // pred_fallthru
      _
    // Predicated region
    $region62: #{vae_forward.7} parent=1 // pred_check
      _
    $region63: #{vae_forward.7} parent=1 // pred_check_branch
      %2576 = sbr.rel (0) target = $region65
    $region64: #{vae_forward.7} parent=1 // pred_region
      _
    $region65: #{vae_forward.7} parent=1 // pred_fallthru
      _
    %2577 = vsyncpa [#allocation3], 1
    %2578 = vsyncpa [#allocation5], 1

// kernel: vae_forward.8
$region0: #{vae_forward.8}
  #allocation0 [shape = 'u32[]', space=smem, size = 0x4, offset = 0x4, fixed_abs, tag = 'smem constant byte address 0x4 - core index']
  #allocation1 [shape = 'u32[144,128]{1,0:T(1,128)}', space=vmem, size = 0x12000, scoped, tag = 'internal scratch']
  %s0 = inlined_call_operand.vmem [shape: bf16[16,512], index: 0, kind: input, shape index: {}]
  %s1 = inlined_call_operand.vmem [shape: bf16[512,392], index: 1, kind: input, shape index: {}]
  %s2 = inlined_call_operand.vmem [shape: f32[16,1], index: 2, kind: input, shape index: {}]
  %s3 = inlined_call_operand.vmem [shape: bf16[16,392], index: 3, kind: output, shape index: {}]
  %s4 = sld [smem:[#allocation0]]
  $region22: #{vae_forward.8} parent=0
    _
  %s6 = ssub.s32 1, %s4
  %s7 = scalar_select 0, %s6, %s4
  // Predicated region
  $region2: #{vae_forward.8} parent=0 // pred_check
    _
  $region3: #{vae_forward.8} parent=0 // pred_check_branch
    %9 = sbr.rel (0) target = $region5
  $region4: #{vae_forward.8} parent=0 // pred_region
    _
  $region5: #{vae_forward.8} parent=0 // pred_fallthru
    _
  // Predicated region
  $region6: #{vae_forward.8} parent=0 // pred_check
    _
  $region7: #{vae_forward.8} parent=0 // pred_check_branch
    %11 = sbr.rel (0) target = $region9
  $region8: #{vae_forward.8} parent=0 // pred_region
    _
  $region9: #{vae_forward.8} parent=0 // pred_fallthru
    _
  // Predicated region
  $region10: #{vae_forward.8} parent=0 // pred_check
    _
  $region11: #{vae_forward.8} parent=0 // pred_check_branch
    %13 = sbr.rel (0) target = $region13
  $region12: #{vae_forward.8} parent=0 // pred_region
    _
  $region13: #{vae_forward.8} parent=0 // pred_fallthru
    _
  %v14 = vld [vmem:[%s0] sm:$0xff]
  %v15 = vld [vmem:[%s0 + $0x8] sm:$0xff]
  %v16 = vld [vmem:[%s0 + $0x10] sm:$0xff]
  %v17 = vld [vmem:[%s0 + $0x18] sm:$0xff]
  %v18 = vld [vmem:[%s1] sm:$0xff]
  %v19 = vld [vmem:[%s1 + $0x8] sm:$0xff]
  %v20 = vld [vmem:[%s1 + $0x10] sm:$0xff]
  %v21 = vld [vmem:[%s1 + $0x18] sm:$0xff]
  %v22 = vld [vmem:[%s1 + $0x20] sm:$0xff]
  %v23 = vld [vmem:[%s1 + $0x28] sm:$0xff]
  %v24 = vld [vmem:[%s1 + $0x30] sm:$0xff]
  %v25 = vld [vmem:[%s1 + $0x38] sm:$0xff]
  %v26 = vld [vmem:[%s1 + $0x40] sm:$0xff]
  %v27 = vld [vmem:[%s1 + $0x48] sm:$0xff]
  %v28 = vld [vmem:[%s1 + $0x50] sm:$0xff]
  %v29 = vld [vmem:[%s1 + $0x58] sm:$0xff]
  %v30 = vld [vmem:[%s1 + $0x60] sm:$0xff]
  %v31 = vld [vmem:[%s1 + $0x68] sm:$0xff]
  %v32 = vld [vmem:[%s1 + $0x70] sm:$0xff]
  %v33 = vld [vmem:[%s1 + $0x78] sm:$0xff]
  %v34 = vld [vmem:[%s1 + $0x80] sm:$0xff]
  %v35 = vld [vmem:[%s1 + $0x88] sm:$0xff]
  %v36 = vld [vmem:[%s1 + $0x90] sm:$0xff]
  %v37 = vld [vmem:[%s1 + $0x98] sm:$0xff]
  %v38 = vld [vmem:[%s1 + $0xa0] sm:$0xff]
  %v39 = vld [vmem:[%s1 + $0xa8] sm:$0xff]
  %v40 = vld [vmem:[%s1 + $0xb0] sm:$0xff]
  %v41 = vld [vmem:[%s1 + $0xb8] sm:$0xff]
  %v42 = vld [vmem:[%s1 + $0xc0] sm:$0xff]
  %v43 = vld [vmem:[%s1 + $0xc8] sm:$0xff]
  %v44 = vld [vmem:[%s1 + $0xd0] sm:$0xff]
  %v45 = vld [vmem:[%s1 + $0xd8] sm:$0xff]
  %v46 = vld [vmem:[%s1 + $0xe0] sm:$0xff]
  %v47 = vld [vmem:[%s1 + $0xe8] sm:$0xff]
  %v48 = vld [vmem:[%s1 + $0xf0] sm:$0xff]
  %v49 = vld [vmem:[%s1 + $0xf8] sm:$0xff]
  %v50 = vld [vmem:[%s1 + $0x100] sm:$0xff]
  %v51 = vld [vmem:[%s1 + $0x108] sm:$0xff]
  %v52 = vld [vmem:[%s1 + $0x110] sm:$0xff]
  %v53 = vld [vmem:[%s1 + $0x118] sm:$0xff]
  %v54 = vld [vmem:[%s1 + $0x120] sm:$0xff]
  %v55 = vld [vmem:[%s1 + $0x128] sm:$0xff]
  %v56 = vld [vmem:[%s1 + $0x130] sm:$0xff]
  %v57 = vld [vmem:[%s1 + $0x138] sm:$0xff]
  %v58 = vld [vmem:[%s1 + $0x140] sm:$0xff]
  %v59 = vld [vmem:[%s1 + $0x148] sm:$0xff]
  %v60 = vld [vmem:[%s1 + $0x150] sm:$0xff]
  %v61 = vld [vmem:[%s1 + $0x158] sm:$0xff]
  %v62 = vld [vmem:[%s1 + $0x160] sm:$0xff]
  %v63 = vld [vmem:[%s1 + $0x168] sm:$0xff]
  %v64 = vld [vmem:[%s1 + $0x170] sm:$0xff]
  %v65 = vld [vmem:[%s1 + $0x178] sm:$0xff]
  %v66 = vld [vmem:[%s1 + $0x180] sm:$0xff]
  %v67 = vld [vmem:[%s1 + $0x188] sm:$0xff]
  %v68 = vld [vmem:[%s1 + $0x190] sm:$0xff]
  %v69 = vld [vmem:[%s1 + $0x198] sm:$0xff]
  %v70 = vld [vmem:[%s1 + $0x1a0] sm:$0xff]
  %v71 = vld [vmem:[%s1 + $0x1a8] sm:$0xff]
  %v72 = vld [vmem:[%s1 + $0x1b0] sm:$0xff]
  %v73 = vld [vmem:[%s1 + $0x1b8] sm:$0xff]
  %v74 = vld [vmem:[%s1 + $0x1c0] sm:$0xff]
  %v75 = vld [vmem:[%s1 + $0x1c8] sm:$0xff]
  %v76 = vld [vmem:[%s1 + $0x1d0] sm:$0xff]
  %v77 = vld [vmem:[%s1 + $0x1d8] sm:$0xff]
  %v78 = vld [vmem:[%s1 + $0x1e0] sm:$0xff]
  %v79 = vld [vmem:[%s1 + $0x1e8] sm:$0xff]
  %v80 = vld [vmem:[%s1 + $0x1f0] sm:$0xff]
  %v81 = vld [vmem:[%s1 + $0x1f8] sm:$0xff]
  %v82 = vld [vmem:[%s1 + $0x200] sm:$0xff]
  %v83 = vld [vmem:[%s1 + $0x208] sm:$0xff]
  %v84 = vld [vmem:[%s1 + $0x210] sm:$0xff]
  %v85 = vld [vmem:[%s1 + $0x218] sm:$0xff]
  %v86 = vld [vmem:[%s1 + $0x220] sm:$0xff]
  %v87 = vld [vmem:[%s1 + $0x228] sm:$0xff]
  %v88 = vld [vmem:[%s1 + $0x230] sm:$0xff]
  %v89 = vld [vmem:[%s1 + $0x238] sm:$0xff]
  %v90 = vld [vmem:[%s1 + $0x240] sm:$0xff]
  %v91 = vld [vmem:[%s1 + $0x248] sm:$0xff]
  %v92 = vld [vmem:[%s1 + $0x250] sm:$0xff]
  %v93 = vld [vmem:[%s1 + $0x258] sm:$0xff]
  %v94 = vld [vmem:[%s1 + $0x260] sm:$0xff]
  %v95 = vld [vmem:[%s1 + $0x268] sm:$0xff]
  %v96 = vld [vmem:[%s1 + $0x270] sm:$0xff]
  %v97 = vld [vmem:[%s1 + $0x278] sm:$0xff]
  %v98 = vld [vmem:[%s1 + $0x280] sm:$0xff]
  %v99 = vld [vmem:[%s1 + $0x288] sm:$0xff]
  %v100 = vld [vmem:[%s1 + $0x290] sm:$0xff]
  %v101 = vld [vmem:[%s1 + $0x298] sm:$0xff]
  %v102 = vld [vmem:[%s1 + $0x2a0] sm:$0xff]
  %v103 = vld [vmem:[%s1 + $0x2a8] sm:$0xff]
  %v104 = vld [vmem:[%s1 + $0x2b0] sm:$0xff]
  %v105 = vld [vmem:[%s1 + $0x2b8] sm:$0xff]
  %v106 = vld [vmem:[%s1 + $0x2c0] sm:$0xff]
  %v107 = vld [vmem:[%s1 + $0x2c8] sm:$0xff]
  %v108 = vld [vmem:[%s1 + $0x2d0] sm:$0xff]
  %v109 = vld [vmem:[%s1 + $0x2d8] sm:$0xff]
  %v110 = vld [vmem:[%s1 + $0x2e0] sm:$0xff]
  %v111 = vld [vmem:[%s1 + $0x2e8] sm:$0xff]
  %v112 = vld [vmem:[%s1 + $0x2f0] sm:$0xff]
  %v113 = vld [vmem:[%s1 + $0x2f8] sm:$0xff]
  %v114 = vld [vmem:[%s1 + $0x300] sm:$0xff]
  %v115 = vld [vmem:[%s1 + $0x308] sm:$0xff]
  %v116 = vld [vmem:[%s1 + $0x310] sm:$0xff]
  %v117 = vld [vmem:[%s1 + $0x318] sm:$0xff]
  %v118 = vld [vmem:[%s1 + $0x320] sm:$0xff]
  %v119 = vld [vmem:[%s1 + $0x328] sm:$0xff]
  %v120 = vld [vmem:[%s1 + $0x330] sm:$0xff]
  %v121 = vld [vmem:[%s1 + $0x338] sm:$0xff]
  %v122 = vld [vmem:[%s1 + $0x340] sm:$0xff]
  %v123 = vld [vmem:[%s1 + $0x348] sm:$0xff]
  %v124 = vld [vmem:[%s1 + $0x350] sm:$0xff]
  %v125 = vld [vmem:[%s1 + $0x358] sm:$0xff]
  %v126 = vld [vmem:[%s1 + $0x360] sm:$0xff]
  %v127 = vld [vmem:[%s1 + $0x368] sm:$0xff]
  %v128 = vld [vmem:[%s1 + $0x370] sm:$0xff]
  %v129 = vld [vmem:[%s1 + $0x378] sm:$0xff]
  %v130 = vld [vmem:[%s1 + $0x380] sm:$0xff]
  %v131 = vld [vmem:[%s1 + $0x388] sm:$0xff]
  %v132 = vld [vmem:[%s1 + $0x390] sm:$0xff]
  %v133 = vld [vmem:[%s1 + $0x398] sm:$0xff]
  %v134 = vld [vmem:[%s1 + $0x3a0] sm:$0xff]
  %v135 = vld [vmem:[%s1 + $0x3a8] sm:$0xff]
  %v136 = vld [vmem:[%s1 + $0x3b0] sm:$0xff]
  %v137 = vld [vmem:[%s1 + $0x3b8] sm:$0xff]
  %v138 = vld [vmem:[%s1 + $0x3c0] sm:$0xff]
  %v139 = vld [vmem:[%s1 + $0x3c8] sm:$0xff]
  %v140 = vld [vmem:[%s1 + $0x3d0] sm:$0xff]
  %v141 = vld [vmem:[%s1 + $0x3d8] sm:$0xff]
  %v142 = vld [vmem:[%s1 + $0x3e0] sm:$0xff]
  %v143 = vld [vmem:[%s1 + $0x3e8] sm:$0xff]
  %v144 = vld [vmem:[%s1 + $0x3f0] sm:$0xff]
  %v145 = vld [vmem:[%s1 + $0x3f8] sm:$0xff]
  %v146 = vld [vmem:[%s2] sm:$0xff]
  %v147 = vld [vmem:[%s2 + $0x8] sm:$0xff]
  %149 = vset.pattern.permute.xlu0 0
  %150 = vperm.xlu0 %149, %v146
  %v151 = vpop.permute.xlu0 %150
  %154 = vset.pattern.permute.xlu0 0
  %155 = vperm.xlu0 %154, %v147
  %v156 = vpop.permute.xlu0 %155
  %v162 = vunpack.c.l.b16 %v14
  %v163 = vunpack.c.h.b16 %v14
  %v164 = vunpack.c.l.b16 %v15
  %v165 = vunpack.c.h.b16 %v15
  %v166 = vunpack.c.l.b16 %v16
  %v167 = vunpack.c.h.b16 %v16
  %v168 = vunpack.c.l.b16 %v17
  %v169 = vunpack.c.h.b16 %v17
  %v170 = vpack.c.b16 %v166, %v162
  %v171 = vpack.c.b16 %v167, %v163
  %v172 = vpack.c.b16 %v168, %v164
  %v173 = vpack.c.b16 %v169, %v165
  %v306 = vunpack.c.l.b16 %v18
  %v307 = vunpack.c.h.b16 %v18
  %v308 = vunpack.c.l.b16 %v19
  %v309 = vunpack.c.h.b16 %v19
  %v310 = vunpack.c.l.b16 %v20
  %v311 = vunpack.c.h.b16 %v20
  %v312 = vunpack.c.l.b16 %v21
  %v313 = vunpack.c.h.b16 %v21
  %v314 = vunpack.c.l.b16 %v22
  %v315 = vunpack.c.h.b16 %v22
  %v316 = vunpack.c.l.b16 %v23
  %v317 = vunpack.c.h.b16 %v23
  %v318 = vunpack.c.l.b16 %v24
  %v319 = vunpack.c.h.b16 %v24
  %v320 = vunpack.c.l.b16 %v25
  %v321 = vunpack.c.h.b16 %v25
  %v322 = vunpack.c.l.b16 %v26
  %v323 = vunpack.c.h.b16 %v26
  %v324 = vunpack.c.l.b16 %v27
  %v325 = vunpack.c.h.b16 %v27
  %v326 = vunpack.c.l.b16 %v28
  %v327 = vunpack.c.h.b16 %v28
  %v328 = vunpack.c.l.b16 %v29
  %v329 = vunpack.c.h.b16 %v29
  %v330 = vunpack.c.l.b16 %v30
  %v331 = vunpack.c.h.b16 %v30
  %v332 = vunpack.c.l.b16 %v31
  %v333 = vunpack.c.h.b16 %v31
  %v334 = vunpack.c.l.b16 %v32
  %v335 = vunpack.c.h.b16 %v32
  %v336 = vunpack.c.l.b16 %v33
  %v337 = vunpack.c.h.b16 %v33
  %v338 = vunpack.c.l.b16 %v34
  %v339 = vunpack.c.h.b16 %v34
  %v340 = vunpack.c.l.b16 %v35
  %v341 = vunpack.c.h.b16 %v35
  %v342 = vunpack.c.l.b16 %v36
  %v343 = vunpack.c.h.b16 %v36
  %v344 = vunpack.c.l.b16 %v37
  %v345 = vunpack.c.h.b16 %v37
  %v346 = vunpack.c.l.b16 %v38
  %v347 = vunpack.c.h.b16 %v38
  %v348 = vunpack.c.l.b16 %v39
  %v349 = vunpack.c.h.b16 %v39
  %v350 = vunpack.c.l.b16 %v40
  %v351 = vunpack.c.h.b16 %v40
  %v352 = vunpack.c.l.b16 %v41
  %v353 = vunpack.c.h.b16 %v41
  %v354 = vunpack.c.l.b16 %v42
  %v355 = vunpack.c.h.b16 %v42
  %v356 = vunpack.c.l.b16 %v43
  %v357 = vunpack.c.h.b16 %v43
  %v358 = vunpack.c.l.b16 %v44
  %v359 = vunpack.c.h.b16 %v44
  %v360 = vunpack.c.l.b16 %v45
  %v361 = vunpack.c.h.b16 %v45
  %v362 = vunpack.c.l.b16 %v46
  %v363 = vunpack.c.h.b16 %v46
  %v364 = vunpack.c.l.b16 %v47
  %v365 = vunpack.c.h.b16 %v47
  %v366 = vunpack.c.l.b16 %v48
  %v367 = vunpack.c.h.b16 %v48
  %v368 = vunpack.c.l.b16 %v49
  %v369 = vunpack.c.h.b16 %v49
  %v370 = vunpack.c.l.b16 %v50
  %v371 = vunpack.c.h.b16 %v50
  %v372 = vunpack.c.l.b16 %v51
  %v373 = vunpack.c.h.b16 %v51
  %v374 = vunpack.c.l.b16 %v52
  %v375 = vunpack.c.h.b16 %v52
  %v376 = vunpack.c.l.b16 %v53
  %v377 = vunpack.c.h.b16 %v53
  %v378 = vunpack.c.l.b16 %v54
  %v379 = vunpack.c.h.b16 %v54
  %v380 = vunpack.c.l.b16 %v55
  %v381 = vunpack.c.h.b16 %v55
  %v382 = vunpack.c.l.b16 %v56
  %v383 = vunpack.c.h.b16 %v56
  %v384 = vunpack.c.l.b16 %v57
  %v385 = vunpack.c.h.b16 %v57
  %v386 = vunpack.c.l.b16 %v58
  %v387 = vunpack.c.h.b16 %v58
  %v388 = vunpack.c.l.b16 %v59
  %v389 = vunpack.c.h.b16 %v59
  %v390 = vunpack.c.l.b16 %v60
  %v391 = vunpack.c.h.b16 %v60
  %v392 = vunpack.c.l.b16 %v61
  %v393 = vunpack.c.h.b16 %v61
  %v394 = vunpack.c.l.b16 %v62
  %v395 = vunpack.c.h.b16 %v62
  %v396 = vunpack.c.l.b16 %v63
  %v397 = vunpack.c.h.b16 %v63
  %v398 = vunpack.c.l.b16 %v64
  %v399 = vunpack.c.h.b16 %v64
  %v400 = vunpack.c.l.b16 %v65
  %v401 = vunpack.c.h.b16 %v65
  %v402 = vunpack.c.l.b16 %v66
  %v403 = vunpack.c.h.b16 %v66
  %v404 = vunpack.c.l.b16 %v67
  %v405 = vunpack.c.h.b16 %v67
  %v406 = vunpack.c.l.b16 %v68
  %v407 = vunpack.c.h.b16 %v68
  %v408 = vunpack.c.l.b16 %v69
  %v409 = vunpack.c.h.b16 %v69
  %v410 = vunpack.c.l.b16 %v70
  %v411 = vunpack.c.h.b16 %v70
  %v412 = vunpack.c.l.b16 %v71
  %v413 = vunpack.c.h.b16 %v71
  %v414 = vunpack.c.l.b16 %v72
  %v415 = vunpack.c.h.b16 %v72
  %v416 = vunpack.c.l.b16 %v73
  %v417 = vunpack.c.h.b16 %v73
  %v418 = vunpack.c.l.b16 %v74
  %v419 = vunpack.c.h.b16 %v74
  %v420 = vunpack.c.l.b16 %v75
  %v421 = vunpack.c.h.b16 %v75
  %v422 = vunpack.c.l.b16 %v76
  %v423 = vunpack.c.h.b16 %v76
  %v424 = vunpack.c.l.b16 %v77
  %v425 = vunpack.c.h.b16 %v77
  %v426 = vunpack.c.l.b16 %v78
  %v427 = vunpack.c.h.b16 %v78
  %v428 = vunpack.c.l.b16 %v79
  %v429 = vunpack.c.h.b16 %v79
  %v430 = vunpack.c.l.b16 %v80
  %v431 = vunpack.c.h.b16 %v80
  %v432 = vunpack.c.l.b16 %v81
  %v433 = vunpack.c.h.b16 %v81
  %v434 = vunpack.c.l.b16 %v82
  %v435 = vunpack.c.h.b16 %v82
  %v436 = vunpack.c.l.b16 %v83
  %v437 = vunpack.c.h.b16 %v83
  %v438 = vunpack.c.l.b16 %v84
  %v439 = vunpack.c.h.b16 %v84
  %v440 = vunpack.c.l.b16 %v85
  %v441 = vunpack.c.h.b16 %v85
  %v442 = vunpack.c.l.b16 %v86
  %v443 = vunpack.c.h.b16 %v86
  %v444 = vunpack.c.l.b16 %v87
  %v445 = vunpack.c.h.b16 %v87
  %v446 = vunpack.c.l.b16 %v88
  %v447 = vunpack.c.h.b16 %v88
  %v448 = vunpack.c.l.b16 %v89
  %v449 = vunpack.c.h.b16 %v89
  %v450 = vunpack.c.l.b16 %v90
  %v451 = vunpack.c.h.b16 %v90
  %v452 = vunpack.c.l.b16 %v91
  %v453 = vunpack.c.h.b16 %v91
  %v454 = vunpack.c.l.b16 %v92
  %v455 = vunpack.c.h.b16 %v92
  %v456 = vunpack.c.l.b16 %v93
  %v457 = vunpack.c.h.b16 %v93
  %v458 = vunpack.c.l.b16 %v94
  %v459 = vunpack.c.h.b16 %v94
  %v460 = vunpack.c.l.b16 %v95
  %v461 = vunpack.c.h.b16 %v95
  %v462 = vunpack.c.l.b16 %v96
  %v463 = vunpack.c.h.b16 %v96
  %v464 = vunpack.c.l.b16 %v97
  %v465 = vunpack.c.h.b16 %v97
  %v466 = vunpack.c.l.b16 %v98
  %v467 = vunpack.c.h.b16 %v98
  %v468 = vunpack.c.l.b16 %v99
  %v469 = vunpack.c.h.b16 %v99
  %v470 = vunpack.c.l.b16 %v100
  %v471 = vunpack.c.h.b16 %v100
  %v472 = vunpack.c.l.b16 %v101
  %v473 = vunpack.c.h.b16 %v101
  %v474 = vunpack.c.l.b16 %v102
  %v475 = vunpack.c.h.b16 %v102
  %v476 = vunpack.c.l.b16 %v103
  %v477 = vunpack.c.h.b16 %v103
  %v478 = vunpack.c.l.b16 %v104
  %v479 = vunpack.c.h.b16 %v104
  %v480 = vunpack.c.l.b16 %v105
  %v481 = vunpack.c.h.b16 %v105
  %v482 = vunpack.c.l.b16 %v106
  %v483 = vunpack.c.h.b16 %v106
  %v484 = vunpack.c.l.b16 %v107
  %v485 = vunpack.c.h.b16 %v107
  %v486 = vunpack.c.l.b16 %v108
  %v487 = vunpack.c.h.b16 %v108
  %v488 = vunpack.c.l.b16 %v109
  %v489 = vunpack.c.h.b16 %v109
  %v490 = vunpack.c.l.b16 %v110
  %v491 = vunpack.c.h.b16 %v110
  %v492 = vunpack.c.l.b16 %v111
  %v493 = vunpack.c.h.b16 %v111
  %v494 = vunpack.c.l.b16 %v112
  %v495 = vunpack.c.h.b16 %v112
  %v496 = vunpack.c.l.b16 %v113
  %v497 = vunpack.c.h.b16 %v113
  %v498 = vunpack.c.l.b16 %v114
  %v499 = vunpack.c.h.b16 %v114
  %v500 = vunpack.c.l.b16 %v115
  %v501 = vunpack.c.h.b16 %v115
  %v502 = vunpack.c.l.b16 %v116
  %v503 = vunpack.c.h.b16 %v116
  %v504 = vunpack.c.l.b16 %v117
  %v505 = vunpack.c.h.b16 %v117
  %v506 = vunpack.c.l.b16 %v118
  %v507 = vunpack.c.h.b16 %v118
  %v508 = vunpack.c.l.b16 %v119
  %v509 = vunpack.c.h.b16 %v119
  %v510 = vunpack.c.l.b16 %v120
  %v511 = vunpack.c.h.b16 %v120
  %v512 = vunpack.c.l.b16 %v121
  %v513 = vunpack.c.h.b16 %v121
  %v514 = vunpack.c.l.b16 %v122
  %v515 = vunpack.c.h.b16 %v122
  %v516 = vunpack.c.l.b16 %v123
  %v517 = vunpack.c.h.b16 %v123
  %v518 = vunpack.c.l.b16 %v124
  %v519 = vunpack.c.h.b16 %v124
  %v520 = vunpack.c.l.b16 %v125
  %v521 = vunpack.c.h.b16 %v125
  %v522 = vunpack.c.l.b16 %v126
  %v523 = vunpack.c.h.b16 %v126
  %v524 = vunpack.c.l.b16 %v127
  %v525 = vunpack.c.h.b16 %v127
  %v526 = vunpack.c.l.b16 %v128
  %v527 = vunpack.c.h.b16 %v128
  %v528 = vunpack.c.l.b16 %v129
  %v529 = vunpack.c.h.b16 %v129
  %v530 = vunpack.c.l.b16 %v130
  %v531 = vunpack.c.h.b16 %v130
  %v532 = vunpack.c.l.b16 %v131
  %v533 = vunpack.c.h.b16 %v131
  %v534 = vunpack.c.l.b16 %v132
  %v535 = vunpack.c.h.b16 %v132
  %v536 = vunpack.c.l.b16 %v133
  %v537 = vunpack.c.h.b16 %v133
  %v538 = vunpack.c.l.b16 %v134
  %v539 = vunpack.c.h.b16 %v134
  %v540 = vunpack.c.l.b16 %v135
  %v541 = vunpack.c.h.b16 %v135
  %v542 = vunpack.c.l.b16 %v136
  %v543 = vunpack.c.h.b16 %v136
  %v544 = vunpack.c.l.b16 %v137
  %v545 = vunpack.c.h.b16 %v137
  %v546 = vunpack.c.l.b16 %v138
  %v547 = vunpack.c.h.b16 %v138
  %v548 = vunpack.c.l.b16 %v139
  %v549 = vunpack.c.h.b16 %v139
  %v550 = vunpack.c.l.b16 %v140
  %v551 = vunpack.c.h.b16 %v140
  %v552 = vunpack.c.l.b16 %v141
  %v553 = vunpack.c.h.b16 %v141
  %v554 = vunpack.c.l.b16 %v142
  %v555 = vunpack.c.h.b16 %v142
  %v556 = vunpack.c.l.b16 %v143
  %v557 = vunpack.c.h.b16 %v143
  %v558 = vunpack.c.l.b16 %v144
  %v559 = vunpack.c.h.b16 %v144
  %v560 = vunpack.c.l.b16 %v145
  %v561 = vunpack.c.h.b16 %v145
  %v562 = vpack.c.b16 %v310, %v306
  %v563 = vpack.c.b16 %v311, %v307
  %v564 = vpack.c.b16 %v312, %v308
  %v565 = vpack.c.b16 %v313, %v309
  %v566 = vpack.c.b16 %v318, %v314
  %v567 = vpack.c.b16 %v319, %v315
  %v568 = vpack.c.b16 %v320, %v316
  %v569 = vpack.c.b16 %v321, %v317
  %v570 = vpack.c.b16 %v326, %v322
  %v571 = vpack.c.b16 %v327, %v323
  %v572 = vpack.c.b16 %v328, %v324
  %v573 = vpack.c.b16 %v329, %v325
  %v574 = vpack.c.b16 %v334, %v330
  %v575 = vpack.c.b16 %v335, %v331
  %v576 = vpack.c.b16 %v336, %v332
  %v577 = vpack.c.b16 %v337, %v333
  %v578 = vpack.c.b16 %v342, %v338
  %v579 = vpack.c.b16 %v343, %v339
  %v580 = vpack.c.b16 %v344, %v340
  %v581 = vpack.c.b16 %v345, %v341
  %v582 = vpack.c.b16 %v350, %v346
  %v583 = vpack.c.b16 %v351, %v347
  %v584 = vpack.c.b16 %v352, %v348
  %v585 = vpack.c.b16 %v353, %v349
  %v586 = vpack.c.b16 %v358, %v354
  %v587 = vpack.c.b16 %v359, %v355
  %v588 = vpack.c.b16 %v360, %v356
  %v589 = vpack.c.b16 %v361, %v357
  %v590 = vpack.c.b16 %v366, %v362
  %v591 = vpack.c.b16 %v367, %v363
  %v592 = vpack.c.b16 %v368, %v364
  %v593 = vpack.c.b16 %v369, %v365
  %v594 = vpack.c.b16 %v374, %v370
  %v595 = vpack.c.b16 %v375, %v371
  %v596 = vpack.c.b16 %v376, %v372
  %v597 = vpack.c.b16 %v377, %v373
  %v598 = vpack.c.b16 %v382, %v378
  %v599 = vpack.c.b16 %v383, %v379
  %v600 = vpack.c.b16 %v384, %v380
  %v601 = vpack.c.b16 %v385, %v381
  %v602 = vpack.c.b16 %v390, %v386
  %v603 = vpack.c.b16 %v391, %v387
  %v604 = vpack.c.b16 %v392, %v388
  %v605 = vpack.c.b16 %v393, %v389
  %v606 = vpack.c.b16 %v398, %v394
  %v607 = vpack.c.b16 %v399, %v395
  %v608 = vpack.c.b16 %v400, %v396
  %v609 = vpack.c.b16 %v401, %v397
  %v610 = vpack.c.b16 %v406, %v402
  %v611 = vpack.c.b16 %v407, %v403
  %v612 = vpack.c.b16 %v408, %v404
  %v613 = vpack.c.b16 %v409, %v405
  %v614 = vpack.c.b16 %v414, %v410
  %v615 = vpack.c.b16 %v415, %v411
  %v616 = vpack.c.b16 %v416, %v412
  %v617 = vpack.c.b16 %v417, %v413
  %v618 = vpack.c.b16 %v422, %v418
  %v619 = vpack.c.b16 %v423, %v419
  %v620 = vpack.c.b16 %v424, %v420
  %v621 = vpack.c.b16 %v425, %v421
  %v622 = vpack.c.b16 %v430, %v426
  %v623 = vpack.c.b16 %v431, %v427
  %v624 = vpack.c.b16 %v432, %v428
  %v625 = vpack.c.b16 %v433, %v429
  %v626 = vpack.c.b16 %v438, %v434
  %v627 = vpack.c.b16 %v439, %v435
  %v628 = vpack.c.b16 %v440, %v436
  %v629 = vpack.c.b16 %v441, %v437
  %v630 = vpack.c.b16 %v446, %v442
  %v631 = vpack.c.b16 %v447, %v443
  %v632 = vpack.c.b16 %v448, %v444
  %v633 = vpack.c.b16 %v449, %v445
  %v634 = vpack.c.b16 %v454, %v450
  %v635 = vpack.c.b16 %v455, %v451
  %v636 = vpack.c.b16 %v456, %v452
  %v637 = vpack.c.b16 %v457, %v453
  %v638 = vpack.c.b16 %v462, %v458
  %v639 = vpack.c.b16 %v463, %v459
  %v640 = vpack.c.b16 %v464, %v460
  %v641 = vpack.c.b16 %v465, %v461
  %v642 = vpack.c.b16 %v470, %v466
  %v643 = vpack.c.b16 %v471, %v467
  %v644 = vpack.c.b16 %v472, %v468
  %v645 = vpack.c.b16 %v473, %v469
  %v646 = vpack.c.b16 %v478, %v474
  %v647 = vpack.c.b16 %v479, %v475
  %v648 = vpack.c.b16 %v480, %v476
  %v649 = vpack.c.b16 %v481, %v477
  %v650 = vpack.c.b16 %v486, %v482
  %v651 = vpack.c.b16 %v487, %v483
  %v652 = vpack.c.b16 %v488, %v484
  %v653 = vpack.c.b16 %v489, %v485
  %v654 = vpack.c.b16 %v494, %v490
  %v655 = vpack.c.b16 %v495, %v491
  %v656 = vpack.c.b16 %v496, %v492
  %v657 = vpack.c.b16 %v497, %v493
  %v658 = vpack.c.b16 %v502, %v498
  %v659 = vpack.c.b16 %v503, %v499
  %v660 = vpack.c.b16 %v504, %v500
  %v661 = vpack.c.b16 %v505, %v501
  %v662 = vpack.c.b16 %v510, %v506
  %v663 = vpack.c.b16 %v511, %v507
  %v664 = vpack.c.b16 %v512, %v508
  %v665 = vpack.c.b16 %v513, %v509
  %v666 = vpack.c.b16 %v518, %v514
  %v667 = vpack.c.b16 %v519, %v515
  %v668 = vpack.c.b16 %v520, %v516
  %v669 = vpack.c.b16 %v521, %v517
  %v670 = vpack.c.b16 %v526, %v522
  %v671 = vpack.c.b16 %v527, %v523
  %v672 = vpack.c.b16 %v528, %v524
  %v673 = vpack.c.b16 %v529, %v525
  %v674 = vpack.c.b16 %v534, %v530
  %v675 = vpack.c.b16 %v535, %v531
  %v676 = vpack.c.b16 %v536, %v532
  %v677 = vpack.c.b16 %v537, %v533
  %v678 = vpack.c.b16 %v542, %v538
  %v679 = vpack.c.b16 %v543, %v539
  %v680 = vpack.c.b16 %v544, %v540
  %v681 = vpack.c.b16 %v545, %v541
  %v682 = vpack.c.b16 %v550, %v546
  %v683 = vpack.c.b16 %v551, %v547
  %v684 = vpack.c.b16 %v552, %v548
  %v685 = vpack.c.b16 %v553, %v549
  %v686 = vpack.c.b16 %v558, %v554
  %v687 = vpack.c.b16 %v559, %v555
  %v688 = vpack.c.b16 %v560, %v556
  %v689 = vpack.c.b16 %v561, %v557
  %818 = vmatprep.subr.bf16.mxu0 %v591
  %819 = vmatpush1.bf16.msra.mxu0 %v590
  %820 = vmatprep.subr.bf16.mxu0 %v587
  %821 = vmatpush1.bf16.msra.mxu0 %v586
  %822 = vmatprep.subr.bf16.mxu0 %v583
  %823 = vmatpush1.bf16.msra.mxu0 %v582
  %824 = vmatprep.subr.bf16.mxu0 %v579
  %825 = vmatpush1.bf16.msra.mxu0 %v578
  %826 = vmatprep.subr.bf16.mxu0 %v575
  %827 = vmatpush1.bf16.msra.mxu0 %v574
  %828 = vmatprep.subr.bf16.mxu0 %v571
  %829 = vmatpush1.bf16.msra.mxu0 %v570
  %830 = vmatprep.subr.bf16.mxu0 %v567
  %831 = vmatpush1.bf16.msra.mxu0 %v566
  %832 = vmatprep.subr.bf16.mxu0 %v563
  %833 = vmatpush1.bf16.msra.mxu0 %v562
  %834 = vmatprep.subr.bf16.mxu0 %v623
  %835 = vmatpush2.bf16.msra.mxu0 %v622
  %836 = vmatprep.subr.bf16.mxu0 %v619
  %837 = vmatpush2.bf16.msra.mxu0 %v618
  %838 = vmatprep.subr.bf16.mxu0 %v615
  %839 = vmatpush2.bf16.msra.mxu0 %v614
  %840 = vmatprep.subr.bf16.mxu0 %v611
  %841 = vmatpush2.bf16.msra.mxu0 %v610
  %842 = vmatprep.subr.bf16.mxu0 %v607
  %843 = vmatpush2.bf16.msra.mxu0 %v606
  %844 = vmatprep.subr.bf16.mxu0 %v603
  %845 = vmatpush2.bf16.msra.mxu0 %v602
  %846 = vmatprep.subr.bf16.mxu0 %v599
  %847 = vmatpush2.bf16.msra.mxu0 %v598
  %848 = vmatprep.subr.bf16.mxu0 %v595
  %849 = vmatpush2.bf16.msra.mxu0 %v594
  %850 = vmatprep.mubr.bf16.mxu0 %v171
  %851 = vmatmul.mubr.bf16.gmra.mxu0 %v170
  %v852 = vpop.f32.mrf.mxu0
  %v853 = vadd.f32 %v151, %v852
  %v854 = vpop.f32.mrf.mxu0
  %v855 = vadd.f32 %v151, %v854
  %v856 = vpop.f32.mrf.mxu0
  %v857 = vadd.f32 %v156, %v856
  %v858 = vpop.f32.mrf.mxu0
  %v859 = vadd.f32 %v156, %v858
  %860 = vdwg.mxu0
  %861 = vmatprep.subr.bf16.mxu0 %v655
  %862 = vmatpush1.bf16.msra.mxu0 %v654
  %863 = vmatprep.subr.bf16.mxu0 %v651
  %864 = vmatpush1.bf16.msra.mxu0 %v650
  %865 = vmatprep.subr.bf16.mxu0 %v647
  %866 = vmatpush1.bf16.msra.mxu0 %v646
  %867 = vmatprep.subr.bf16.mxu0 %v643
  %868 = vmatpush1.bf16.msra.mxu0 %v642
  %869 = vmatprep.subr.bf16.mxu0 %v639
  %870 = vmatpush1.bf16.msra.mxu0 %v638
  %871 = vmatprep.subr.bf16.mxu0 %v635
  %872 = vmatpush1.bf16.msra.mxu0 %v634
  %873 = vmatprep.subr.bf16.mxu0 %v631
  %874 = vmatpush1.bf16.msra.mxu0 %v630
  %875 = vmatprep.subr.bf16.mxu0 %v627
  %876 = vmatpush1.bf16.msra.mxu0 %v626
  %877 = vmatprep.subr.bf16.mxu0 %v687
  %878 = vmatpush2.bf16.msra.mxu0 %v686
  %879 = vmatprep.subr.bf16.mxu0 %v683
  %880 = vmatpush2.bf16.msra.mxu0 %v682
  %881 = vmatprep.subr.bf16.mxu0 %v679
  %882 = vmatpush2.bf16.msra.mxu0 %v678
  %883 = vmatprep.subr.bf16.mxu0 %v675
  %884 = vmatpush2.bf16.msra.mxu0 %v674
  %885 = vmatprep.subr.bf16.mxu0 %v671
  %886 = vmatpush2.bf16.msra.mxu0 %v670
  %887 = vmatprep.subr.bf16.mxu0 %v667
  %888 = vmatpush2.bf16.msra.mxu0 %v666
  %889 = vmatprep.subr.bf16.mxu0 %v663
  %890 = vmatpush2.bf16.msra.mxu0 %v662
  %891 = vmatprep.subr.bf16.mxu0 %v659
  %892 = vmatpush2.bf16.msra.mxu0 %v658
  %893 = vmatprep.mubr.bf16.mxu0 %v173
  %894 = vmatmul.mubr.bf16.gmra.mxu0 %v172
  %v895 = vpop.f32.mrf.mxu0
  %v896 = vadd.f32 %v853, %v895
  %v897 = vpop.f32.mrf.mxu0
  %v898 = vadd.f32 %v855, %v897
  %v899 = vpop.f32.mrf.mxu0
  %v900 = vadd.f32 %v857, %v899
  %v901 = vpop.f32.mrf.mxu0
  %v902 = vadd.f32 %v859, %v901
  %903 = vdwg.mxu0
  %904 = vmatprep.subr.bf16.mxu0 %v593
  %905 = vmatpush1.bf16.msra.mxu0 %v592
  %906 = vmatprep.subr.bf16.mxu0 %v589
  %907 = vmatpush1.bf16.msra.mxu0 %v588
  %908 = vmatprep.subr.bf16.mxu0 %v585
  %909 = vmatpush1.bf16.msra.mxu0 %v584
  %910 = vmatprep.subr.bf16.mxu0 %v581
  %911 = vmatpush1.bf16.msra.mxu0 %v580
  %912 = vmatprep.subr.bf16.mxu0 %v577
  %913 = vmatpush1.bf16.msra.mxu0 %v576
  %914 = vmatprep.subr.bf16.mxu0 %v573
  %915 = vmatpush1.bf16.msra.mxu0 %v572
  %916 = vmatprep.subr.bf16.mxu0 %v569
  %917 = vmatpush1.bf16.msra.mxu0 %v568
  %918 = vmatprep.subr.bf16.mxu0 %v565
  %919 = vmatpush1.bf16.msra.mxu0 %v564
  %920 = vmatprep.subr.bf16.mxu0 %v625
  %921 = vmatpush2.bf16.msra.mxu0 %v624
  %922 = vmatprep.subr.bf16.mxu0 %v621
  %923 = vmatpush2.bf16.msra.mxu0 %v620
  %924 = vmatprep.subr.bf16.mxu0 %v617
  %925 = vmatpush2.bf16.msra.mxu0 %v616
  %926 = vmatprep.subr.bf16.mxu0 %v613
  %927 = vmatpush2.bf16.msra.mxu0 %v612
  %928 = vmatprep.subr.bf16.mxu0 %v609
  %929 = vmatpush2.bf16.msra.mxu0 %v608
  %930 = vmatprep.subr.bf16.mxu0 %v605
  %931 = vmatpush2.bf16.msra.mxu0 %v604
  %932 = vmatprep.subr.bf16.mxu0 %v601
  %933 = vmatpush2.bf16.msra.mxu0 %v600
  %934 = vmatprep.subr.bf16.mxu0 %v597
  %935 = vmatpush2.bf16.msra.mxu0 %v596
  %936 = vmatprep.mubr.bf16.mxu0 %v171
  %937 = vmatmul.mubr.bf16.gmra.mxu0 %v170
  %v938 = vpop.f32.mrf.mxu0
  %v939 = vadd.f32 %v151, %v938
  %v940 = vpop.f32.mrf.mxu0
  %v941 = vadd.f32 %v151, %v940
  %v942 = vpop.f32.mrf.mxu0
  %v943 = vadd.f32 %v156, %v942
  %v944 = vpop.f32.mrf.mxu0
  %v945 = vadd.f32 %v156, %v944
  %946 = vdwg.mxu0
  %947 = vmatprep.subr.bf16.mxu0 %v657
  %948 = vmatpush1.bf16.msra.mxu0 %v656
  %949 = vmatprep.subr.bf16.mxu0 %v653
  %950 = vmatpush1.bf16.msra.mxu0 %v652
  %951 = vmatprep.subr.bf16.mxu0 %v649
  %952 = vmatpush1.bf16.msra.mxu0 %v648
  %953 = vmatprep.subr.bf16.mxu0 %v645
  %954 = vmatpush1.bf16.msra.mxu0 %v644
  %955 = vmatprep.subr.bf16.mxu0 %v641
  %956 = vmatpush1.bf16.msra.mxu0 %v640
  %957 = vmatprep.subr.bf16.mxu0 %v637
  %958 = vmatpush1.bf16.msra.mxu0 %v636
  %959 = vmatprep.subr.bf16.mxu0 %v633
  %960 = vmatpush1.bf16.msra.mxu0 %v632
  %961 = vmatprep.subr.bf16.mxu0 %v629
  %962 = vmatpush1.bf16.msra.mxu0 %v628
  %963 = vmatprep.subr.bf16.mxu0 %v689
  %964 = vmatpush2.bf16.msra.mxu0 %v688
  %965 = vmatprep.subr.bf16.mxu0 %v685
  %966 = vmatpush2.bf16.msra.mxu0 %v684
  %967 = vmatprep.subr.bf16.mxu0 %v681
  %968 = vmatpush2.bf16.msra.mxu0 %v680
  %969 = vmatprep.subr.bf16.mxu0 %v677
  %970 = vmatpush2.bf16.msra.mxu0 %v676
  %971 = vmatprep.subr.bf16.mxu0 %v673
  %972 = vmatpush2.bf16.msra.mxu0 %v672
  %973 = vmatprep.subr.bf16.mxu0 %v669
  %974 = vmatpush2.bf16.msra.mxu0 %v668
  %975 = vmatprep.subr.bf16.mxu0 %v665
  %976 = vmatpush2.bf16.msra.mxu0 %v664
  %977 = vmatprep.subr.bf16.mxu0 %v661
  %978 = vmatpush2.bf16.msra.mxu0 %v660
  %979 = vmatprep.mubr.bf16.mxu0 %v173
  %980 = vmatmul.mubr.bf16.gmra.mxu0 %v172
  %v981 = vpop.f32.mrf.mxu0
  %v982 = vadd.f32 %v939, %v981
  %v983 = vpop.f32.mrf.mxu0
  %v984 = vadd.f32 %v941, %v983
  %v985 = vpop.f32.mrf.mxu0
  %v986 = vadd.f32 %v943, %v985
  %v987 = vpop.f32.mrf.mxu0
  %v988 = vadd.f32 %v945, %v987
  %989 = vdwg.mxu0
  %v990 = vmax.f32 %v896, 0.0
  %v991 = vmax.f32 %v898, 0.0
  %v992 = vmax.f32 %v982, 0.0
  %v993 = vmax.f32 %v984, 0.0
  %v994 = vmax.f32 %v900, 0.0
  %v995 = vmax.f32 %v902, 0.0
  %v996 = vmax.f32 %v986, 0.0
  %v997 = vmax.f32 %v988, 0.0
  %v998 = vpack.c.bf16 %v994, %v990
  %v999 = vpack.c.bf16 %v995, %v991
  %v1000 = vpack.c.bf16 %v996, %v992
  %v1001 = vpack.c.bf16 %v997, %v993
  %v1006 = vunpack.c.l.b16 %v998
  %v1007 = vunpack.c.l.b16 %v999
  %v1008 = vunpack.c.l.b16 %v1000
  %v1009 = vunpack.c.l.b16 %v1001
  %v1010 = vunpack.c.h.b16 %v998
  %v1011 = vunpack.c.h.b16 %v999
  %v1012 = vunpack.c.h.b16 %v1000
  %v1013 = vunpack.c.h.b16 %v1001
  %v1014 = vpack.c.b16 %v1007, %v1006
  %v1015 = vpack.c.b16 %v1009, %v1008
  %v1016 = vpack.c.b16 %v1011, %v1010
  %v1017 = vpack.c.b16 %v1013, %v1012
  %1022 = vst [vmem:[%s3] sm:$0xff] %v1014
  %vm1023 = vcmask 1043456
  %vm1024 = vcmask 64516
  %vm1025 = vmor %vm1024, %vm1023
  %1026 = vst.msk [vmem:[%s3 + $0x8] sm:$0xff] %vm1025, %v1015
  %1027 = vst [vmem:[%s3 + $0x10] sm:$0xff] %v1016
  %1028 = vst.msk [vmem:[%s3 + $0x18] sm:$0xff] %vm1025, %v1017
  // Predicated region
  $region14: #{vae_forward.8} parent=0 // pred_check
    _
  $region15: #{vae_forward.8} parent=0 // pred_check_branch
    %1030 = sbr.rel (0) target = $region17
  $region16: #{vae_forward.8} parent=0 // pred_region
    _
  $region17: #{vae_forward.8} parent=0 // pred_fallthru
    _
  // Predicated region
  $region18: #{vae_forward.8} parent=0 // pred_check
    _
  $region19: #{vae_forward.8} parent=0 // pred_check_branch
    %1032 = sbr.rel (0) target = $region21
  $region20: #{vae_forward.8} parent=0 // pred_region
    _
  $region21: #{vae_forward.8} parent=0 // pred_fallthru
    _

// kernel: vae_forward.9
$region0: #{vae_forward.9}
  #allocation0 [shape = 'u32[]', space=smem, size = 0x4, offset = 0x4, fixed_abs, tag = 'smem constant byte address 0x4 - core index']
  #allocation1 [shape = 'u32[144,128]{1,0:T(1,128)}', space=vmem, size = 0x12000, scoped, tag = 'internal scratch']
  #allocation2 [shape = 'f32[1,1]{1,0:T(1,128)S(1)}', space=vmem, size = 0x200, scoped, tag = 'scoped memory for vae_forward.9']
  %s0 = inlined_call_operand.vmem [shape: bf16[1,256], index: 0, kind: input, shape index: {}]
  %s1 = inlined_call_operand.vmem [shape: bf16[256,1568], index: 1, kind: input, shape index: {}]
  %s2 = inlined_call_operand.<no memory space> [shape: f32[1,1], index: 2, kind: input, shape index: {}]
  %s3 = inlined_call_operand.vmem [shape: f32[1,1568], index: 3, kind: output, shape index: {}]
  %s4 = sld [smem:[#allocation0]]
  $region22: #{vae_forward.9} parent=0
    _
  %s6 = ssub.s32 1, %s4
  %s7 = scalar_select 0, %s6, %s4
  %v8 = vstv %s2
  %9 = vst [vmem:[#allocation2] sm:$0x1] %v8
  // Predicated region
  $region2: #{vae_forward.9} parent=0 // pred_check
    _
  $region3: #{vae_forward.9} parent=0 // pred_check_branch
    %11 = sbr.rel (0) target = $region5
  $region4: #{vae_forward.9} parent=0 // pred_region
    _
  $region5: #{vae_forward.9} parent=0 // pred_fallthru
    _
  // Predicated region
  $region6: #{vae_forward.9} parent=0 // pred_check
    _
  $region7: #{vae_forward.9} parent=0 // pred_check_branch
    %13 = sbr.rel (0) target = $region9
  $region8: #{vae_forward.9} parent=0 // pred_region
    _
  $region9: #{vae_forward.9} parent=0 // pred_fallthru
    _
  // Predicated region
  $region10: #{vae_forward.9} parent=0 // pred_check
    _
  $region11: #{vae_forward.9} parent=0 // pred_check_branch
    %15 = sbr.rel (0) target = $region13
  $region12: #{vae_forward.9} parent=0 // pred_region
    _
  $region13: #{vae_forward.9} parent=0 // pred_fallthru
    _
  %v17 = vld [vmem:[%s0] sm:$0x3]
  %v18 = vld [vmem:[%s1] sm:$0xff]
  %v19 = vld [vmem:[%s1 + $0x8] sm:$0xff]
  %v20 = vld [vmem:[%s1 + $0x10] sm:$0xff]
  %v21 = vld [vmem:[%s1 + $0x18] sm:$0xff]
  %v22 = vld [vmem:[%s1 + $0x20] sm:$0xff]
  %v23 = vld [vmem:[%s1 + $0x28] sm:$0xff]
  %v24 = vld [vmem:[%s1 + $0x30] sm:$0xf]
  %v25 = vld [vmem:[%s1 + $0x34] sm:$0xff]
  %v26 = vld [vmem:[%s1 + $0x3c] sm:$0xff]
  %v27 = vld [vmem:[%s1 + $0x44] sm:$0xff]
  %v28 = vld [vmem:[%s1 + $0x4c] sm:$0xff]
  %v29 = vld [vmem:[%s1 + $0x54] sm:$0xff]
  %v30 = vld [vmem:[%s1 + $0x5c] sm:$0xff]
  %v31 = vld [vmem:[%s1 + $0x64] sm:$0xf]
  %v32 = vld [vmem:[%s1 + $0x68] sm:$0xff]
  %v33 = vld [vmem:[%s1 + $0x70] sm:$0xff]
  %v34 = vld [vmem:[%s1 + $0x78] sm:$0xff]
  %v35 = vld [vmem:[%s1 + $0x80] sm:$0xff]
  %v36 = vld [vmem:[%s1 + $0x88] sm:$0xff]
  %v37 = vld [vmem:[%s1 + $0x90] sm:$0xff]
  %v38 = vld [vmem:[%s1 + $0x98] sm:$0xf]
  %v39 = vld [vmem:[%s1 + $0x9c] sm:$0xff]
  %v40 = vld [vmem:[%s1 + $0xa4] sm:$0xff]
  %v41 = vld [vmem:[%s1 + $0xac] sm:$0xff]
  %v42 = vld [vmem:[%s1 + $0xb4] sm:$0xff]
  %v43 = vld [vmem:[%s1 + $0xbc] sm:$0xff]
  %v44 = vld [vmem:[%s1 + $0xc4] sm:$0xff]
  %v45 = vld [vmem:[%s1 + $0xcc] sm:$0xf]
  %v46 = vld [vmem:[%s1 + $0xd0] sm:$0xff]
  %v47 = vld [vmem:[%s1 + $0xd8] sm:$0xff]
  %v48 = vld [vmem:[%s1 + $0xe0] sm:$0xff]
  %v49 = vld [vmem:[%s1 + $0xe8] sm:$0xff]
  %v50 = vld [vmem:[%s1 + $0xf0] sm:$0xff]
  %v51 = vld [vmem:[%s1 + $0xf8] sm:$0xff]
  %v52 = vld [vmem:[%s1 + $0x100] sm:$0xf]
  %v53 = vld [vmem:[%s1 + $0x104] sm:$0xff]
  %v54 = vld [vmem:[%s1 + $0x10c] sm:$0xff]
  %v55 = vld [vmem:[%s1 + $0x114] sm:$0xff]
  %v56 = vld [vmem:[%s1 + $0x11c] sm:$0xff]
  %v57 = vld [vmem:[%s1 + $0x124] sm:$0xff]
  %v58 = vld [vmem:[%s1 + $0x12c] sm:$0xff]
  %v59 = vld [vmem:[%s1 + $0x134] sm:$0xf]
  %v60 = vld [vmem:[%s1 + $0x138] sm:$0xff]
  %v61 = vld [vmem:[%s1 + $0x140] sm:$0xff]
  %v62 = vld [vmem:[%s1 + $0x148] sm:$0xff]
  %v63 = vld [vmem:[%s1 + $0x150] sm:$0xff]
  %v64 = vld [vmem:[%s1 + $0x158] sm:$0xff]
  %v65 = vld [vmem:[%s1 + $0x160] sm:$0xff]
  %v66 = vld [vmem:[%s1 + $0x168] sm:$0xf]
  %v67 = vld [vmem:[%s1 + $0x16c] sm:$0xff]
  %v68 = vld [vmem:[%s1 + $0x174] sm:$0xff]
  %v69 = vld [vmem:[%s1 + $0x17c] sm:$0xff]
  %v70 = vld [vmem:[%s1 + $0x184] sm:$0xff]
  %v71 = vld [vmem:[%s1 + $0x18c] sm:$0xff]
  %v72 = vld [vmem:[%s1 + $0x194] sm:$0xff]
  %v73 = vld [vmem:[%s1 + $0x19c] sm:$0xf]
  %v74 = vld [vmem:[%s1 + $0x1a0] sm:$0xff]
  %v75 = vld [vmem:[%s1 + $0x1a8] sm:$0xff]
  %v76 = vld [vmem:[%s1 + $0x1b0] sm:$0xff]
  %v77 = vld [vmem:[%s1 + $0x1b8] sm:$0xff]
  %v78 = vld [vmem:[%s1 + $0x1c0] sm:$0xff]
  %v79 = vld [vmem:[%s1 + $0x1c8] sm:$0xff]
  %v80 = vld [vmem:[%s1 + $0x1d0] sm:$0xf]
  %v81 = vld [vmem:[%s1 + $0x1d4] sm:$0xff]
  %v82 = vld [vmem:[%s1 + $0x1dc] sm:$0xff]
  %v83 = vld [vmem:[%s1 + $0x1e4] sm:$0xff]
  %v84 = vld [vmem:[%s1 + $0x1ec] sm:$0xff]
  %v85 = vld [vmem:[%s1 + $0x1f4] sm:$0xff]
  %v86 = vld [vmem:[%s1 + $0x1fc] sm:$0xff]
  %v87 = vld [vmem:[%s1 + $0x204] sm:$0xf]
  %v88 = vld [vmem:[%s1 + $0x208] sm:$0xff]
  %v89 = vld [vmem:[%s1 + $0x210] sm:$0xff]
  %v90 = vld [vmem:[%s1 + $0x218] sm:$0xff]
  %v91 = vld [vmem:[%s1 + $0x220] sm:$0xff]
  %v92 = vld [vmem:[%s1 + $0x228] sm:$0xff]
  %v93 = vld [vmem:[%s1 + $0x230] sm:$0xff]
  %v94 = vld [vmem:[%s1 + $0x238] sm:$0xf]
  %v95 = vld [vmem:[%s1 + $0x23c] sm:$0xff]
  %v96 = vld [vmem:[%s1 + $0x244] sm:$0xff]
  %v97 = vld [vmem:[%s1 + $0x24c] sm:$0xff]
  %v98 = vld [vmem:[%s1 + $0x254] sm:$0xff]
  %v99 = vld [vmem:[%s1 + $0x25c] sm:$0xff]
  %v100 = vld [vmem:[%s1 + $0x264] sm:$0xff]
  %v101 = vld [vmem:[%s1 + $0x26c] sm:$0xf]
  %v102 = vld [vmem:[%s1 + $0x270] sm:$0xff]
  %v103 = vld [vmem:[%s1 + $0x278] sm:$0xff]
  %v104 = vld [vmem:[%s1 + $0x280] sm:$0xff]
  %v105 = vld [vmem:[%s1 + $0x288] sm:$0xff]
  %v106 = vld [vmem:[%s1 + $0x290] sm:$0xff]
  %v107 = vld [vmem:[%s1 + $0x298] sm:$0xff]
  %v108 = vld [vmem:[%s1 + $0x2a0] sm:$0xf]
  %v109 = vld [vmem:[%s1 + $0x2a4] sm:$0xff]
  %v110 = vld [vmem:[%s1 + $0x2ac] sm:$0xff]
  %v111 = vld [vmem:[%s1 + $0x2b4] sm:$0xff]
  %v112 = vld [vmem:[%s1 + $0x2bc] sm:$0xff]
  %v113 = vld [vmem:[%s1 + $0x2c4] sm:$0xff]
  %v114 = vld [vmem:[%s1 + $0x2cc] sm:$0xff]
  %v115 = vld [vmem:[%s1 + $0x2d4] sm:$0xf]
  %v116 = vld [vmem:[%s1 + $0x2d8] sm:$0xff]
  %v117 = vld [vmem:[%s1 + $0x2e0] sm:$0xff]
  %v118 = vld [vmem:[%s1 + $0x2e8] sm:$0xff]
  %v119 = vld [vmem:[%s1 + $0x2f0] sm:$0xff]
  %v120 = vld [vmem:[%s1 + $0x2f8] sm:$0xff]
  %v121 = vld [vmem:[%s1 + $0x300] sm:$0xff]
  %v122 = vld [vmem:[%s1 + $0x308] sm:$0xf]
  %v123 = vld [vmem:[%s1 + $0x30c] sm:$0xff]
  %v124 = vld [vmem:[%s1 + $0x314] sm:$0xff]
  %v125 = vld [vmem:[%s1 + $0x31c] sm:$0xff]
  %v126 = vld [vmem:[%s1 + $0x324] sm:$0xff]
  %v127 = vld [vmem:[%s1 + $0x32c] sm:$0xff]
  %v128 = vld [vmem:[%s1 + $0x334] sm:$0xff]
  %v129 = vld [vmem:[%s1 + $0x33c] sm:$0xf]
  %v130 = vld [vmem:[%s1 + $0x340] sm:$0xff]
  %v131 = vld [vmem:[%s1 + $0x348] sm:$0xff]
  %v132 = vld [vmem:[%s1 + $0x350] sm:$0xff]
  %v133 = vld [vmem:[%s1 + $0x358] sm:$0xff]
  %v134 = vld [vmem:[%s1 + $0x360] sm:$0xff]
  %v135 = vld [vmem:[%s1 + $0x368] sm:$0xff]
  %v136 = vld [vmem:[%s1 + $0x370] sm:$0xf]
  %v137 = vld [vmem:[%s1 + $0x374] sm:$0xff]
  %v138 = vld [vmem:[%s1 + $0x37c] sm:$0xff]
  %v139 = vld [vmem:[%s1 + $0x384] sm:$0xff]
  %v140 = vld [vmem:[%s1 + $0x38c] sm:$0xff]
  %v141 = vld [vmem:[%s1 + $0x394] sm:$0xff]
  %v142 = vld [vmem:[%s1 + $0x39c] sm:$0xff]
  %v143 = vld [vmem:[%s1 + $0x3a4] sm:$0xf]
  %v144 = vld [vmem:[%s1 + $0x3a8] sm:$0xff]
  %v145 = vld [vmem:[%s1 + $0x3b0] sm:$0xff]
  %v146 = vld [vmem:[%s1 + $0x3b8] sm:$0xff]
  %v147 = vld [vmem:[%s1 + $0x3c0] sm:$0xff]
  %v148 = vld [vmem:[%s1 + $0x3c8] sm:$0xff]
  %v149 = vld [vmem:[%s1 + $0x3d0] sm:$0xff]
  %v150 = vld [vmem:[%s1 + $0x3d8] sm:$0xf]
  %v151 = vld [vmem:[%s1 + $0x3dc] sm:$0xff]
  %v152 = vld [vmem:[%s1 + $0x3e4] sm:$0xff]
  %v153 = vld [vmem:[%s1 + $0x3ec] sm:$0xff]
  %v154 = vld [vmem:[%s1 + $0x3f4] sm:$0xff]
  %v155 = vld [vmem:[%s1 + $0x3fc] sm:$0xff]
  %v156 = vld [vmem:[%s1 + $0x404] sm:$0xff]
  %v157 = vld [vmem:[%s1 + $0x40c] sm:$0xf]
  %v158 = vld [vmem:[%s1 + $0x410] sm:$0xff]
  %v159 = vld [vmem:[%s1 + $0x418] sm:$0xff]
  %v160 = vld [vmem:[%s1 + $0x420] sm:$0xff]
  %v161 = vld [vmem:[%s1 + $0x428] sm:$0xff]
  %v162 = vld [vmem:[%s1 + $0x430] sm:$0xff]
  %v163 = vld [vmem:[%s1 + $0x438] sm:$0xff]
  %v164 = vld [vmem:[%s1 + $0x440] sm:$0xf]
  %v165 = vld [vmem:[%s1 + $0x444] sm:$0xff]
  %v166 = vld [vmem:[%s1 + $0x44c] sm:$0xff]
  %v167 = vld [vmem:[%s1 + $0x454] sm:$0xff]
  %v168 = vld [vmem:[%s1 + $0x45c] sm:$0xff]
  %v169 = vld [vmem:[%s1 + $0x464] sm:$0xff]
  %v170 = vld [vmem:[%s1 + $0x46c] sm:$0xff]
  %v171 = vld [vmem:[%s1 + $0x474] sm:$0xf]
  %v172 = vld [vmem:[%s1 + $0x478] sm:$0xff]
  %v173 = vld [vmem:[%s1 + $0x480] sm:$0xff]
  %v174 = vld [vmem:[%s1 + $0x488] sm:$0xff]
  %v175 = vld [vmem:[%s1 + $0x490] sm:$0xff]
  %v176 = vld [vmem:[%s1 + $0x498] sm:$0xff]
  %v177 = vld [vmem:[%s1 + $0x4a0] sm:$0xff]
  %v178 = vld [vmem:[%s1 + $0x4a8] sm:$0xf]
  %v179 = vld [vmem:[%s1 + $0x4ac] sm:$0xff]
  %v180 = vld [vmem:[%s1 + $0x4b4] sm:$0xff]
  %v181 = vld [vmem:[%s1 + $0x4bc] sm:$0xff]
  %v182 = vld [vmem:[%s1 + $0x4c4] sm:$0xff]
  %v183 = vld [vmem:[%s1 + $0x4cc] sm:$0xff]
  %v184 = vld [vmem:[%s1 + $0x4d4] sm:$0xff]
  %v185 = vld [vmem:[%s1 + $0x4dc] sm:$0xf]
  %v186 = vld [vmem:[%s1 + $0x4e0] sm:$0xff]
  %v187 = vld [vmem:[%s1 + $0x4e8] sm:$0xff]
  %v188 = vld [vmem:[%s1 + $0x4f0] sm:$0xff]
  %v189 = vld [vmem:[%s1 + $0x4f8] sm:$0xff]
  %v190 = vld [vmem:[%s1 + $0x500] sm:$0xff]
  %v191 = vld [vmem:[%s1 + $0x508] sm:$0xff]
  %v192 = vld [vmem:[%s1 + $0x510] sm:$0xf]
  %v193 = vld [vmem:[%s1 + $0x514] sm:$0xff]
  %v194 = vld [vmem:[%s1 + $0x51c] sm:$0xff]
  %v195 = vld [vmem:[%s1 + $0x524] sm:$0xff]
  %v196 = vld [vmem:[%s1 + $0x52c] sm:$0xff]
  %v197 = vld [vmem:[%s1 + $0x534] sm:$0xff]
  %v198 = vld [vmem:[%s1 + $0x53c] sm:$0xff]
  %v199 = vld [vmem:[%s1 + $0x544] sm:$0xf]
  %v200 = vld [vmem:[%s1 + $0x548] sm:$0xff]
  %v201 = vld [vmem:[%s1 + $0x550] sm:$0xff]
  %v202 = vld [vmem:[%s1 + $0x558] sm:$0xff]
  %v203 = vld [vmem:[%s1 + $0x560] sm:$0xff]
  %v204 = vld [vmem:[%s1 + $0x568] sm:$0xff]
  %v205 = vld [vmem:[%s1 + $0x570] sm:$0xff]
  %v206 = vld [vmem:[%s1 + $0x578] sm:$0xf]
  %v207 = vld [vmem:[%s1 + $0x57c] sm:$0xff]
  %v208 = vld [vmem:[%s1 + $0x584] sm:$0xff]
  %v209 = vld [vmem:[%s1 + $0x58c] sm:$0xff]
  %v210 = vld [vmem:[%s1 + $0x594] sm:$0xff]
  %v211 = vld [vmem:[%s1 + $0x59c] sm:$0xff]
  %v212 = vld [vmem:[%s1 + $0x5a4] sm:$0xff]
  %v213 = vld [vmem:[%s1 + $0x5ac] sm:$0xf]
  %v214 = vld [vmem:[%s1 + $0x5b0] sm:$0xff]
  %v215 = vld [vmem:[%s1 + $0x5b8] sm:$0xff]
  %v216 = vld [vmem:[%s1 + $0x5c0] sm:$0xff]
  %v217 = vld [vmem:[%s1 + $0x5c8] sm:$0xff]
  %v218 = vld [vmem:[%s1 + $0x5d0] sm:$0xff]
  %v219 = vld [vmem:[%s1 + $0x5d8] sm:$0xff]
  %v220 = vld [vmem:[%s1 + $0x5e0] sm:$0xf]
  %v221 = vld [vmem:[%s1 + $0x5e4] sm:$0xff]
  %v222 = vld [vmem:[%s1 + $0x5ec] sm:$0xff]
  %v223 = vld [vmem:[%s1 + $0x5f4] sm:$0xff]
  %v224 = vld [vmem:[%s1 + $0x5fc] sm:$0xff]
  %v225 = vld [vmem:[%s1 + $0x604] sm:$0xff]
  %v226 = vld [vmem:[%s1 + $0x60c] sm:$0xff]
  %v227 = vld [vmem:[%s1 + $0x614] sm:$0xf]
  %v228 = vld [vmem:[%s1 + $0x618] sm:$0xff]
  %v229 = vld [vmem:[%s1 + $0x620] sm:$0xff]
  %v230 = vld [vmem:[%s1 + $0x628] sm:$0xff]
  %v231 = vld [vmem:[%s1 + $0x630] sm:$0xff]
  %v232 = vld [vmem:[%s1 + $0x638] sm:$0xff]
  %v233 = vld [vmem:[%s1 + $0x640] sm:$0xff]
  %v234 = vld [vmem:[%s1 + $0x648] sm:$0xf]
  %v235 = vld [vmem:[%s1 + $0x64c] sm:$0xff]
  %v236 = vld [vmem:[%s1 + $0x654] sm:$0xff]
  %v237 = vld [vmem:[%s1 + $0x65c] sm:$0xff]
  %v238 = vld [vmem:[%s1 + $0x664] sm:$0xff]
  %v239 = vld [vmem:[%s1 + $0x66c] sm:$0xff]
  %v240 = vld [vmem:[%s1 + $0x674] sm:$0xff]
  %v241 = vld [vmem:[%s1 + $0x67c] sm:$0xf]
  %v242 = vld [vmem:[#allocation2] sm:$0x1]
  %244 = vset.pattern.permute.xlu0 0
  %245 = vperm.xlu0 %244, %v242
  %v246 = vpop.permute.xlu0 %245
  %v248 = vlaneseq
  %v249 = vshrl.u32 %v248, 7
  %v250 = vsub.s32 0, %v249
  %v251 = vrot.slane %v246, %v250
  %v254 = vunpack.c.l.s4 1966171168
  %v255 = vunpack.c.0.s8 %v254
  %v256 = vlaneseq
  %v257 = vshrl.u32 %v256, 7
  %v258 = vsub.s32 %v255, %v257
  %v259 = vrot.slane %v17, %v258
  %v260 = vcombine.high %v259, %v259
  %v262 = vunpack.c.l.s4 1966171168
  %v263 = vunpack.c.0.s8 %v262
  %v264 = vlaneseq
  %v265 = vshrl.u32 %v264, 7
  %v266 = vsub.s32 %v263, %v265
  %v267 = vrot.slane %v259, %v266
  %v269 = vunpack.c.l.s4 1966171168
  %v270 = vunpack.c.0.s8 %v269
  %v271 = vlaneseq
  %v272 = vshrl.u32 %v271, 7
  %v273 = vsub.s32 %v270, %v272
  %v274 = vrot.slane %v260, %v273
  %v501 = vunpack.c.l.b16 %v18
  %v502 = vunpack.c.h.b16 %v18
  %v503 = vunpack.c.l.b16 %v19
  %v504 = vunpack.c.h.b16 %v19
  %v505 = vunpack.c.l.b16 %v20
  %v506 = vunpack.c.h.b16 %v20
  %v507 = vunpack.c.l.b16 %v21
  %v508 = vunpack.c.h.b16 %v21
  %v509 = vunpack.c.l.b16 %v22
  %v510 = vunpack.c.h.b16 %v22
  %v511 = vunpack.c.l.b16 %v23
  %v512 = vunpack.c.h.b16 %v23
  %v513 = vunpack.c.l.b16 %v24
  %v514 = vunpack.c.l.b16 %v25
  %v515 = vunpack.c.h.b16 %v25
  %v516 = vunpack.c.l.b16 %v26
  %v517 = vunpack.c.h.b16 %v26
  %v518 = vunpack.c.l.b16 %v27
  %v519 = vunpack.c.h.b16 %v27
  %v520 = vunpack.c.l.b16 %v28
  %v521 = vunpack.c.h.b16 %v28
  %v522 = vunpack.c.l.b16 %v29
  %v523 = vunpack.c.h.b16 %v29
  %v524 = vunpack.c.l.b16 %v30
  %v525 = vunpack.c.h.b16 %v30
  %v526 = vunpack.c.l.b16 %v31
  %v527 = vunpack.c.l.b16 %v32
  %v528 = vunpack.c.h.b16 %v32
  %v529 = vunpack.c.l.b16 %v33
  %v530 = vunpack.c.h.b16 %v33
  %v531 = vunpack.c.l.b16 %v34
  %v532 = vunpack.c.h.b16 %v34
  %v533 = vunpack.c.l.b16 %v35
  %v534 = vunpack.c.h.b16 %v35
  %v535 = vunpack.c.l.b16 %v36
  %v536 = vunpack.c.h.b16 %v36
  %v537 = vunpack.c.l.b16 %v37
  %v538 = vunpack.c.h.b16 %v37
  %v539 = vunpack.c.l.b16 %v38
  %v540 = vunpack.c.l.b16 %v39
  %v541 = vunpack.c.h.b16 %v39
  %v542 = vunpack.c.l.b16 %v40
  %v543 = vunpack.c.h.b16 %v40
  %v544 = vunpack.c.l.b16 %v41
  %v545 = vunpack.c.h.b16 %v41
  %v546 = vunpack.c.l.b16 %v42
  %v547 = vunpack.c.h.b16 %v42
  %v548 = vunpack.c.l.b16 %v43
  %v549 = vunpack.c.h.b16 %v43
  %v550 = vunpack.c.l.b16 %v44
  %v551 = vunpack.c.h.b16 %v44
  %v552 = vunpack.c.l.b16 %v45
  %v553 = vunpack.c.l.b16 %v46
  %v554 = vunpack.c.h.b16 %v46
  %v555 = vunpack.c.l.b16 %v47
  %v556 = vunpack.c.h.b16 %v47
  %v557 = vunpack.c.l.b16 %v48
  %v558 = vunpack.c.h.b16 %v48
  %v559 = vunpack.c.l.b16 %v49
  %v560 = vunpack.c.h.b16 %v49
  %v561 = vunpack.c.l.b16 %v50
  %v562 = vunpack.c.h.b16 %v50
  %v563 = vunpack.c.l.b16 %v51
  %v564 = vunpack.c.h.b16 %v51
  %v565 = vunpack.c.l.b16 %v52
  %v566 = vunpack.c.l.b16 %v53
  %v567 = vunpack.c.h.b16 %v53
  %v568 = vunpack.c.l.b16 %v54
  %v569 = vunpack.c.h.b16 %v54
  %v570 = vunpack.c.l.b16 %v55
  %v571 = vunpack.c.h.b16 %v55
  %v572 = vunpack.c.l.b16 %v56
  %v573 = vunpack.c.h.b16 %v56
  %v574 = vunpack.c.l.b16 %v57
  %v575 = vunpack.c.h.b16 %v57
  %v576 = vunpack.c.l.b16 %v58
  %v577 = vunpack.c.h.b16 %v58
  %v578 = vunpack.c.l.b16 %v59
  %v579 = vunpack.c.l.b16 %v60
  %v580 = vunpack.c.h.b16 %v60
  %v581 = vunpack.c.l.b16 %v61
  %v582 = vunpack.c.h.b16 %v61
  %v583 = vunpack.c.l.b16 %v62
  %v584 = vunpack.c.h.b16 %v62
  %v585 = vunpack.c.l.b16 %v63
  %v586 = vunpack.c.h.b16 %v63
  %v587 = vunpack.c.l.b16 %v64
  %v588 = vunpack.c.h.b16 %v64
  %v589 = vunpack.c.l.b16 %v65
  %v590 = vunpack.c.h.b16 %v65
  %v591 = vunpack.c.l.b16 %v66
  %v592 = vunpack.c.l.b16 %v67
  %v593 = vunpack.c.h.b16 %v67
  %v594 = vunpack.c.l.b16 %v68
  %v595 = vunpack.c.h.b16 %v68
  %v596 = vunpack.c.l.b16 %v69
  %v597 = vunpack.c.h.b16 %v69
  %v598 = vunpack.c.l.b16 %v70
  %v599 = vunpack.c.h.b16 %v70
  %v600 = vunpack.c.l.b16 %v71
  %v601 = vunpack.c.h.b16 %v71
  %v602 = vunpack.c.l.b16 %v72
  %v603 = vunpack.c.h.b16 %v72
  %v604 = vunpack.c.l.b16 %v73
  %v605 = vunpack.c.l.b16 %v74
  %v606 = vunpack.c.h.b16 %v74
  %v607 = vunpack.c.l.b16 %v75
  %v608 = vunpack.c.h.b16 %v75
  %v609 = vunpack.c.l.b16 %v76
  %v610 = vunpack.c.h.b16 %v76
  %v611 = vunpack.c.l.b16 %v77
  %v612 = vunpack.c.h.b16 %v77
  %v613 = vunpack.c.l.b16 %v78
  %v614 = vunpack.c.h.b16 %v78
  %v615 = vunpack.c.l.b16 %v79
  %v616 = vunpack.c.h.b16 %v79
  %v617 = vunpack.c.l.b16 %v80
  %v618 = vunpack.c.l.b16 %v81
  %v619 = vunpack.c.h.b16 %v81
  %v620 = vunpack.c.l.b16 %v82
  %v621 = vunpack.c.h.b16 %v82
  %v622 = vunpack.c.l.b16 %v83
  %v623 = vunpack.c.h.b16 %v83
  %v624 = vunpack.c.l.b16 %v84
  %v625 = vunpack.c.h.b16 %v84
  %v626 = vunpack.c.l.b16 %v85
  %v627 = vunpack.c.h.b16 %v85
  %v628 = vunpack.c.l.b16 %v86
  %v629 = vunpack.c.h.b16 %v86
  %v630 = vunpack.c.l.b16 %v87
  %v631 = vunpack.c.l.b16 %v88
  %v632 = vunpack.c.h.b16 %v88
  %v633 = vunpack.c.l.b16 %v89
  %v634 = vunpack.c.h.b16 %v89
  %v635 = vunpack.c.l.b16 %v90
  %v636 = vunpack.c.h.b16 %v90
  %v637 = vunpack.c.l.b16 %v91
  %v638 = vunpack.c.h.b16 %v91
  %v639 = vunpack.c.l.b16 %v92
  %v640 = vunpack.c.h.b16 %v92
  %v641 = vunpack.c.l.b16 %v93
  %v642 = vunpack.c.h.b16 %v93
  %v643 = vunpack.c.l.b16 %v94
  %v644 = vunpack.c.l.b16 %v95
  %v645 = vunpack.c.h.b16 %v95
  %v646 = vunpack.c.l.b16 %v96
  %v647 = vunpack.c.h.b16 %v96
  %v648 = vunpack.c.l.b16 %v97
  %v649 = vunpack.c.h.b16 %v97
  %v650 = vunpack.c.l.b16 %v98
  %v651 = vunpack.c.h.b16 %v98
  %v652 = vunpack.c.l.b16 %v99
  %v653 = vunpack.c.h.b16 %v99
  %v654 = vunpack.c.l.b16 %v100
  %v655 = vunpack.c.h.b16 %v100
  %v656 = vunpack.c.l.b16 %v101
  %v657 = vunpack.c.l.b16 %v102
  %v658 = vunpack.c.h.b16 %v102
  %v659 = vunpack.c.l.b16 %v103
  %v660 = vunpack.c.h.b16 %v103
  %v661 = vunpack.c.l.b16 %v104
  %v662 = vunpack.c.h.b16 %v104
  %v663 = vunpack.c.l.b16 %v105
  %v664 = vunpack.c.h.b16 %v105
  %v665 = vunpack.c.l.b16 %v106
  %v666 = vunpack.c.h.b16 %v106
  %v667 = vunpack.c.l.b16 %v107
  %v668 = vunpack.c.h.b16 %v107
  %v669 = vunpack.c.l.b16 %v108
  %v670 = vunpack.c.l.b16 %v109
  %v671 = vunpack.c.h.b16 %v109
  %v672 = vunpack.c.l.b16 %v110
  %v673 = vunpack.c.h.b16 %v110
  %v674 = vunpack.c.l.b16 %v111
  %v675 = vunpack.c.h.b16 %v111
  %v676 = vunpack.c.l.b16 %v112
  %v677 = vunpack.c.h.b16 %v112
  %v678 = vunpack.c.l.b16 %v113
  %v679 = vunpack.c.h.b16 %v113
  %v680 = vunpack.c.l.b16 %v114
  %v681 = vunpack.c.h.b16 %v114
  %v682 = vunpack.c.l.b16 %v115
  %v683 = vunpack.c.l.b16 %v116
  %v684 = vunpack.c.h.b16 %v116
  %v685 = vunpack.c.l.b16 %v117
  %v686 = vunpack.c.h.b16 %v117
  %v687 = vunpack.c.l.b16 %v118
  %v688 = vunpack.c.h.b16 %v118
  %v689 = vunpack.c.l.b16 %v119
  %v690 = vunpack.c.h.b16 %v119
  %v691 = vunpack.c.l.b16 %v120
  %v692 = vunpack.c.h.b16 %v120
  %v693 = vunpack.c.l.b16 %v121
  %v694 = vunpack.c.h.b16 %v121
  %v695 = vunpack.c.l.b16 %v122
  %v696 = vunpack.c.l.b16 %v123
  %v697 = vunpack.c.h.b16 %v123
  %v698 = vunpack.c.l.b16 %v124
  %v699 = vunpack.c.h.b16 %v124
  %v700 = vunpack.c.l.b16 %v125
  %v701 = vunpack.c.h.b16 %v125
  %v702 = vunpack.c.l.b16 %v126
  %v703 = vunpack.c.h.b16 %v126
  %v704 = vunpack.c.l.b16 %v127
  %v705 = vunpack.c.h.b16 %v127
  %v706 = vunpack.c.l.b16 %v128
  %v707 = vunpack.c.h.b16 %v128
  %v708 = vunpack.c.l.b16 %v129
  %v709 = vunpack.c.l.b16 %v130
  %v710 = vunpack.c.h.b16 %v130
  %v711 = vunpack.c.l.b16 %v131
  %v712 = vunpack.c.h.b16 %v131
  %v713 = vunpack.c.l.b16 %v132
  %v714 = vunpack.c.h.b16 %v132
  %v715 = vunpack.c.l.b16 %v133
  %v716 = vunpack.c.h.b16 %v133
  %v717 = vunpack.c.l.b16 %v134
  %v718 = vunpack.c.h.b16 %v134
  %v719 = vunpack.c.l.b16 %v135
  %v720 = vunpack.c.h.b16 %v135
  %v721 = vunpack.c.l.b16 %v136
  %v722 = vunpack.c.l.b16 %v137
  %v723 = vunpack.c.h.b16 %v137
  %v724 = vunpack.c.l.b16 %v138
  %v725 = vunpack.c.h.b16 %v138
  %v726 = vunpack.c.l.b16 %v139
  %v727 = vunpack.c.h.b16 %v139
  %v728 = vunpack.c.l.b16 %v140
  %v729 = vunpack.c.h.b16 %v140
  %v730 = vunpack.c.l.b16 %v141
  %v731 = vunpack.c.h.b16 %v141
  %v732 = vunpack.c.l.b16 %v142
  %v733 = vunpack.c.h.b16 %v142
  %v734 = vunpack.c.l.b16 %v143
  %v735 = vunpack.c.l.b16 %v144
  %v736 = vunpack.c.h.b16 %v144
  %v737 = vunpack.c.l.b16 %v145
  %v738 = vunpack.c.h.b16 %v145
  %v739 = vunpack.c.l.b16 %v146
  %v740 = vunpack.c.h.b16 %v146
  %v741 = vunpack.c.l.b16 %v147
  %v742 = vunpack.c.h.b16 %v147
  %v743 = vunpack.c.l.b16 %v148
  %v744 = vunpack.c.h.b16 %v148
  %v745 = vunpack.c.l.b16 %v149
  %v746 = vunpack.c.h.b16 %v149
  %v747 = vunpack.c.l.b16 %v150
  %v748 = vunpack.c.l.b16 %v151
  %v749 = vunpack.c.h.b16 %v151
  %v750 = vunpack.c.l.b16 %v152
  %v751 = vunpack.c.h.b16 %v152
  %v752 = vunpack.c.l.b16 %v153
  %v753 = vunpack.c.h.b16 %v153
  %v754 = vunpack.c.l.b16 %v154
  %v755 = vunpack.c.h.b16 %v154
  %v756 = vunpack.c.l.b16 %v155
  %v757 = vunpack.c.h.b16 %v155
  %v758 = vunpack.c.l.b16 %v156
  %v759 = vunpack.c.h.b16 %v156
  %v760 = vunpack.c.l.b16 %v157
  %v761 = vunpack.c.l.b16 %v158
  %v762 = vunpack.c.h.b16 %v158
  %v763 = vunpack.c.l.b16 %v159
  %v764 = vunpack.c.h.b16 %v159
  %v765 = vunpack.c.l.b16 %v160
  %v766 = vunpack.c.h.b16 %v160
  %v767 = vunpack.c.l.b16 %v161
  %v768 = vunpack.c.h.b16 %v161
  %v769 = vunpack.c.l.b16 %v162
  %v770 = vunpack.c.h.b16 %v162
  %v771 = vunpack.c.l.b16 %v163
  %v772 = vunpack.c.h.b16 %v163
  %v773 = vunpack.c.l.b16 %v164
  %v774 = vunpack.c.l.b16 %v165
  %v775 = vunpack.c.h.b16 %v165
  %v776 = vunpack.c.l.b16 %v166
  %v777 = vunpack.c.h.b16 %v166
  %v778 = vunpack.c.l.b16 %v167
  %v779 = vunpack.c.h.b16 %v167
  %v780 = vunpack.c.l.b16 %v168
  %v781 = vunpack.c.h.b16 %v168
  %v782 = vunpack.c.l.b16 %v169
  %v783 = vunpack.c.h.b16 %v169
  %v784 = vunpack.c.l.b16 %v170
  %v785 = vunpack.c.h.b16 %v170
  %v786 = vunpack.c.l.b16 %v171
  %v787 = vunpack.c.l.b16 %v172
  %v788 = vunpack.c.h.b16 %v172
  %v789 = vunpack.c.l.b16 %v173
  %v790 = vunpack.c.h.b16 %v173
  %v791 = vunpack.c.l.b16 %v174
  %v792 = vunpack.c.h.b16 %v174
  %v793 = vunpack.c.l.b16 %v175
  %v794 = vunpack.c.h.b16 %v175
  %v795 = vunpack.c.l.b16 %v176
  %v796 = vunpack.c.h.b16 %v176
  %v797 = vunpack.c.l.b16 %v177
  %v798 = vunpack.c.h.b16 %v177
  %v799 = vunpack.c.l.b16 %v178
  %v800 = vunpack.c.l.b16 %v179
  %v801 = vunpack.c.h.b16 %v179
  %v802 = vunpack.c.l.b16 %v180
  %v803 = vunpack.c.h.b16 %v180
  %v804 = vunpack.c.l.b16 %v181
  %v805 = vunpack.c.h.b16 %v181
  %v806 = vunpack.c.l.b16 %v182
  %v807 = vunpack.c.h.b16 %v182
  %v808 = vunpack.c.l.b16 %v183
  %v809 = vunpack.c.h.b16 %v183
  %v810 = vunpack.c.l.b16 %v184
  %v811 = vunpack.c.h.b16 %v184
  %v812 = vunpack.c.l.b16 %v185
  %v813 = vunpack.c.l.b16 %v186
  %v814 = vunpack.c.h.b16 %v186
  %v815 = vunpack.c.l.b16 %v187
  %v816 = vunpack.c.h.b16 %v187
  %v817 = vunpack.c.l.b16 %v188
  %v818 = vunpack.c.h.b16 %v188
  %v819 = vunpack.c.l.b16 %v189
  %v820 = vunpack.c.h.b16 %v189
  %v821 = vunpack.c.l.b16 %v190
  %v822 = vunpack.c.h.b16 %v190
  %v823 = vunpack.c.l.b16 %v191
  %v824 = vunpack.c.h.b16 %v191
  %v825 = vunpack.c.l.b16 %v192
  %v826 = vunpack.c.l.b16 %v193
  %v827 = vunpack.c.h.b16 %v193
  %v828 = vunpack.c.l.b16 %v194
  %v829 = vunpack.c.h.b16 %v194
  %v830 = vunpack.c.l.b16 %v195
  %v831 = vunpack.c.h.b16 %v195
  %v832 = vunpack.c.l.b16 %v196
  %v833 = vunpack.c.h.b16 %v196
  %v834 = vunpack.c.l.b16 %v197
  %v835 = vunpack.c.h.b16 %v197
  %v836 = vunpack.c.l.b16 %v198
  %v837 = vunpack.c.h.b16 %v198
  %v838 = vunpack.c.l.b16 %v199
  %v839 = vunpack.c.l.b16 %v200
  %v840 = vunpack.c.h.b16 %v200
  %v841 = vunpack.c.l.b16 %v201
  %v842 = vunpack.c.h.b16 %v201
  %v843 = vunpack.c.l.b16 %v202
  %v844 = vunpack.c.h.b16 %v202
  %v845 = vunpack.c.l.b16 %v203
  %v846 = vunpack.c.h.b16 %v203
  %v847 = vunpack.c.l.b16 %v204
  %v848 = vunpack.c.h.b16 %v204
  %v849 = vunpack.c.l.b16 %v205
  %v850 = vunpack.c.h.b16 %v205
  %v851 = vunpack.c.l.b16 %v206
  %v852 = vunpack.c.l.b16 %v207
  %v853 = vunpack.c.h.b16 %v207
  %v854 = vunpack.c.l.b16 %v208
  %v855 = vunpack.c.h.b16 %v208
  %v856 = vunpack.c.l.b16 %v209
  %v857 = vunpack.c.h.b16 %v209
  %v858 = vunpack.c.l.b16 %v210
  %v859 = vunpack.c.h.b16 %v210
  %v860 = vunpack.c.l.b16 %v211
  %v861 = vunpack.c.h.b16 %v211
  %v862 = vunpack.c.l.b16 %v212
  %v863 = vunpack.c.h.b16 %v212
  %v864 = vunpack.c.l.b16 %v213
  %v865 = vunpack.c.l.b16 %v214
  %v866 = vunpack.c.h.b16 %v214
  %v867 = vunpack.c.l.b16 %v215
  %v868 = vunpack.c.h.b16 %v215
  %v869 = vunpack.c.l.b16 %v216
  %v870 = vunpack.c.h.b16 %v216
  %v871 = vunpack.c.l.b16 %v217
  %v872 = vunpack.c.h.b16 %v217
  %v873 = vunpack.c.l.b16 %v218
  %v874 = vunpack.c.h.b16 %v218
  %v875 = vunpack.c.l.b16 %v219
  %v876 = vunpack.c.h.b16 %v219
  %v877 = vunpack.c.l.b16 %v220
  %v878 = vunpack.c.l.b16 %v221
  %v879 = vunpack.c.h.b16 %v221
  %v880 = vunpack.c.l.b16 %v222
  %v881 = vunpack.c.h.b16 %v222
  %v882 = vunpack.c.l.b16 %v223
  %v883 = vunpack.c.h.b16 %v223
  %v884 = vunpack.c.l.b16 %v224
  %v885 = vunpack.c.h.b16 %v224
  %v886 = vunpack.c.l.b16 %v225
  %v887 = vunpack.c.h.b16 %v225
  %v888 = vunpack.c.l.b16 %v226
  %v889 = vunpack.c.h.b16 %v226
  %v890 = vunpack.c.l.b16 %v227
  %v891 = vunpack.c.l.b16 %v228
  %v892 = vunpack.c.h.b16 %v228
  %v893 = vunpack.c.l.b16 %v229
  %v894 = vunpack.c.h.b16 %v229
  %v895 = vunpack.c.l.b16 %v230
  %v896 = vunpack.c.h.b16 %v230
  %v897 = vunpack.c.l.b16 %v231
  %v898 = vunpack.c.h.b16 %v231
  %v899 = vunpack.c.l.b16 %v232
  %v900 = vunpack.c.h.b16 %v232
  %v901 = vunpack.c.l.b16 %v233
  %v902 = vunpack.c.h.b16 %v233
  %v903 = vunpack.c.l.b16 %v234
  %v904 = vunpack.c.l.b16 %v235
  %v905 = vunpack.c.h.b16 %v235
  %v906 = vunpack.c.l.b16 %v236
  %v907 = vunpack.c.h.b16 %v236
  %v908 = vunpack.c.l.b16 %v237
  %v909 = vunpack.c.h.b16 %v237
  %v910 = vunpack.c.l.b16 %v238
  %v911 = vunpack.c.h.b16 %v238
  %v912 = vunpack.c.l.b16 %v239
  %v913 = vunpack.c.h.b16 %v239
  %v914 = vunpack.c.l.b16 %v240
  %v915 = vunpack.c.h.b16 %v240
  %v916 = vunpack.c.l.b16 %v241
  %v917 = vpack.c.b16 %v514, %v501
  %v918 = vpack.c.b16 %v515, %v502
  %v919 = vpack.c.b16 %v516, %v503
  %v920 = vpack.c.b16 %v517, %v504
  %v921 = vpack.c.b16 %v518, %v505
  %v922 = vpack.c.b16 %v519, %v506
  %v923 = vpack.c.b16 %v520, %v507
  %v924 = vpack.c.b16 %v521, %v508
  %v925 = vpack.c.b16 %v522, %v509
  %v926 = vpack.c.b16 %v523, %v510
  %v927 = vpack.c.b16 %v524, %v511
  %v928 = vpack.c.b16 %v525, %v512
  %v929 = vpack.c.b16 %v526, %v513
  %v930 = vpack.c.b16 %v540, %v527
  %v931 = vpack.c.b16 %v541, %v528
  %v932 = vpack.c.b16 %v542, %v529
  %v933 = vpack.c.b16 %v543, %v530
  %v934 = vpack.c.b16 %v544, %v531
  %v935 = vpack.c.b16 %v545, %v532
  %v936 = vpack.c.b16 %v546, %v533
  %v937 = vpack.c.b16 %v547, %v534
  %v938 = vpack.c.b16 %v548, %v535
  %v939 = vpack.c.b16 %v549, %v536
  %v940 = vpack.c.b16 %v550, %v537
  %v941 = vpack.c.b16 %v551, %v538
  %v942 = vpack.c.b16 %v552, %v539
  %v943 = vpack.c.b16 %v566, %v553
  %v944 = vpack.c.b16 %v567, %v554
  %v945 = vpack.c.b16 %v568, %v555
  %v946 = vpack.c.b16 %v569, %v556
  %v947 = vpack.c.b16 %v570, %v557
  %v948 = vpack.c.b16 %v571, %v558
  %v949 = vpack.c.b16 %v572, %v559
  %v950 = vpack.c.b16 %v573, %v560
  %v951 = vpack.c.b16 %v574, %v561
  %v952 = vpack.c.b16 %v575, %v562
  %v953 = vpack.c.b16 %v576, %v563
  %v954 = vpack.c.b16 %v577, %v564
  %v955 = vpack.c.b16 %v578, %v565
  %v956 = vpack.c.b16 %v592, %v579
  %v957 = vpack.c.b16 %v593, %v580
  %v958 = vpack.c.b16 %v594, %v581
  %v959 = vpack.c.b16 %v595, %v582
  %v960 = vpack.c.b16 %v596, %v583
  %v961 = vpack.c.b16 %v597, %v584
  %v962 = vpack.c.b16 %v598, %v585
  %v963 = vpack.c.b16 %v599, %v586
  %v964 = vpack.c.b16 %v600, %v587
  %v965 = vpack.c.b16 %v601, %v588
  %v966 = vpack.c.b16 %v602, %v589
  %v967 = vpack.c.b16 %v603, %v590
  %v968 = vpack.c.b16 %v604, %v591
  %v969 = vpack.c.b16 %v618, %v605
  %v970 = vpack.c.b16 %v619, %v606
  %v971 = vpack.c.b16 %v620, %v607
  %v972 = vpack.c.b16 %v621, %v608
  %v973 = vpack.c.b16 %v622, %v609
  %v974 = vpack.c.b16 %v623, %v610
  %v975 = vpack.c.b16 %v624, %v611
  %v976 = vpack.c.b16 %v625, %v612
  %v977 = vpack.c.b16 %v626, %v613
  %v978 = vpack.c.b16 %v627, %v614
  %v979 = vpack.c.b16 %v628, %v615
  %v980 = vpack.c.b16 %v629, %v616
  %v981 = vpack.c.b16 %v630, %v617
  %v982 = vpack.c.b16 %v644, %v631
  %v983 = vpack.c.b16 %v645, %v632
  %v984 = vpack.c.b16 %v646, %v633
  %v985 = vpack.c.b16 %v647, %v634
  %v986 = vpack.c.b16 %v648, %v635
  %v987 = vpack.c.b16 %v649, %v636
  %v988 = vpack.c.b16 %v650, %v637
  %v989 = vpack.c.b16 %v651, %v638
  %v990 = vpack.c.b16 %v652, %v639
  %v991 = vpack.c.b16 %v653, %v640
  %v992 = vpack.c.b16 %v654, %v641
  %v993 = vpack.c.b16 %v655, %v642
  %v994 = vpack.c.b16 %v656, %v643
  %v995 = vpack.c.b16 %v670, %v657
  %v996 = vpack.c.b16 %v671, %v658
  %v997 = vpack.c.b16 %v672, %v659
  %v998 = vpack.c.b16 %v673, %v660
  %v999 = vpack.c.b16 %v674, %v661
  %v1000 = vpack.c.b16 %v675, %v662
  %v1001 = vpack.c.b16 %v676, %v663
  %v1002 = vpack.c.b16 %v677, %v664
  %v1003 = vpack.c.b16 %v678, %v665
  %v1004 = vpack.c.b16 %v679, %v666
  %v1005 = vpack.c.b16 %v680, %v667
  %v1006 = vpack.c.b16 %v681, %v668
  %v1007 = vpack.c.b16 %v682, %v669
  %v1008 = vpack.c.b16 %v696, %v683
  %v1009 = vpack.c.b16 %v697, %v684
  %v1010 = vpack.c.b16 %v698, %v685
  %v1011 = vpack.c.b16 %v699, %v686
  %v1012 = vpack.c.b16 %v700, %v687
  %v1013 = vpack.c.b16 %v701, %v688
  %v1014 = vpack.c.b16 %v702, %v689
  %v1015 = vpack.c.b16 %v703, %v690
  %v1016 = vpack.c.b16 %v704, %v691
  %v1017 = vpack.c.b16 %v705, %v692
  %v1018 = vpack.c.b16 %v706, %v693
  %v1019 = vpack.c.b16 %v707, %v694
  %v1020 = vpack.c.b16 %v708, %v695
  %v1021 = vpack.c.b16 %v722, %v709
  %v1022 = vpack.c.b16 %v723, %v710
  %v1023 = vpack.c.b16 %v724, %v711
  %v1024 = vpack.c.b16 %v725, %v712
  %v1025 = vpack.c.b16 %v726, %v713
  %v1026 = vpack.c.b16 %v727, %v714
  %v1027 = vpack.c.b16 %v728, %v715
  %v1028 = vpack.c.b16 %v729, %v716
  %v1029 = vpack.c.b16 %v730, %v717
  %v1030 = vpack.c.b16 %v731, %v718
  %v1031 = vpack.c.b16 %v732, %v719
  %v1032 = vpack.c.b16 %v733, %v720
  %v1033 = vpack.c.b16 %v734, %v721
  %v1034 = vpack.c.b16 %v748, %v735
  %v1035 = vpack.c.b16 %v749, %v736
  %v1036 = vpack.c.b16 %v750, %v737
  %v1037 = vpack.c.b16 %v751, %v738
  %v1038 = vpack.c.b16 %v752, %v739
  %v1039 = vpack.c.b16 %v753, %v740
  %v1040 = vpack.c.b16 %v754, %v741
  %v1041 = vpack.c.b16 %v755, %v742
  %v1042 = vpack.c.b16 %v756, %v743
  %v1043 = vpack.c.b16 %v757, %v744
  %v1044 = vpack.c.b16 %v758, %v745
  %v1045 = vpack.c.b16 %v759, %v746
  %v1046 = vpack.c.b16 %v760, %v747
  %v1047 = vpack.c.b16 %v774, %v761
  %v1048 = vpack.c.b16 %v775, %v762
  %v1049 = vpack.c.b16 %v776, %v763
  %v1050 = vpack.c.b16 %v777, %v764
  %v1051 = vpack.c.b16 %v778, %v765
  %v1052 = vpack.c.b16 %v779, %v766
  %v1053 = vpack.c.b16 %v780, %v767
  %v1054 = vpack.c.b16 %v781, %v768
  %v1055 = vpack.c.b16 %v782, %v769
  %v1056 = vpack.c.b16 %v783, %v770
  %v1057 = vpack.c.b16 %v784, %v771
  %v1058 = vpack.c.b16 %v785, %v772
  %v1059 = vpack.c.b16 %v786, %v773
  %v1060 = vpack.c.b16 %v800, %v787
  %v1061 = vpack.c.b16 %v801, %v788
  %v1062 = vpack.c.b16 %v802, %v789
  %v1063 = vpack.c.b16 %v803, %v790
  %v1064 = vpack.c.b16 %v804, %v791
  %v1065 = vpack.c.b16 %v805, %v792
  %v1066 = vpack.c.b16 %v806, %v793
  %v1067 = vpack.c.b16 %v807, %v794
  %v1068 = vpack.c.b16 %v808, %v795
  %v1069 = vpack.c.b16 %v809, %v796
  %v1070 = vpack.c.b16 %v810, %v797
  %v1071 = vpack.c.b16 %v811, %v798
  %v1072 = vpack.c.b16 %v812, %v799
  %v1073 = vpack.c.b16 %v826, %v813
  %v1074 = vpack.c.b16 %v827, %v814
  %v1075 = vpack.c.b16 %v828, %v815
  %v1076 = vpack.c.b16 %v829, %v816
  %v1077 = vpack.c.b16 %v830, %v817
  %v1078 = vpack.c.b16 %v831, %v818
  %v1079 = vpack.c.b16 %v832, %v819
  %v1080 = vpack.c.b16 %v833, %v820
  %v1081 = vpack.c.b16 %v834, %v821
  %v1082 = vpack.c.b16 %v835, %v822
  %v1083 = vpack.c.b16 %v836, %v823
  %v1084 = vpack.c.b16 %v837, %v824
  %v1085 = vpack.c.b16 %v838, %v825
  %v1086 = vpack.c.b16 %v852, %v839
  %v1087 = vpack.c.b16 %v853, %v840
  %v1088 = vpack.c.b16 %v854, %v841
  %v1089 = vpack.c.b16 %v855, %v842
  %v1090 = vpack.c.b16 %v856, %v843
  %v1091 = vpack.c.b16 %v857, %v844
  %v1092 = vpack.c.b16 %v858, %v845
  %v1093 = vpack.c.b16 %v859, %v846
  %v1094 = vpack.c.b16 %v860, %v847
  %v1095 = vpack.c.b16 %v861, %v848
  %v1096 = vpack.c.b16 %v862, %v849
  %v1097 = vpack.c.b16 %v863, %v850
  %v1098 = vpack.c.b16 %v864, %v851
  %v1099 = vpack.c.b16 %v878, %v865
  %v1100 = vpack.c.b16 %v879, %v866
  %v1101 = vpack.c.b16 %v880, %v867
  %v1102 = vpack.c.b16 %v881, %v868
  %v1103 = vpack.c.b16 %v882, %v869
  %v1104 = vpack.c.b16 %v883, %v870
  %v1105 = vpack.c.b16 %v884, %v871
  %v1106 = vpack.c.b16 %v885, %v872
  %v1107 = vpack.c.b16 %v886, %v873
  %v1108 = vpack.c.b16 %v887, %v874
  %v1109 = vpack.c.b16 %v888, %v875
  %v1110 = vpack.c.b16 %v889, %v876
  %v1111 = vpack.c.b16 %v890, %v877
  %v1112 = vpack.c.b16 %v904, %v891
  %v1113 = vpack.c.b16 %v905, %v892
  %v1114 = vpack.c.b16 %v906, %v893
  %v1115 = vpack.c.b16 %v907, %v894
  %v1116 = vpack.c.b16 %v908, %v895
  %v1117 = vpack.c.b16 %v909, %v896
  %v1118 = vpack.c.b16 %v910, %v897
  %v1119 = vpack.c.b16 %v911, %v898
  %v1120 = vpack.c.b16 %v912, %v899
  %v1121 = vpack.c.b16 %v913, %v900
  %v1122 = vpack.c.b16 %v914, %v901
  %v1123 = vpack.c.b16 %v915, %v902
  %v1124 = vpack.c.b16 %v916, %v903
  %1333 = vmatprep.subr.bf16.mxu0 %v1009
  %1334 = vmatpush1.bf16.msra.mxu0 %v1008
  %1335 = vmatprep.subr.bf16.mxu0 %v996
  %1336 = vmatpush1.bf16.msra.mxu0 %v995
  %1337 = vmatprep.subr.bf16.mxu0 %v983
  %1338 = vmatpush1.bf16.msra.mxu0 %v982
  %1339 = vmatprep.subr.bf16.mxu0 %v970
  %1340 = vmatpush1.bf16.msra.mxu0 %v969
  %1341 = vmatprep.subr.bf16.mxu0 %v957
  %1342 = vmatpush1.bf16.msra.mxu0 %v956
  %1343 = vmatprep.subr.bf16.mxu0 %v944
  %1344 = vmatpush1.bf16.msra.mxu0 %v943
  %1345 = vmatprep.subr.bf16.mxu0 %v931
  %1346 = vmatpush1.bf16.msra.mxu0 %v930
  %1347 = vmatprep.subr.bf16.mxu0 %v918
  %1348 = vmatpush1.bf16.msra.mxu0 %v917
  %1349 = vmatprep.subr.bf16.mxu0 %v1113
  %1350 = vmatpush2.bf16.msra.mxu0 %v1112
  %1351 = vmatprep.subr.bf16.mxu0 %v1100
  %1352 = vmatpush2.bf16.msra.mxu0 %v1099
  %1353 = vmatprep.subr.bf16.mxu0 %v1087
  %1354 = vmatpush2.bf16.msra.mxu0 %v1086
  %1355 = vmatprep.subr.bf16.mxu0 %v1074
  %1356 = vmatpush2.bf16.msra.mxu0 %v1073
  %1357 = vmatprep.subr.bf16.mxu0 %v1061
  %1358 = vmatpush2.bf16.msra.mxu0 %v1060
  %1359 = vmatprep.subr.bf16.mxu0 %v1048
  %1360 = vmatpush2.bf16.msra.mxu0 %v1047
  %1361 = vmatprep.subr.bf16.mxu0 %v1035
  %1362 = vmatpush2.bf16.msra.mxu0 %v1034
  %1363 = vmatprep.subr.bf16.mxu0 %v1022
  %1364 = vmatpush2.bf16.msra.mxu0 %v1021
  %1365 = vmatprep.mubr.bf16.mxu0 %v274
  %1366 = vmatmul.mubr.bf16.gmra.mxu0 %v267
  %v1367 = vpop.f32.mrf.mxu0
  %v1368 = vadd.f32 %v251, %v1367
  %v1369 = vpop.f32.mrf.mxu0
  %v1370 = vadd.f32 %v251, %v1369
  %v1371 = vpop.f32.mrf.mxu0
  %v1372 = vpop.f32.mrf.mxu0
  %1373 = vdwg.mxu0
  %1374 = vmatprep.subr.bf16.mxu0 %v1011
  %1375 = vmatpush1.bf16.msra.mxu0 %v1010
  %1376 = vmatprep.subr.bf16.mxu0 %v998
  %1377 = vmatpush1.bf16.msra.mxu0 %v997
  %1378 = vmatprep.subr.bf16.mxu0 %v985
  %1379 = vmatpush1.bf16.msra.mxu0 %v984
  %1380 = vmatprep.subr.bf16.mxu0 %v972
  %1381 = vmatpush1.bf16.msra.mxu0 %v971
  %1382 = vmatprep.subr.bf16.mxu0 %v959
  %1383 = vmatpush1.bf16.msra.mxu0 %v958
  %1384 = vmatprep.subr.bf16.mxu0 %v946
  %1385 = vmatpush1.bf16.msra.mxu0 %v945
  %1386 = vmatprep.subr.bf16.mxu0 %v933
  %1387 = vmatpush1.bf16.msra.mxu0 %v932
  %1388 = vmatprep.subr.bf16.mxu0 %v920
  %1389 = vmatpush1.bf16.msra.mxu0 %v919
  %1390 = vmatprep.subr.bf16.mxu0 %v1115
  %1391 = vmatpush2.bf16.msra.mxu0 %v1114
  %1392 = vmatprep.subr.bf16.mxu0 %v1102
  %1393 = vmatpush2.bf16.msra.mxu0 %v1101
  %1394 = vmatprep.subr.bf16.mxu0 %v1089
  %1395 = vmatpush2.bf16.msra.mxu0 %v1088
  %1396 = vmatprep.subr.bf16.mxu0 %v1076
  %1397 = vmatpush2.bf16.msra.mxu0 %v1075
  %1398 = vmatprep.subr.bf16.mxu0 %v1063
  %1399 = vmatpush2.bf16.msra.mxu0 %v1062
  %1400 = vmatprep.subr.bf16.mxu0 %v1050
  %1401 = vmatpush2.bf16.msra.mxu0 %v1049
  %1402 = vmatprep.subr.bf16.mxu0 %v1037
  %1403 = vmatpush2.bf16.msra.mxu0 %v1036
  %1404 = vmatprep.subr.bf16.mxu0 %v1024
  %1405 = vmatpush2.bf16.msra.mxu0 %v1023
  %1406 = vmatprep.mubr.bf16.mxu0 %v274
  %1407 = vmatmul.mubr.bf16.gmra.mxu0 %v267
  %v1408 = vpop.f32.mrf.mxu0
  %v1409 = vadd.f32 %v251, %v1408
  %v1410 = vpop.f32.mrf.mxu0
  %v1411 = vadd.f32 %v251, %v1410
  %v1412 = vpop.f32.mrf.mxu0
  %v1413 = vpop.f32.mrf.mxu0
  %1414 = vdwg.mxu0
  %1415 = vmatprep.subr.bf16.mxu0 %v1013
  %1416 = vmatpush1.bf16.msra.mxu0 %v1012
  %1417 = vmatprep.subr.bf16.mxu0 %v1000
  %1418 = vmatpush1.bf16.msra.mxu0 %v999
  %1419 = vmatprep.subr.bf16.mxu0 %v987
  %1420 = vmatpush1.bf16.msra.mxu0 %v986
  %1421 = vmatprep.subr.bf16.mxu0 %v974
  %1422 = vmatpush1.bf16.msra.mxu0 %v973
  %1423 = vmatprep.subr.bf16.mxu0 %v961
  %1424 = vmatpush1.bf16.msra.mxu0 %v960
  %1425 = vmatprep.subr.bf16.mxu0 %v948
  %1426 = vmatpush1.bf16.msra.mxu0 %v947
  %1427 = vmatprep.subr.bf16.mxu0 %v935
  %1428 = vmatpush1.bf16.msra.mxu0 %v934
  %1429 = vmatprep.subr.bf16.mxu0 %v922
  %1430 = vmatpush1.bf16.msra.mxu0 %v921
  %1431 = vmatprep.subr.bf16.mxu0 %v1117
  %1432 = vmatpush2.bf16.msra.mxu0 %v1116
  %1433 = vmatprep.subr.bf16.mxu0 %v1104
  %1434 = vmatpush2.bf16.msra.mxu0 %v1103
  %1435 = vmatprep.subr.bf16.mxu0 %v1091
  %1436 = vmatpush2.bf16.msra.mxu0 %v1090
  %1437 = vmatprep.subr.bf16.mxu0 %v1078
  %1438 = vmatpush2.bf16.msra.mxu0 %v1077
  %1439 = vmatprep.subr.bf16.mxu0 %v1065
  %1440 = vmatpush2.bf16.msra.mxu0 %v1064
  %1441 = vmatprep.subr.bf16.mxu0 %v1052
  %1442 = vmatpush2.bf16.msra.mxu0 %v1051
  %1443 = vmatprep.subr.bf16.mxu0 %v1039
  %1444 = vmatpush2.bf16.msra.mxu0 %v1038
  %1445 = vmatprep.subr.bf16.mxu0 %v1026
  %1446 = vmatpush2.bf16.msra.mxu0 %v1025
  %1447 = vmatprep.mubr.bf16.mxu0 %v274
  %1448 = vmatmul.mubr.bf16.gmra.mxu0 %v267
  %v1449 = vpop.f32.mrf.mxu0
  %v1450 = vadd.f32 %v251, %v1449
  %v1451 = vpop.f32.mrf.mxu0
  %v1452 = vadd.f32 %v251, %v1451
  %v1453 = vpop.f32.mrf.mxu0
  %v1454 = vpop.f32.mrf.mxu0
  %1455 = vdwg.mxu0
  %1456 = vmatprep.subr.bf16.mxu0 %v1015
  %1457 = vmatpush1.bf16.msra.mxu0 %v1014
  %1458 = vmatprep.subr.bf16.mxu0 %v1002
  %1459 = vmatpush1.bf16.msra.mxu0 %v1001
  %1460 = vmatprep.subr.bf16.mxu0 %v989
  %1461 = vmatpush1.bf16.msra.mxu0 %v988
  %1462 = vmatprep.subr.bf16.mxu0 %v976
  %1463 = vmatpush1.bf16.msra.mxu0 %v975
  %1464 = vmatprep.subr.bf16.mxu0 %v963
  %1465 = vmatpush1.bf16.msra.mxu0 %v962
  %1466 = vmatprep.subr.bf16.mxu0 %v950
  %1467 = vmatpush1.bf16.msra.mxu0 %v949
  %1468 = vmatprep.subr.bf16.mxu0 %v937
  %1469 = vmatpush1.bf16.msra.mxu0 %v936
  %1470 = vmatprep.subr.bf16.mxu0 %v924
  %1471 = vmatpush1.bf16.msra.mxu0 %v923
  %1472 = vmatprep.subr.bf16.mxu0 %v1119
  %1473 = vmatpush2.bf16.msra.mxu0 %v1118
  %1474 = vmatprep.subr.bf16.mxu0 %v1106
  %1475 = vmatpush2.bf16.msra.mxu0 %v1105
  %1476 = vmatprep.subr.bf16.mxu0 %v1093
  %1477 = vmatpush2.bf16.msra.mxu0 %v1092
  %1478 = vmatprep.subr.bf16.mxu0 %v1080
  %1479 = vmatpush2.bf16.msra.mxu0 %v1079
  %1480 = vmatprep.subr.bf16.mxu0 %v1067
  %1481 = vmatpush2.bf16.msra.mxu0 %v1066
  %1482 = vmatprep.subr.bf16.mxu0 %v1054
  %1483 = vmatpush2.bf16.msra.mxu0 %v1053
  %1484 = vmatprep.subr.bf16.mxu0 %v1041
  %1485 = vmatpush2.bf16.msra.mxu0 %v1040
  %1486 = vmatprep.subr.bf16.mxu0 %v1028
  %1487 = vmatpush2.bf16.msra.mxu0 %v1027
  %1488 = vmatprep.mubr.bf16.mxu0 %v274
  %1489 = vmatmul.mubr.bf16.gmra.mxu0 %v267
  %v1490 = vpop.f32.mrf.mxu0
  %v1491 = vadd.f32 %v251, %v1490
  %v1492 = vpop.f32.mrf.mxu0
  %v1493 = vadd.f32 %v251, %v1492
  %v1494 = vpop.f32.mrf.mxu0
  %v1495 = vpop.f32.mrf.mxu0
  %1496 = vdwg.mxu0
  %1497 = vmatprep.subr.bf16.mxu0 %v1017
  %1498 = vmatpush1.bf16.msra.mxu0 %v1016
  %1499 = vmatprep.subr.bf16.mxu0 %v1004
  %1500 = vmatpush1.bf16.msra.mxu0 %v1003
  %1501 = vmatprep.subr.bf16.mxu0 %v991
  %1502 = vmatpush1.bf16.msra.mxu0 %v990
  %1503 = vmatprep.subr.bf16.mxu0 %v978
  %1504 = vmatpush1.bf16.msra.mxu0 %v977
  %1505 = vmatprep.subr.bf16.mxu0 %v965
  %1506 = vmatpush1.bf16.msra.mxu0 %v964
  %1507 = vmatprep.subr.bf16.mxu0 %v952
  %1508 = vmatpush1.bf16.msra.mxu0 %v951
  %1509 = vmatprep.subr.bf16.mxu0 %v939
  %1510 = vmatpush1.bf16.msra.mxu0 %v938
  %1511 = vmatprep.subr.bf16.mxu0 %v926
  %1512 = vmatpush1.bf16.msra.mxu0 %v925
  %1513 = vmatprep.subr.bf16.mxu0 %v1121
  %1514 = vmatpush2.bf16.msra.mxu0 %v1120
  %1515 = vmatprep.subr.bf16.mxu0 %v1108
  %1516 = vmatpush2.bf16.msra.mxu0 %v1107
  %1517 = vmatprep.subr.bf16.mxu0 %v1095
  %1518 = vmatpush2.bf16.msra.mxu0 %v1094
  %1519 = vmatprep.subr.bf16.mxu0 %v1082
  %1520 = vmatpush2.bf16.msra.mxu0 %v1081
  %1521 = vmatprep.subr.bf16.mxu0 %v1069
  %1522 = vmatpush2.bf16.msra.mxu0 %v1068
  %1523 = vmatprep.subr.bf16.mxu0 %v1056
  %1524 = vmatpush2.bf16.msra.mxu0 %v1055
  %1525 = vmatprep.subr.bf16.mxu0 %v1043
  %1526 = vmatpush2.bf16.msra.mxu0 %v1042
  %1527 = vmatprep.subr.bf16.mxu0 %v1030
  %1528 = vmatpush2.bf16.msra.mxu0 %v1029
  %1529 = vmatprep.mubr.bf16.mxu0 %v274
  %1530 = vmatmul.mubr.bf16.gmra.mxu0 %v267
  %v1531 = vpop.f32.mrf.mxu0
  %v1532 = vadd.f32 %v251, %v1531
  %v1533 = vpop.f32.mrf.mxu0
  %v1534 = vadd.f32 %v251, %v1533
  %v1535 = vpop.f32.mrf.mxu0
  %v1536 = vpop.f32.mrf.mxu0
  %1537 = vdwg.mxu0
  %1538 = vmatprep.subr.bf16.mxu0 %v1019
  %1539 = vmatpush1.bf16.msra.mxu0 %v1018
  %1540 = vmatprep.subr.bf16.mxu0 %v1006
  %1541 = vmatpush1.bf16.msra.mxu0 %v1005
  %1542 = vmatprep.subr.bf16.mxu0 %v993
  %1543 = vmatpush1.bf16.msra.mxu0 %v992
  %1544 = vmatprep.subr.bf16.mxu0 %v980
  %1545 = vmatpush1.bf16.msra.mxu0 %v979
  %1546 = vmatprep.subr.bf16.mxu0 %v967
  %1547 = vmatpush1.bf16.msra.mxu0 %v966
  %1548 = vmatprep.subr.bf16.mxu0 %v954
  %1549 = vmatpush1.bf16.msra.mxu0 %v953
  %1550 = vmatprep.subr.bf16.mxu0 %v941
  %1551 = vmatpush1.bf16.msra.mxu0 %v940
  %1552 = vmatprep.subr.bf16.mxu0 %v928
  %1553 = vmatpush1.bf16.msra.mxu0 %v927
  %1554 = vmatprep.subr.bf16.mxu0 %v1123
  %1555 = vmatpush2.bf16.msra.mxu0 %v1122
  %1556 = vmatprep.subr.bf16.mxu0 %v1110
  %1557 = vmatpush2.bf16.msra.mxu0 %v1109
  %1558 = vmatprep.subr.bf16.mxu0 %v1097
  %1559 = vmatpush2.bf16.msra.mxu0 %v1096
  %1560 = vmatprep.subr.bf16.mxu0 %v1084
  %1561 = vmatpush2.bf16.msra.mxu0 %v1083
  %1562 = vmatprep.subr.bf16.mxu0 %v1071
  %1563 = vmatpush2.bf16.msra.mxu0 %v1070
  %1564 = vmatprep.subr.bf16.mxu0 %v1058
  %1565 = vmatpush2.bf16.msra.mxu0 %v1057
  %1566 = vmatprep.subr.bf16.mxu0 %v1045
  %1567 = vmatpush2.bf16.msra.mxu0 %v1044
  %1568 = vmatprep.subr.bf16.mxu0 %v1032
  %1569 = vmatpush2.bf16.msra.mxu0 %v1031
  %1570 = vmatprep.mubr.bf16.mxu0 %v274
  %1571 = vmatmul.mubr.bf16.gmra.mxu0 %v267
  %v1572 = vpop.f32.mrf.mxu0
  %v1573 = vadd.f32 %v251, %v1572
  %v1574 = vpop.f32.mrf.mxu0
  %v1575 = vadd.f32 %v251, %v1574
  %v1576 = vpop.f32.mrf.mxu0
  %v1577 = vpop.f32.mrf.mxu0
  %1578 = vdwg.mxu0
  %1579 = vmatprep.subr.bf16.mxu0 0
  %1580 = vmatpush1.bf16.msra.mxu0 %v1020
  %1581 = vmatprep.subr.bf16.mxu0 0
  %1582 = vmatpush1.bf16.msra.mxu0 %v1007
  %1583 = vmatprep.subr.bf16.mxu0 0
  %1584 = vmatpush1.bf16.msra.mxu0 %v994
  %1585 = vmatprep.subr.bf16.mxu0 0
  %1586 = vmatpush1.bf16.msra.mxu0 %v981
  %1587 = vmatprep.subr.bf16.mxu0 0
  %1588 = vmatpush1.bf16.msra.mxu0 %v968
  %1589 = vmatprep.subr.bf16.mxu0 0
  %1590 = vmatpush1.bf16.msra.mxu0 %v955
  %1591 = vmatprep.subr.bf16.mxu0 0
  %1592 = vmatpush1.bf16.msra.mxu0 %v942
  %1593 = vmatprep.subr.bf16.mxu0 0
  %1594 = vmatpush1.bf16.msra.mxu0 %v929
  %1595 = vmatprep.subr.bf16.mxu0 0
  %1596 = vmatpush2.bf16.msra.mxu0 %v1124
  %1597 = vmatprep.subr.bf16.mxu0 0
  %1598 = vmatpush2.bf16.msra.mxu0 %v1111
  %1599 = vmatprep.subr.bf16.mxu0 0
  %1600 = vmatpush2.bf16.msra.mxu0 %v1098
  %1601 = vmatprep.subr.bf16.mxu0 0
  %1602 = vmatpush2.bf16.msra.mxu0 %v1085
  %1603 = vmatprep.subr.bf16.mxu0 0
  %1604 = vmatpush2.bf16.msra.mxu0 %v1072
  %1605 = vmatprep.subr.bf16.mxu0 0
  %1606 = vmatpush2.bf16.msra.mxu0 %v1059
  %1607 = vmatprep.subr.bf16.mxu0 0
  %1608 = vmatpush2.bf16.msra.mxu0 %v1046
  %1609 = vmatprep.subr.bf16.mxu0 0
  %1610 = vmatpush2.bf16.msra.mxu0 %v1033
  %1611 = vmatprep.mubr.bf16.mxu0 %v274
  %1612 = vmatmul.mubr.bf16.gmra.mxu0 %v267
  %v1613 = vpop.f32.mrf.mxu0
  %v1614 = vadd.f32 %v251, %v1613
  %v1615 = vpop.f32.mrf.mxu0
  %v1616 = vpop.f32.mrf.mxu0
  %v1617 = vpop.f32.mrf.mxu0
  %1618 = vdwg.mxu0
  %v1632 = vcombine.low %v1368, %v1370
  %v1633 = vcombine.low %v1409, %v1411
  %v1634 = vcombine.low %v1450, %v1452
  %v1635 = vcombine.low %v1491, %v1493
  %v1637 = vunpack.c.l.s4 1966171168
  %v1638 = vunpack.c.0.s8 %v1637
  %v1639 = vlaneseq
  %v1640 = vshrl.u32 %v1639, 7
  %v1641 = vsub.s32 %v1638, %v1640
  %v1642 = vrot.slane %v1632, %v1641
  %v1644 = vunpack.c.l.s4 1966171168
  %v1645 = vunpack.c.0.s8 %v1644
  %v1646 = vlaneseq
  %v1647 = vshrl.u32 %v1646, 7
  %v1648 = vsub.s32 %v1645, %v1647
  %v1649 = vrot.slane %v1633, %v1648
  %v1651 = vunpack.c.l.s4 1966171168
  %v1652 = vunpack.c.0.s8 %v1651
  %v1653 = vlaneseq
  %v1654 = vshrl.u32 %v1653, 7
  %v1655 = vsub.s32 %v1652, %v1654
  %v1656 = vrot.slane %v1634, %v1655
  %v1658 = vunpack.c.l.s4 1966171168
  %v1659 = vunpack.c.0.s8 %v1658
  %v1660 = vlaneseq
  %v1661 = vshrl.u32 %v1660, 7
  %v1662 = vsub.s32 %v1659, %v1661
  %v1663 = vrot.slane %v1635, %v1662
  %v1664 = vcombine.low %v1642, %v1649
  %v1665 = vcombine.low %v1656, %v1663
  %v1667 = vunpack.c.l.s4 1966171168
  %v1668 = vunpack.c.0.s8 %v1667
  %v1669 = vlaneseq
  %v1670 = vshrl.u32 %v1669, 7
  %v1671 = vsub.s32 %v1668, %v1670
  %v1672 = vrot.slane %v1664, %v1671
  %v1674 = vunpack.c.l.s4 1966171168
  %v1675 = vunpack.c.0.s8 %v1674
  %v1676 = vlaneseq
  %v1677 = vshrl.u32 %v1676, 7
  %v1678 = vsub.s32 %v1675, %v1677
  %v1679 = vrot.slane %v1665, %v1678
  %v1680 = vcombine.low %v1672, %v1679
  %v1681 = vcombine.low %v1532, %v1534
  %v1682 = vcombine.low %v1573, %v1575
  %v1684 = vunpack.c.l.s4 1966171168
  %v1685 = vunpack.c.0.s8 %v1684
  %v1686 = vlaneseq
  %v1687 = vshrl.u32 %v1686, 7
  %v1688 = vsub.s32 %v1685, %v1687
  %v1689 = vrot.slane %v1681, %v1688
  %v1691 = vunpack.c.l.s4 1966171168
  %v1692 = vunpack.c.0.s8 %v1691
  %v1693 = vlaneseq
  %v1694 = vshrl.u32 %v1693, 7
  %v1695 = vsub.s32 %v1692, %v1694
  %v1696 = vrot.slane %v1682, %v1695
  %v1698 = vunpack.c.l.s4 1966171168
  %v1699 = vunpack.c.0.s8 %v1698
  %v1700 = vlaneseq
  %v1701 = vshrl.u32 %v1700, 7
  %v1702 = vsub.s32 %v1699, %v1701
  %v1703 = vrot.slane %v1614, %v1702
  %v1704 = vcombine.low %v1689, %v1696
  %v1706 = vunpack.c.l.s4 1966171168
  %v1707 = vunpack.c.0.s8 %v1706
  %v1708 = vlaneseq
  %v1709 = vshrl.u32 %v1708, 7
  %v1710 = vsub.s32 %v1707, %v1709
  %v1711 = vrot.slane %v1704, %v1710
  %v1713 = vunpack.c.l.s4 1966171168
  %v1714 = vunpack.c.0.s8 %v1713
  %v1715 = vlaneseq
  %v1716 = vshrl.u32 %v1715, 7
  %v1717 = vsub.s32 %v1714, %v1716
  %v1718 = vrot.slane %v1703, %v1717
  %v1719 = vcombine.low %v1711, %v1718
  %1722 = vst [vmem:[%s3] sm:$0xff] %v1680
  %v1723 = vlaneseq
  %vm1724 = vcmp.ge.s32.totalorder %v1723, 0
  %vm1725 = vcmp.lt.s32.totalorder %v1723, 544
  %vm1726 = vmand %vm1724, %vm1725
  %1727 = vst.msk [vmem:[%s3 + $0x8] sm:$0x1f] %vm1726, %v1719
  // Predicated region
  $region14: #{vae_forward.9} parent=0 // pred_check
    _
  $region15: #{vae_forward.9} parent=0 // pred_check_branch
    %1729 = sbr.rel (0) target = $region17
  $region16: #{vae_forward.9} parent=0 // pred_region
    _
  $region17: #{vae_forward.9} parent=0 // pred_fallthru
    _
  // Predicated region
  $region18: #{vae_forward.9} parent=0 // pred_check
    _
  $region19: #{vae_forward.9} parent=0 // pred_check_branch
    %1731 = sbr.rel (0) target = $region21
  $region20: #{vae_forward.9} parent=0 // pred_region
    _
  $region21: #{vae_forward.9} parent=0 // pred_fallthru
    _

</llo_original>
